<compile_context>
chip_gen: v7x
topology: tpu7x:2x2x1
jax: 0.10.0
libtpu: 0.0.40
codegen_flags: <defaults>
</compile_context>

<pallas_src>
import math

import jax
import jax.numpy as jnp
from jax.experimental import pallas as pl
from jax.experimental.pallas import tpu as pltpu

BN_EPS = 1e-5
_INV_SQRT2 = 0.7071067811865476

# Abramowitz & Stegun 7.1.26 erf approximation (|error| <= 1.5e-7), built only from
# ops guaranteed to lower on the TPU VPU/EUP (exp, mul, add, div, where). This keeps
# nn.GELU()'s exact (erf) semantics to well within f32 test tolerance.
_ERF_P = 0.3275911
_ERF_A1 = 0.254829592
_ERF_A2 = -0.284496736
_ERF_A3 = 1.421413741
_ERF_A4 = -1.453152027
_ERF_A5 = 1.061405429


def _erf(x):
    z = jnp.abs(x)
    t = 1.0 / (1.0 + _ERF_P * z)
    poly = t * (_ERF_A1 + t * (_ERF_A2 + t * (_ERF_A3 + t * (_ERF_A4 + t * _ERF_A5))))
    e = 1.0 - poly * jnp.exp(-z * z)
    return jnp.where(x < 0.0, -e, e)


def _gelu_exact(x):
    # nn.GELU() default: x * Phi(x) = 0.5 * x * (1 + erf(x / sqrt(2)))
    return 0.5 * x * (1.0 + _erf(x * _INV_SQRT2))


def _mlp_stage1_kernel(x_ref, w1_ref, b1_ref, w2_ref, y_ref, stats_ref):
    """One row-tile: y = GELU(x @ W1 + b1) @ W2, plus per-channel partial BN stats.

    x_ref     : [TM, C]   f32   input rows
    w1_ref    : [C, H]    f32   first Linear weight (transposed)
    b1_ref    : [1, H]    f32   first Linear bias
    w2_ref    : [H, C]    f32   second Linear weight (transposed)
    y_ref     : [TM, C]   f32   pre-BN output rows
    stats_ref : [1, 2, C] f32   per-tile [sum, sum_of_squares] over the TM rows
    """
    x = x_ref[...]
    h = jnp.dot(x, w1_ref[...], preferred_element_type=jnp.float32) + b1_ref[...]
    h = _gelu_exact(h)
    y = jnp.dot(h, w2_ref[...], preferred_element_type=jnp.float32)
    y_ref[...] = y
    # One-pass streaming stats: sum and sum of squares per channel for this tile.
    stats_ref[0, 0:1, :] = jnp.sum(y, axis=0, keepdims=True)
    stats_ref[0, 1:2, :] = jnp.sum(y * y, axis=0, keepdims=True)


def _bn_apply_kernel(y_ref, scale_ref, shift_ref, o_ref):
    """out = y * scale + shift   (scale/shift fold mean, inv-std, gamma, beta)."""
    o_ref[...] = y_ref[...] * scale_ref[...] + shift_ref[...]


def _pick_tile_m(m):
    for t in (256, 128, 64, 32, 16, 8):
        if m % t == 0:
            return t
    return m  # full extent always allowed


@jax.jit
def mlp_forward(f, w1_t, b1, w2_t, gamma, beta):
    """f: [B,N,C]; w1_t: [C,H]; b1: [H]; w2_t: [H,C]; gamma/beta: [C]."""
    B, N, C = f.shape
    H = w1_t.shape[1]
    M = B * N
    tm = _pick_tile_m(M)
    G = M // tm

    x2d = f.reshape(M, C)
    b1_2d = b1.reshape(1, H)

    # Pass 1: fused MLP over row tiles + per-tile BN partial statistics.
    y2d, stats = pl.pallas_call(
        _mlp_stage1_kernel,
        out_shape=(
            jax.ShapeDtypeStruct((M, C), jnp.float32),
            jax.ShapeDtypeStruct((G, 2, C), jnp.float32),
        ),
        grid=(G,),
        in_specs=[
            pl.BlockSpec((tm, C), lambda i: (i, 0)),
            pl.BlockSpec((C, H), lambda i: (0, 0)),
            pl.BlockSpec((1, H), lambda i: (0, 0)),
            pl.BlockSpec((H, C), lambda i: (0, 0)),
        ],
        out_specs=(
            pl.BlockSpec((tm, C), lambda i: (i, 0)),
            pl.BlockSpec((1, 2, C), lambda i: (i, 0, 0)),
        ),
        compiler_params=pltpu.CompilerParams(dimension_semantics=("parallel",)),
    )(x2d, w1_t, b1_2d, w2_t)

    # Tiny O(C) cross-tile finalize in plain JAX (also merges per-core partials on v7x).
    total = jnp.sum(stats, axis=0)            # [2, C]
    mean = total[0] / M
    # One-pass variance E[y^2] - mean^2 in f32 (cancellation negligible at these
    # activation magnitudes; see review caveat).
    var = total[1] / M - mean * mean
    inv = jax.lax.rsqrt(var + BN_EPS)
    scale = (gamma * inv).reshape(1, C)
    shift = (beta - mean * gamma * inv).reshape(1, C)

    # Pass 2: apply BatchNorm affine transform, normalizing in place over the
    # pre-BN buffer (input_output_aliases avoids an extra HBM allocation).
    out2d = pl.pallas_call(
        _bn_apply_kernel,
        out_shape=jax.ShapeDtypeStruct((M, C), jnp.float32),
        grid=(G,),
        in_specs=[
            pl.BlockSpec((tm, C), lambda i: (i, 0)),
            pl.BlockSpec((1, C), lambda i: (0, 0)),
            pl.BlockSpec((1, C), lambda i: (0, 0)),
        ],
        out_specs=pl.BlockSpec((tm, C), lambda i: (i, 0)),
        input_output_aliases={0: 0},
        compiler_params=pltpu.CompilerParams(dimension_semantics=("parallel",)),
    )(y2d, scale, shift)

    return out2d.reshape(B, N, C)


def mlp_forward_ref(f, w1_t, b1, w2_t, gamma, beta):
    """Pure-JAX reference (exact erf GELU, training-mode BatchNorm)."""
    B, N, C = f.shape
    x = f.reshape(B * N, C)
    h = x @ w1_t + b1
    h = 0.5 * h * (1.0 + jax.scipy.special.erf(h * _INV_SQRT2))
    y = h @ w2_t
    mean = y.mean(axis=0)
    var = y.var(axis=0)  # biased variance, as BatchNorm uses in training
    out = (y - mean) * jax.lax.rsqrt(var + BN_EPS) * gamma + beta
    return out.reshape(B, N, C)


if __name__ == "__main__":
    B, N = 2, 256
    C_IN, HIDDEN = 128, 256  # lane-dense channel sizes (multiples of 128)

    key = jax.random.PRNGKey(0)
    kf, k1, kb, k2, kg, kbt = jax.random.split(key, 6)

    f = jax.random.normal(kf, (B, N, C_IN), dtype=jnp.float32)

    # nn.Linear(C_IN, HIDDEN): weight [H, C_in], bias [H]; kernel consumes W1^T.
    bound1 = 1.0 / math.sqrt(C_IN)
    w1_t = jax.random.uniform(k1, (C_IN, HIDDEN), jnp.float32, -bound1, bound1)
    b1 = jax.random.uniform(kb, (HIDDEN,), jnp.float32, -bound1, bound1)

    # nn.Linear(HIDDEN, C_IN, bias=False): module default init_weight=0.0 would zero
    # the output (residual init); use random weights for a non-degenerate test.
    bound2 = 1.0 / math.sqrt(HIDDEN)
    w2_t = jax.random.uniform(k2, (HIDDEN, C_IN), jnp.float32, -bound2, bound2)

    # BatchNorm affine params (defaults are ones/zeros; non-trivial values exercise
    # the folded scale/shift path, as after training).
    gamma = jax.random.uniform(kg, (C_IN,), jnp.float32, 0.5, 1.5)
    beta = 0.1 * jax.random.normal(kbt, (C_IN,), dtype=jnp.float32)

    out = mlp_forward(f, w1_t, b1, w2_t, gamma, beta)
    out = jax.block_until_ready(out)

    ref = mlp_forward_ref(f, w1_t, b1, w2_t, gamma, beta)
    assert out.shape == (B, N, C_IN)
    assert jnp.allclose(out, ref, rtol=2e-4, atol=2e-4), "mismatch vs reference"

    print("KERNEL_OK")
</pallas_src>

<mosaic_0001>
module attributes {stable_mosaic.version = 11 : i64} {
  func.func @_mlp_stage1_kernel(%arg0: i32, %arg1: memref<256x128xf32, #tpu.memory_space<vmem>>, %arg2: memref<128x256xf32, #tpu.memory_space<vmem>>, %arg3: memref<1x256xf32, #tpu.memory_space<vmem>>, %arg4: memref<256x128xf32, #tpu.memory_space<vmem>>, %arg5: memref<256x128xf32, #tpu.memory_space<vmem>>, %arg6: memref<1x2x128xf32, #tpu.memory_space<vmem>>) attributes {dimension_semantics = [#tpu.dimension_semantics<parallel>], iteration_bounds = array<i64: 2>, scalar_prefetch = 0 : i64, scratch_operands = 0 : i64, tpu.core_type = #tpu.core_type<tc>, window_params = [{transform_indices = @transform_0, window_bounds = array<i64: 256, 128>}, {pipeline_mode = #tpu.pipeline_mode<synchronous>, transform_indices = @transform_1, window_bounds = array<i64: 128, 256>}, {pipeline_mode = #tpu.pipeline_mode<synchronous>, transform_indices = @transform_2, window_bounds = array<i64: 1, 256>}, {pipeline_mode = #tpu.pipeline_mode<synchronous>, transform_indices = @transform_3, window_bounds = array<i64: 256, 128>}, {transform_indices = @transform_4, window_bounds = array<i64: 256, 128>}, {transform_indices = @transform_5, window_bounds = array<i64: 1, 2, 128>}]} {
    %c0 = arith.constant 0 : index
    %c0_0 = arith.constant 0 : index
    %0 = vector.load %arg1[%c0, %c0_0] : memref<256x128xf32, #tpu.memory_space<vmem>>, vector<256x128xf32>
    %c0_1 = arith.constant 0 : index
    %c0_2 = arith.constant 0 : index
    %1 = vector.load %arg2[%c0_1, %c0_2] : memref<128x256xf32, #tpu.memory_space<vmem>>, vector<128x256xf32>
    %cst = arith.constant dense<0.000000e+00> : vector<256x256xf32>
    %2 = tpu.matmul %0, %1, %cst {dimension_numbers = #tpu.dot_dimension_numbers<[1], [0], [0], [1], [0, 0, 1, 1], [], []>} : vector<256x128xf32>, vector<128x256xf32>, vector<256x256xf32> -> vector<256x256xf32>
    %c0_3 = arith.constant 0 : index
    %c0_4 = arith.constant 0 : index
    %3 = vector.load %arg3[%c0_3, %c0_4] : memref<1x256xf32, #tpu.memory_space<vmem>>, vector<1x256xf32>
    %4 = vector.broadcast %3 : vector<1x256xf32> to vector<256x256xf32>
    %5 = arith.addf %2, %4 : vector<256x256xf32>
    %cst_5 = arith.constant 5.000000e-01 : f32
    %6 = vector.broadcast %cst_5 : f32 to vector<256x256xf32>
    %7 = arith.mulf %6, %5 : vector<256x256xf32>
    %cst_6 = arith.constant 0.707106769 : f32
    %8 = vector.broadcast %cst_6 : f32 to vector<256x256xf32>
    %9 = arith.mulf %5, %8 : vector<256x256xf32>
    %10 = math.absf %9 : vector<256x256xf32>
    %cst_7 = arith.constant 0.327591091 : f32
    %11 = vector.broadcast %cst_7 : f32 to vector<256x256xf32>
    %12 = arith.mulf %11, %10 : vector<256x256xf32>
    %cst_8 = arith.constant 1.000000e+00 : f32
    %13 = vector.broadcast %cst_8 : f32 to vector<256x256xf32>
    %14 = arith.addf %13, %12 : vector<256x256xf32>
    %cst_9 = arith.constant 1.000000e+00 : f32
    %15 = vector.broadcast %cst_9 : f32 to vector<256x256xf32>
    %16 = arith.divf %15, %14 : vector<256x256xf32>
    %cst_10 = arith.constant 1.06140542 : f32
    %17 = vector.broadcast %cst_10 : f32 to vector<256x256xf32>
    %18 = arith.mulf %16, %17 : vector<256x256xf32>
    %cst_11 = arith.constant -1.45315206 : f32
    %19 = vector.broadcast %cst_11 : f32 to vector<256x256xf32>
    %20 = arith.addf %19, %18 : vector<256x256xf32>
    %21 = arith.mulf %16, %20 : vector<256x256xf32>
    %cst_12 = arith.constant 1.42141378 : f32
    %22 = vector.broadcast %cst_12 : f32 to vector<256x256xf32>
    %23 = arith.addf %22, %21 : vector<256x256xf32>
    %24 = arith.mulf %16, %23 : vector<256x256xf32>
    %cst_13 = arith.constant -0.284496725 : f32
    %25 = vector.broadcast %cst_13 : f32 to vector<256x256xf32>
    %26 = arith.addf %25, %24 : vector<256x256xf32>
    %27 = arith.mulf %16, %26 : vector<256x256xf32>
    %cst_14 = arith.constant 0.254829586 : f32
    %28 = vector.broadcast %cst_14 : f32 to vector<256x256xf32>
    %29 = arith.addf %28, %27 : vector<256x256xf32>
    %30 = arith.mulf %16, %29 : vector<256x256xf32>
    %cst_15 = arith.constant 0.000000e+00 : f32
    %31 = vector.broadcast %cst_15 : f32 to vector<256x256xf32>
    %32 = arith.subf %31, %10 : vector<256x256xf32>
    %33 = arith.mulf %32, %10 : vector<256x256xf32>
    %34 = math.exp %33 : vector<256x256xf32>
    %35 = arith.mulf %30, %34 : vector<256x256xf32>
    %cst_16 = arith.constant 1.000000e+00 : f32
    %36 = vector.broadcast %cst_16 : f32 to vector<256x256xf32>
    %37 = arith.subf %36, %35 : vector<256x256xf32>
    %cst_17 = arith.constant 0.000000e+00 : f32
    %38 = vector.broadcast %cst_17 : f32 to vector<256x256xf32>
    %39 = arith.cmpf olt, %9, %38 : vector<256x256xf32>
    %cst_18 = arith.constant 0.000000e+00 : f32
    %40 = vector.broadcast %cst_18 : f32 to vector<256x256xf32>
    %41 = arith.subf %40, %37 : vector<256x256xf32>
    %42 = arith.select %39, %41, %37 : vector<256x256xi1>, vector<256x256xf32>
    %cst_19 = arith.constant 1.000000e+00 : f32
    %43 = vector.broadcast %cst_19 : f32 to vector<256x256xf32>
    %44 = arith.addf %43, %42 : vector<256x256xf32>
    %45 = arith.mulf %7, %44 : vector<256x256xf32>
    %c0_20 = arith.constant 0 : index
    %c0_21 = arith.constant 0 : index
    %46 = vector.load %arg4[%c0_20, %c0_21] : memref<256x128xf32, #tpu.memory_space<vmem>>, vector<256x128xf32>
    %cst_22 = arith.constant dense<0.000000e+00> : vector<256x128xf32>
    %47 = tpu.matmul %45, %46, %cst_22 {dimension_numbers = #tpu.dot_dimension_numbers<[1], [0], [0], [1], [0, 0, 1, 1], [], []>} : vector<256x256xf32>, vector<256x128xf32>, vector<256x128xf32> -> vector<256x128xf32>
    %c0_23 = arith.constant 0 : index
    %c0_24 = arith.constant 0 : index
    %48 = vector.load %arg5[%c0_23, %c0_24] : memref<256x128xf32, #tpu.memory_space<vmem>>, vector<256x128xf32>
    tpu.vector_store %arg5[%c0_23, %c0_24], %47 {strides = array<i32>} : memref<256x128xf32, #tpu.memory_space<vmem>>, vector<256x128xf32>,
    %cst_25 = arith.constant dense<0.000000e+00> : vector<128xf32>
    %49 = vector.multi_reduction <add>, %47, %cst_25 [0] : vector<256x128xf32> to vector<128xf32>
    %50 = vector.shape_cast %49 : vector<128xf32> to vector<1x128xf32>
    %c0_26 = arith.constant 0 : index
    %c0_27 = arith.constant 0 : index
    %c0_28 = arith.constant 0 : index
    %51 = vector.load %arg6[%c0_26, %c0_27, %c0_28] : memref<1x2x128xf32, #tpu.memory_space<vmem>>, vector<1x1x128xf32>
    %52 = vector.shape_cast %51 : vector<1x1x128xf32> to vector<1x128xf32>
    %53 = vector.shape_cast %50 : vector<1x128xf32> to vector<1x1x128xf32>
    tpu.vector_store %arg6[%c0_26, %c0_27, %c0_28], %53 {strides = array<i32>} : memref<1x2x128xf32, #tpu.memory_space<vmem>>, vector<1x1x128xf32>,
    %54 = arith.mulf %47, %47 : vector<256x128xf32>
    %cst_29 = arith.constant dense<0.000000e+00> : vector<128xf32>
    %55 = vector.multi_reduction <add>, %54, %cst_29 [0] : vector<256x128xf32> to vector<128xf32>
    %56 = vector.shape_cast %55 : vector<128xf32> to vector<1x128xf32>
    %c0_30 = arith.constant 0 : index
    %c1 = arith.constant 1 : index
    %c0_31 = arith.constant 0 : index
    %57 = vector.load %arg6[%c0_30, %c1, %c0_31] : memref<1x2x128xf32, #tpu.memory_space<vmem>>, vector<1x1x128xf32>
    %58 = vector.shape_cast %57 : vector<1x1x128xf32> to vector<1x128xf32>
    %59 = vector.shape_cast %56 : vector<1x128xf32> to vector<1x1x128xf32>
    tpu.vector_store %arg6[%c0_30, %c1, %c0_31], %59 {strides = array<i32>} : memref<1x2x128xf32, #tpu.memory_space<vmem>>, vector<1x1x128xf32>,
    return
  }
  func.func @transform_0(%arg0: i32) -> (i32, i32) {
    %c0_i32 = arith.constant 0 : i32
    %c0_i32_0 = arith.constant 0 : i32
    return %arg0, %c0_i32 : i32, i32
  }
  func.func @transform_1(%arg0: i32) -> (i32, i32) {
    %c0_i32 = arith.constant 0 : i32
    %c0_i32_0 = arith.constant 0 : i32
    %c0_i32_1 = arith.constant 0 : i32
    return %c0_i32, %c0_i32_0 : i32, i32
  }
  func.func @transform_2(%arg0: i32) -> (i32, i32) {
    %c0_i32 = arith.constant 0 : i32
    %c0_i32_0 = arith.constant 0 : i32
    %c0_i32_1 = arith.constant 0 : i32
    return %c0_i32, %c0_i32_0 : i32, i32
  }
  func.func @transform_3(%arg0: i32) -> (i32, i32) {
    %c0_i32 = arith.constant 0 : i32
    %c0_i32_0 = arith.constant 0 : i32
    %c0_i32_1 = arith.constant 0 : i32
    return %c0_i32, %c0_i32_0 : i32, i32
  }
  func.func @transform_4(%arg0: i32) -> (i32, i32) {
    %c0_i32 = arith.constant 0 : i32
    %c0_i32_0 = arith.constant 0 : i32
    return %arg0, %c0_i32 : i32, i32
  }
  func.func @transform_5(%arg0: i32) -> (i32, i32, i32) {
    %c0_i32 = arith.constant 0 : i32
    %c0_i32_0 = arith.constant 0 : i32
    %c0_i32_1 = arith.constant 0 : i32
    return %arg0, %c0_i32, %c0_i32_0 : i32, i32, i32
  }
}

module attributes {stable_mosaic.version = 11 : i64} {
  func.func @_bn_apply_kernel(%arg0: i32, %arg1: memref<256x128xf32, #tpu.memory_space<vmem>>, %arg2: memref<1x128xf32, #tpu.memory_space<vmem>>, %arg3: memref<1x128xf32, #tpu.memory_space<vmem>>, %arg4: memref<256x128xf32, #tpu.memory_space<vmem>>) attributes {dimension_semantics = [#tpu.dimension_semantics<parallel>], iteration_bounds = array<i64: 2>, scalar_prefetch = 0 : i64, scratch_operands = 0 : i64, tpu.core_type = #tpu.core_type<tc>, window_params = [{transform_indices = @transform_0, window_bounds = array<i64: 256, 128>}, {pipeline_mode = #tpu.pipeline_mode<synchronous>, transform_indices = @transform_1, window_bounds = array<i64: 1, 128>}, {pipeline_mode = #tpu.pipeline_mode<synchronous>, transform_indices = @transform_2, window_bounds = array<i64: 1, 128>}, {transform_indices = @transform_3, window_bounds = array<i64: 256, 128>}]} {
    %c0 = arith.constant 0 : index
    %c0_0 = arith.constant 0 : index
    %0 = vector.load %arg1[%c0, %c0_0] : memref<256x128xf32, #tpu.memory_space<vmem>>, vector<256x128xf32>
    %c0_1 = arith.constant 0 : index
    %c0_2 = arith.constant 0 : index
    %1 = vector.load %arg2[%c0_1, %c0_2] : memref<1x128xf32, #tpu.memory_space<vmem>>, vector<1x128xf32>
    %2 = vector.broadcast %1 : vector<1x128xf32> to vector<256x128xf32>
    %3 = arith.mulf %0, %2 : vector<256x128xf32>
    %c0_3 = arith.constant 0 : index
    %c0_4 = arith.constant 0 : index
    %4 = vector.load %arg3[%c0_3, %c0_4] : memref<1x128xf32, #tpu.memory_space<vmem>>, vector<1x128xf32>
    %5 = vector.broadcast %4 : vector<1x128xf32> to vector<256x128xf32>
    %6 = arith.addf %3, %5 : vector<256x128xf32>
    %c0_5 = arith.constant 0 : index
    %c0_6 = arith.constant 0 : index
    %7 = vector.load %arg4[%c0_5, %c0_6] : memref<256x128xf32, #tpu.memory_space<vmem>>, vector<256x128xf32>
    tpu.vector_store %arg4[%c0_5, %c0_6], %6 {strides = array<i32>} : memref<256x128xf32, #tpu.memory_space<vmem>>, vector<256x128xf32>,
    return
  }
  func.func @transform_0(%arg0: i32) -> (i32, i32) {
    %c0_i32 = arith.constant 0 : i32
    %c0_i32_0 = arith.constant 0 : i32
    return %arg0, %c0_i32 : i32, i32
  }
  func.func @transform_1(%arg0: i32) -> (i32, i32) {
    %c0_i32 = arith.constant 0 : i32
    %c0_i32_0 = arith.constant 0 : i32
    %c0_i32_1 = arith.constant 0 : i32
    return %c0_i32, %c0_i32_0 : i32, i32
  }
  func.func @transform_2(%arg0: i32) -> (i32, i32) {
    %c0_i32 = arith.constant 0 : i32
    %c0_i32_0 = arith.constant 0 : i32
    %c0_i32_1 = arith.constant 0 : i32
    return %c0_i32, %c0_i32_0 : i32, i32
  }
  func.func @transform_3(%arg0: i32) -> (i32, i32) {
    %c0_i32 = arith.constant 0 : i32
    %c0_i32_0 = arith.constant 0 : i32
    return %arg0, %c0_i32 : i32, i32
  }
}

</mosaic_0001>

<llo_original>
// kernel: mlp_forward.3
$region0: #{mlp_forward.3}
  #allocation0 [shape = 'u32[]', space=smem, size = 0x4, offset = 0x4, fixed_abs, tag = 'smem constant byte address 0x4 - core index']
  #allocation1 [shape = 'u32[144,128]{1,0:T(1,128)}', space=vmem, size = 0x12000, scoped, tag = 'internal scratch']
  %s0 = inlined_call_operand.vmem [shape: f32[512,128], index: 0, kind: input, shape index: {}, may-alias: {0,3}]
  %s1 = inlined_call_operand.vmem [shape: f32[1,128], index: 1, kind: input, shape index: {}]
  %s2 = inlined_call_operand.vmem [shape: f32[1,128], index: 2, kind: input, shape index: {}]
  %s3 = inlined_call_operand.vmem [shape: f32[512,128], index: 3, kind: output, shape index: {}, may-alias: {0,3}]
  %s4 = sld [smem:[#allocation0]]
  $region45: #{mlp_forward.3} parent=0
    _
  %s6 = ssub.s32 1, %s4
  %s7 = scalar_select 0, %s6, %s4
  loop: start=0, step=1, limit=4
  $region2: #{mlp_forward.3} parent=0 // loop_pre_header
    _
  $region3: #{mlp_forward.3} parent=0 // loop_header
    %s9 = sphi 0, %s13
    %p10 = scmp.ge.s32.totalorder %s9, 4
    %s19 = sphi 0, %s21
    %s22 = sphi 0, %s19
    %s23 = sphi 0, %s22
    %s39 = sphi 0, %s23
    %s43 = sphi 0, %s43
    %s45 = sphi 0, %s43
    %s46 = sphi 0, %s45
    %s60 = sphi 0, %s46
    %s64 = sphi 0, %s64
    %s66 = sphi 0, %s64
    %s67 = sphi 0, %s66
    %s81 = sphi 0, %s67
    %s87 = sphi 0, %s89
    %s90 = sphi 0, %s87
    %s91 = sphi 0, %s90
    %s107 = sphi 0, %s91
  $region4: #{mlp_forward.3} parent=0 // loop_header_branch
    %12 = sbr.rel (%p10) target = $region8
  $region5: #{mlp_forward.3} parent=0 // loop_body
    %s14 = ssub.s32 %s9, 1
    %s15 = ssub.s32 %s9, 2
    %s16 = sadd.s32 %s9, 1
    %s17 = ssub.s32 %s9, %s16
    %p18 = scmp.eq.s32.totalorder %s17, 0
    %s20 = sadd.s32 %s19, 1
    %s21 = scalar_select %p18, %s19, %s20
    %p24 = pneg %p18
    %p25 = scmp.eq.s32.totalorder %s9, 1
    %p26 = por %p24, %p25
    %p27 = scmp.ne.s32.totalorder %s19, %s22
    %p28 = scmp.eq.s32.totalorder %s9, 0
    %p29 = por %p27, %p28
    %p30 = scmp.ne.s32.totalorder %s19, %s22
    %p31 = scmp.eq.s32.totalorder %s14, 1
    %p32 = por %p30, %p31
    %p33 = scmp.ne.s32.totalorder %s22, %s23
    %p34 = scmp.eq.s32.totalorder %s14, 0
    %p35 = por %p33, %p34
    %p36 = scmp.ne.s32.totalorder %s22, %s23
    %p37 = scmp.eq.s32.totalorder %s15, 1
    %p38 = por %p36, %p37
    %p40 = scmp.ne.s32.totalorder %s23, %s39
    %p41 = scmp.eq.s32.totalorder %s15, 0
    %p42 = por %p40, %p41
    %s44 = sadd.s32 %s43, 1
    %p47 = scmp.eq.s32.totalorder %s9, 1
    %p48 = scmp.ne.s32.totalorder %s43, %s45
    %p49 = scmp.eq.s32.totalorder %s9, 0
    %p50 = por %p48, %p49
    %p51 = scmp.ne.s32.totalorder %s43, %s45
    %p52 = scmp.eq.s32.totalorder %s14, 1
    %p53 = por %p51, %p52
    %p54 = scmp.ne.s32.totalorder %s45, %s46
    %p55 = scmp.eq.s32.totalorder %s14, 0
    %p56 = por %p54, %p55
    %p57 = scmp.ne.s32.totalorder %s45, %s46
    %p58 = scmp.eq.s32.totalorder %s15, 1
    %p59 = por %p57, %p58
    %p61 = scmp.ne.s32.totalorder %s46, %s60
    %p62 = scmp.eq.s32.totalorder %s15, 0
    %p63 = por %p61, %p62
    %s65 = sadd.s32 %s64, 1
    %p68 = scmp.eq.s32.totalorder %s9, 1
    %p69 = scmp.ne.s32.totalorder %s64, %s66
    %p70 = scmp.eq.s32.totalorder %s9, 0
    %p71 = por %p69, %p70
    %p72 = scmp.ne.s32.totalorder %s64, %s66
    %p73 = scmp.eq.s32.totalorder %s14, 1
    %p74 = por %p72, %p73
    %p75 = scmp.ne.s32.totalorder %s66, %s67
    %p76 = scmp.eq.s32.totalorder %s14, 0
    %p77 = por %p75, %p76
    %p78 = scmp.ne.s32.totalorder %s66, %s67
    %p79 = scmp.eq.s32.totalorder %s15, 1
    %p80 = por %p78, %p79
    %p82 = scmp.ne.s32.totalorder %s67, %s81
    %p83 = scmp.eq.s32.totalorder %s15, 0
    %p84 = por %p82, %p83
    %s85 = ssub.s32 %s9, %s16
    %p86 = scmp.eq.s32.totalorder %s85, 0
    %s88 = sadd.s32 %s87, 1
    %s89 = scalar_select %p86, %s87, %s88
    %p92 = pneg %p86
    %p93 = scmp.eq.s32.totalorder %s9, 1
    %p94 = por %p92, %p93
    %p95 = scmp.ne.s32.totalorder %s87, %s90
    %p96 = scmp.eq.s32.totalorder %s9, 0
    %p97 = por %p95, %p96
    %p98 = scmp.ne.s32.totalorder %s87, %s90
    %p99 = scmp.eq.s32.totalorder %s14, 1
    %p100 = por %p98, %p99
    %p101 = scmp.ne.s32.totalorder %s90, %s91
    %p102 = scmp.eq.s32.totalorder %s14, 0
    %p103 = por %p101, %p102
    %p104 = scmp.ne.s32.totalorder %s90, %s91
    %p105 = scmp.eq.s32.totalorder %s15, 1
    %p106 = por %p104, %p105
    %p108 = scmp.ne.s32.totalorder %s91, %s107
    %p109 = scmp.eq.s32.totalorder %s15, 0
    %p110 = por %p108, %p109
    %p111 = scmp.le.s32.totalorder 1, %s9
    %p112 = scmp.lt.s32.totalorder %s9, 3
    %p113 = pnand %p111, %p112
    %p114 = pneg %p113
    // Predicated region
    $region9: #{mlp_forward.3} parent=5 // pred_check
      _
    $region10: #{mlp_forward.3} parent=5 // pred_check_branch
      %116 = sbr.rel (%p113) target = $region12
    $region11: #{mlp_forward.3} parent=5 // pred_region
      %s117 = ssub.s32 %s9, 1
      // Predicated region
      $region13: #{mlp_forward.3} parent=11 // pred_check
        %p118 = pneg %p56
      $region14: #{mlp_forward.3} parent=11 // pred_check_branch
        %120 = sbr.rel (%p118) target = $region16
      $region15: #{mlp_forward.3} parent=11 // pred_region
        _
      $region16: #{mlp_forward.3} parent=11 // pred_fallthru
        _
      // Predicated region
      $region17: #{mlp_forward.3} parent=11 // pred_check
        %p121 = pneg %p77
      $region18: #{mlp_forward.3} parent=11 // pred_check_branch
        %123 = sbr.rel (%p121) target = $region20
      $region19: #{mlp_forward.3} parent=11 // pred_region
        _
      $region20: #{mlp_forward.3} parent=11 // pred_fallthru
        _
    $region12: #{mlp_forward.3} parent=5 // pred_fallthru
      _
    %p124 = scmp.lt.s32.totalorder %s9, 2
    // Predicated region
    $region21: #{mlp_forward.3} parent=5 // pred_check
      %p125 = pneg %p124
    $region22: #{mlp_forward.3} parent=5 // pred_check_branch
      %127 = sbr.rel (%p125) target = $region24
    $region23: #{mlp_forward.3} parent=5 // pred_region
      // Predicated region
      $region25: #{mlp_forward.3} parent=23 // pred_check
        %p128 = pneg %p29
      $region26: #{mlp_forward.3} parent=23 // pred_check_branch
        %130 = sbr.rel (%p128) target = $region28
      $region27: #{mlp_forward.3} parent=23 // pred_region
        %s131 = smul.u32 32, %s9
        %p132 = scmp.lt.s32.totalorder %s131, 63
        %s133 = scalar_select %p132, %s131, 63
        %s134 = smul.addr %s133, 8
        %s135 = scalar_lea.vmem %s0, %s134
        %s136 = smul.u32 32, %s9
      $region28: #{mlp_forward.3} parent=23 // pred_fallthru
        _
    $region24: #{mlp_forward.3} parent=5 // pred_fallthru
      _
    %p137 = scmp.le.s32.totalorder 1, %s9
    %p138 = scmp.lt.s32.totalorder %s9, 3
    %p139 = pnand %p137, %p138
    %p140 = pneg %p139
    // Predicated region
    $region29: #{mlp_forward.3} parent=5 // pred_check
      _
    $region30: #{mlp_forward.3} parent=5 // pred_check_branch
      %142 = sbr.rel (%p139) target = $region32
    $region31: #{mlp_forward.3} parent=5 // pred_region
      %s143 = ssub.s32 %s9, 1
      %s144 = smul.u32 32, %s14
      %p145 = scmp.lt.s32.totalorder %s144, 63
      %s146 = scalar_select %p145, %s144, 63
      %s147 = smul.addr %s146, 8
      %s148 = scalar_lea.vmem %s0, %s147
      %p149 = pneg %p35
      %p150 = pneg %p32
      %p151 = pneg %p56
      %p152 = pneg %p53
      %p153 = pneg %p77
      %p154 = pneg %p74
      %p155 = pneg %p103
      %p156 = pneg %p100
      %s157 = smul.u32 32, %s14
      %p158 = scmp.lt.s32.totalorder %s157, 63
      %s159 = scalar_select %p158, %s157, 63
      %s160 = smul.addr %s159, 8
      %s161 = scalar_lea.vmem %s3, %s160
      %s162 = smul.u32 32, %s14
      %p163 = scmp.lt.s32.totalorder %s162, 63
      %s164 = scalar_select %p163, %s162, 63
      %s165 = smul.addr %s164, 8
      %s166 = scalar_lea.vmem %s0, %s165
      %s167 = smul.u32 32, %s14
      %s168 = smul.u32 32, %s14
      %p169 = scmp.lt.s32.totalorder %s168, 63
      %s170 = scalar_select %p169, %s168, 63
      %s171 = smul.addr %s170, 8
      %s172 = scalar_lea.vmem %s3, %s171
      %s173 = smul.u32 32, %s14
      %v174 = vld [vmem:[%s166] sm:$0xff]
      %v175 = vld [vmem:[%s166 + $0x8] sm:$0xff]
      %v176 = vld [vmem:[%s166 + $0x10] sm:$0xff]
      %v177 = vld [vmem:[%s166 + $0x18] sm:$0xff]
      %v178 = vld [vmem:[%s166 + $0x20] sm:$0xff]
      %v179 = vld [vmem:[%s166 + $0x28] sm:$0xff]
      %v180 = vld [vmem:[%s166 + $0x30] sm:$0xff]
      %v181 = vld [vmem:[%s166 + $0x38] sm:$0xff]
      %v182 = vld [vmem:[%s166 + $0x40] sm:$0xff]
      %v183 = vld [vmem:[%s166 + $0x48] sm:$0xff]
      %v184 = vld [vmem:[%s166 + $0x50] sm:$0xff]
      %v185 = vld [vmem:[%s166 + $0x58] sm:$0xff]
      %v186 = vld [vmem:[%s166 + $0x60] sm:$0xff]
      %v187 = vld [vmem:[%s166 + $0x68] sm:$0xff]
      %v188 = vld [vmem:[%s166 + $0x70] sm:$0xff]
      %v189 = vld [vmem:[%s166 + $0x78] sm:$0xff]
      %v190 = vld [vmem:[%s166 + $0x80] sm:$0xff]
      %v191 = vld [vmem:[%s166 + $0x88] sm:$0xff]
      %v192 = vld [vmem:[%s166 + $0x90] sm:$0xff]
      %v193 = vld [vmem:[%s166 + $0x98] sm:$0xff]
      %v194 = vld [vmem:[%s166 + $0xa0] sm:$0xff]
      %v195 = vld [vmem:[%s166 + $0xa8] sm:$0xff]
      %v196 = vld [vmem:[%s166 + $0xb0] sm:$0xff]
      %v197 = vld [vmem:[%s166 + $0xb8] sm:$0xff]
      %v198 = vld [vmem:[%s166 + $0xc0] sm:$0xff]
      %v199 = vld [vmem:[%s166 + $0xc8] sm:$0xff]
      %v200 = vld [vmem:[%s166 + $0xd0] sm:$0xff]
      %v201 = vld [vmem:[%s166 + $0xd8] sm:$0xff]
      %v202 = vld [vmem:[%s166 + $0xe0] sm:$0xff]
      %v203 = vld [vmem:[%s166 + $0xe8] sm:$0xff]
      %v204 = vld [vmem:[%s166 + $0xf0] sm:$0xff]
      %v205 = vld [vmem:[%s166 + $0xf8] sm:$0xff]
      %v206 = vld [vmem:[%s1] sm:$0x1]
      %v208 = vlaneseq
      %v209 = vshrl.u32 %v208, 7
      %v210 = vsub.s32 0, %v209
      %v211 = vrot.slane %v206, %v210
      %v213 = vmul.f32 %v174, %v211
      %v214 = vmul.f32 %v175, %v211
      %v215 = vmul.f32 %v176, %v211
      %v216 = vmul.f32 %v177, %v211
      %v217 = vmul.f32 %v178, %v211
      %v218 = vmul.f32 %v179, %v211
      %v219 = vmul.f32 %v180, %v211
      %v220 = vmul.f32 %v181, %v211
      %v221 = vmul.f32 %v182, %v211
      %v222 = vmul.f32 %v183, %v211
      %v223 = vmul.f32 %v184, %v211
      %v224 = vmul.f32 %v185, %v211
      %v225 = vmul.f32 %v186, %v211
      %v226 = vmul.f32 %v187, %v211
      %v227 = vmul.f32 %v188, %v211
      %v228 = vmul.f32 %v189, %v211
      %v229 = vmul.f32 %v190, %v211
      %v230 = vmul.f32 %v191, %v211
      %v231 = vmul.f32 %v192, %v211
      %v232 = vmul.f32 %v193, %v211
      %v233 = vmul.f32 %v194, %v211
      %v234 = vmul.f32 %v195, %v211
      %v235 = vmul.f32 %v196, %v211
      %v236 = vmul.f32 %v197, %v211
      %v237 = vmul.f32 %v198, %v211
      %v238 = vmul.f32 %v199, %v211
      %v239 = vmul.f32 %v200, %v211
      %v240 = vmul.f32 %v201, %v211
      %v241 = vmul.f32 %v202, %v211
      %v242 = vmul.f32 %v203, %v211
      %v243 = vmul.f32 %v204, %v211
      %v244 = vmul.f32 %v205, %v211
      %v245 = vld [vmem:[%s2] sm:$0x1]
      %v247 = vlaneseq
      %v248 = vshrl.u32 %v247, 7
      %v249 = vsub.s32 0, %v248
      %v250 = vrot.slane %v245, %v249
      %v252 = vadd.f32 %v213, %v250
      %v253 = vadd.f32 %v214, %v250
      %v254 = vadd.f32 %v215, %v250
      %v255 = vadd.f32 %v216, %v250
      %v256 = vadd.f32 %v217, %v250
      %v257 = vadd.f32 %v218, %v250
      %v258 = vadd.f32 %v219, %v250
      %v259 = vadd.f32 %v220, %v250
      %v260 = vadd.f32 %v221, %v250
      %v261 = vadd.f32 %v222, %v250
      %v262 = vadd.f32 %v223, %v250
      %v263 = vadd.f32 %v224, %v250
      %v264 = vadd.f32 %v225, %v250
      %v265 = vadd.f32 %v226, %v250
      %v266 = vadd.f32 %v227, %v250
      %v267 = vadd.f32 %v228, %v250
      %v268 = vadd.f32 %v229, %v250
      %v269 = vadd.f32 %v230, %v250
      %v270 = vadd.f32 %v231, %v250
      %v271 = vadd.f32 %v232, %v250
      %v272 = vadd.f32 %v233, %v250
      %v273 = vadd.f32 %v234, %v250
      %v274 = vadd.f32 %v235, %v250
      %v275 = vadd.f32 %v236, %v250
      %v276 = vadd.f32 %v237, %v250
      %v277 = vadd.f32 %v238, %v250
      %v278 = vadd.f32 %v239, %v250
      %v279 = vadd.f32 %v240, %v250
      %v280 = vadd.f32 %v241, %v250
      %v281 = vadd.f32 %v242, %v250
      %v282 = vadd.f32 %v243, %v250
      %v283 = vadd.f32 %v244, %v250
      %284 = vst [vmem:[%s172] sm:$0xff] %v252
      %285 = vst [vmem:[%s172 + $0x8] sm:$0xff] %v253
      %286 = vst [vmem:[%s172 + $0x10] sm:$0xff] %v254
      %287 = vst [vmem:[%s172 + $0x18] sm:$0xff] %v255
      %288 = vst [vmem:[%s172 + $0x20] sm:$0xff] %v256
      %289 = vst [vmem:[%s172 + $0x28] sm:$0xff] %v257
      %290 = vst [vmem:[%s172 + $0x30] sm:$0xff] %v258
      %291 = vst [vmem:[%s172 + $0x38] sm:$0xff] %v259
      %292 = vst [vmem:[%s172 + $0x40] sm:$0xff] %v260
      %293 = vst [vmem:[%s172 + $0x48] sm:$0xff] %v261
      %294 = vst [vmem:[%s172 + $0x50] sm:$0xff] %v262
      %295 = vst [vmem:[%s172 + $0x58] sm:$0xff] %v263
      %296 = vst [vmem:[%s172 + $0x60] sm:$0xff] %v264
      %297 = vst [vmem:[%s172 + $0x68] sm:$0xff] %v265
      %298 = vst [vmem:[%s172 + $0x70] sm:$0xff] %v266
      %299 = vst [vmem:[%s172 + $0x78] sm:$0xff] %v267
      %300 = vst [vmem:[%s172 + $0x80] sm:$0xff] %v268
      %301 = vst [vmem:[%s172 + $0x88] sm:$0xff] %v269
      %302 = vst [vmem:[%s172 + $0x90] sm:$0xff] %v270
      %303 = vst [vmem:[%s172 + $0x98] sm:$0xff] %v271
      %304 = vst [vmem:[%s172 + $0xa0] sm:$0xff] %v272
      %305 = vst [vmem:[%s172 + $0xa8] sm:$0xff] %v273
      %306 = vst [vmem:[%s172 + $0xb0] sm:$0xff] %v274
      %307 = vst [vmem:[%s172 + $0xb8] sm:$0xff] %v275
      %308 = vst [vmem:[%s172 + $0xc0] sm:$0xff] %v276
      %309 = vst [vmem:[%s172 + $0xc8] sm:$0xff] %v277
      %310 = vst [vmem:[%s172 + $0xd0] sm:$0xff] %v278
      %311 = vst [vmem:[%s172 + $0xd8] sm:$0xff] %v279
      %312 = vst [vmem:[%s172 + $0xe0] sm:$0xff] %v280
      %313 = vst [vmem:[%s172 + $0xe8] sm:$0xff] %v281
      %314 = vst [vmem:[%s172 + $0xf0] sm:$0xff] %v282
      %315 = vst [vmem:[%s172 + $0xf8] sm:$0xff] %v283
      %s316 = smul.u32 32, %s14
      %p317 = scmp.lt.s32.totalorder %s316, 63
      %s318 = scalar_select %p317, %s316, 63
      %s319 = smul.addr %s318, 8
      %s320 = scalar_lea.vmem %s3, %s319
      // Predicated region
      $region33: #{mlp_forward.3} parent=31 // pred_check
        %p321 = pneg %p100
      $region34: #{mlp_forward.3} parent=31 // pred_check_branch
        %323 = sbr.rel (%p321) target = $region36
      $region35: #{mlp_forward.3} parent=31 // pred_region
        %s324 = smul.u32 32, %s14
      $region36: #{mlp_forward.3} parent=31 // pred_fallthru
        _
    $region32: #{mlp_forward.3} parent=5 // pred_fallthru
      _
    %p325 = scmp.le.s32.totalorder 2, %s9
    // Predicated region
    $region37: #{mlp_forward.3} parent=5 // pred_check
      %p326 = pneg %p325
    $region38: #{mlp_forward.3} parent=5 // pred_check_branch
      %328 = sbr.rel (%p326) target = $region40
    $region39: #{mlp_forward.3} parent=5 // pred_region
      %s329 = ssub.s32 %s9, 2
      // Predicated region
      $region41: #{mlp_forward.3} parent=39 // pred_check
        %p330 = pneg %p106
      $region42: #{mlp_forward.3} parent=39 // pred_check_branch
        %332 = sbr.rel (%p330) target = $region44
      $region43: #{mlp_forward.3} parent=39 // pred_region
        %s333 = smul.u32 32, %s15
        %p334 = scmp.lt.s32.totalorder %s333, 63
        %s335 = scalar_select %p334, %s333, 63
        %s336 = smul.addr %s335, 8
        %s337 = scalar_lea.vmem %s3, %s336
      $region44: #{mlp_forward.3} parent=39 // pred_fallthru
        _
    $region40: #{mlp_forward.3} parent=5 // pred_fallthru
      _
  $region6: #{mlp_forward.3} parent=0 // loop_footer
    %s13 = sadd.s32 1, %s9
  $region7: #{mlp_forward.3} parent=0 // loop_footer_branch
    %8 = sbr.rel target = $region3
  $region8: #{mlp_forward.3} parent=0 // loop_exit
    _

// kernel: mlp_forward.2
$region0: #{mlp_forward.2}
  #allocation0 [shape = 'u32[]', space=smem, size = 0x4, offset = 0x4, fixed_abs, tag = 'smem constant byte address 0x4 - core index']
  #allocation1 [shape = 'u32[144,128]{1,0:T(1,128)}', space=vmem, size = 0x12000, scoped, tag = 'internal scratch']
  %s0 = inlined_call_operand.hbm [shape: f32[512,128], index: 0, kind: input, shape index: {}]
  %s1 = inlined_call_operand.hbm [shape: f32[128,256], index: 1, kind: input, shape index: {}]
  %s2 = inlined_call_operand.vmem [shape: f32[1,256], index: 2, kind: input, shape index: {}]
  %s3 = inlined_call_operand.hbm [shape: f32[256,128], index: 3, kind: input, shape index: {}]
  %s4 = inlined_call_operand.vmem [shape: f32[512,128], index: 4, kind: output, shape index: {0}]
  %s5 = inlined_call_operand.vmem [shape: f32[2,2,128], index: 5, kind: output, shape index: {1}]
  %6 = xla_tuple %s4, %s5
  %s7 = sld [smem:[#allocation0]]
  $region69: #{mlp_forward.2} parent=0
    _
  %s9 = ssub.s32 1, %s7
  %s10 = scalar_select 0, %s9, %s7
  $region1: #{mlp_forward.2} parent=0
    #allocation2 [shape = 'u8[262144]{0}', space=vmem, size = 0x40000, scoped, tag = 'input window, operand 0']
    #allocation3 [shape = 's32[2]{0}', space=sflag, size = 0x8, scoped, tag = 'scoped memory for mlp_forward.2']
    #allocation4 [shape = 'u8[131072]{0}', space=vmem, size = 0x20000, scoped, tag = 'input window, operand 1, single buffered']
    #allocation5 [shape = 's32[1]{0}', space=sflag, size = 0x4, scoped, tag = 'scoped memory for mlp_forward.2']
    #allocation6 [shape = 'u8[131072]{0}', space=vmem, size = 0x20000, scoped, tag = 'input window, operand 3, single buffered']
    %11 = vsyncpa [#allocation3], 0
    %s12 = scalar_lea.sflag [#allocation3], 1
    %13 = vsyncpa %s12, 0
    %14 = vsyncpa [#allocation5], 0
    loop: start=0, step=1, limit=4
    $region2: #{mlp_forward.2} parent=1 // loop_pre_header
      _
    $region3: #{mlp_forward.2} parent=1 // loop_header
      %s16 = sphi 0, %s20
      %p17 = scmp.ge.s32.totalorder %s16, 4
      %s26 = sphi 0, %s28
      %s29 = sphi 0, %s26
      %s30 = sphi 0, %s29
      %s46 = sphi 0, %s30
      %s50 = sphi 0, %s50
      %s52 = sphi 0, %s50
      %s53 = sphi 0, %s52
      %s67 = sphi 0, %s53
      %s71 = sphi 0, %s71
      %s73 = sphi 0, %s71
      %s74 = sphi 0, %s73
      %s88 = sphi 0, %s74
      %s92 = sphi 0, %s92
      %s94 = sphi 0, %s92
      %s95 = sphi 0, %s94
      %s109 = sphi 0, %s95
      %s115 = sphi 0, %s117
      %s118 = sphi 0, %s115
      %s119 = sphi 0, %s118
      %s135 = sphi 0, %s119
      %s141 = sphi 0, %s143
      %s144 = sphi 0, %s141
      %s145 = sphi 0, %s144
      %s161 = sphi 0, %s145
    $region4: #{mlp_forward.2} parent=1 // loop_header_branch
      %19 = sbr.rel (%p17) target = $region8
    $region5: #{mlp_forward.2} parent=1 // loop_body
      %s21 = ssub.s32 %s16, 1
      %s22 = ssub.s32 %s16, 2
      %s23 = sadd.s32 %s16, 1
      %s24 = ssub.s32 %s16, %s23
      %p25 = scmp.eq.s32.totalorder %s24, 0
      %s27 = sadd.s32 %s26, 1
      %s28 = scalar_select %p25, %s26, %s27
      %p31 = pneg %p25
      %p32 = scmp.eq.s32.totalorder %s16, 1
      %p33 = por %p31, %p32
      %p34 = scmp.ne.s32.totalorder %s26, %s29
      %p35 = scmp.eq.s32.totalorder %s16, 0
      %p36 = por %p34, %p35
      %p37 = scmp.ne.s32.totalorder %s26, %s29
      %p38 = scmp.eq.s32.totalorder %s21, 1
      %p39 = por %p37, %p38
      %p40 = scmp.ne.s32.totalorder %s29, %s30
      %p41 = scmp.eq.s32.totalorder %s21, 0
      %p42 = por %p40, %p41
      %p43 = scmp.ne.s32.totalorder %s29, %s30
      %p44 = scmp.eq.s32.totalorder %s22, 1
      %p45 = por %p43, %p44
      %p47 = scmp.ne.s32.totalorder %s30, %s46
      %p48 = scmp.eq.s32.totalorder %s22, 0
      %p49 = por %p47, %p48
      %s51 = sadd.s32 %s50, 1
      %p54 = scmp.eq.s32.totalorder %s16, 1
      %p55 = scmp.ne.s32.totalorder %s50, %s52
      %p56 = scmp.eq.s32.totalorder %s16, 0
      %p57 = por %p55, %p56
      %p58 = scmp.ne.s32.totalorder %s50, %s52
      %p59 = scmp.eq.s32.totalorder %s21, 1
      %p60 = por %p58, %p59
      %p61 = scmp.ne.s32.totalorder %s52, %s53
      %p62 = scmp.eq.s32.totalorder %s21, 0
      %p63 = por %p61, %p62
      %p64 = scmp.ne.s32.totalorder %s52, %s53
      %p65 = scmp.eq.s32.totalorder %s22, 1
      %p66 = por %p64, %p65
      %p68 = scmp.ne.s32.totalorder %s53, %s67
      %p69 = scmp.eq.s32.totalorder %s22, 0
      %p70 = por %p68, %p69
      %s72 = sadd.s32 %s71, 1
      %p75 = scmp.eq.s32.totalorder %s16, 1
      %p76 = scmp.ne.s32.totalorder %s71, %s73
      %p77 = scmp.eq.s32.totalorder %s16, 0
      %p78 = por %p76, %p77
      %p79 = scmp.ne.s32.totalorder %s71, %s73
      %p80 = scmp.eq.s32.totalorder %s21, 1
      %p81 = por %p79, %p80
      %p82 = scmp.ne.s32.totalorder %s73, %s74
      %p83 = scmp.eq.s32.totalorder %s21, 0
      %p84 = por %p82, %p83
      %p85 = scmp.ne.s32.totalorder %s73, %s74
      %p86 = scmp.eq.s32.totalorder %s22, 1
      %p87 = por %p85, %p86
      %p89 = scmp.ne.s32.totalorder %s74, %s88
      %p90 = scmp.eq.s32.totalorder %s22, 0
      %p91 = por %p89, %p90
      %s93 = sadd.s32 %s92, 1
      %p96 = scmp.eq.s32.totalorder %s16, 1
      %p97 = scmp.ne.s32.totalorder %s92, %s94
      %p98 = scmp.eq.s32.totalorder %s16, 0
      %p99 = por %p97, %p98
      %p100 = scmp.ne.s32.totalorder %s92, %s94
      %p101 = scmp.eq.s32.totalorder %s21, 1
      %p102 = por %p100, %p101
      %p103 = scmp.ne.s32.totalorder %s94, %s95
      %p104 = scmp.eq.s32.totalorder %s21, 0
      %p105 = por %p103, %p104
      %p106 = scmp.ne.s32.totalorder %s94, %s95
      %p107 = scmp.eq.s32.totalorder %s22, 1
      %p108 = por %p106, %p107
      %p110 = scmp.ne.s32.totalorder %s95, %s109
      %p111 = scmp.eq.s32.totalorder %s22, 0
      %p112 = por %p110, %p111
      %s113 = ssub.s32 %s16, %s23
      %p114 = scmp.eq.s32.totalorder %s113, 0
      %s116 = sadd.s32 %s115, 1
      %s117 = scalar_select %p114, %s115, %s116
      %p120 = pneg %p114
      %p121 = scmp.eq.s32.totalorder %s16, 1
      %p122 = por %p120, %p121
      %p123 = scmp.ne.s32.totalorder %s115, %s118
      %p124 = scmp.eq.s32.totalorder %s16, 0
      %p125 = por %p123, %p124
      %p126 = scmp.ne.s32.totalorder %s115, %s118
      %p127 = scmp.eq.s32.totalorder %s21, 1
      %p128 = por %p126, %p127
      %p129 = scmp.ne.s32.totalorder %s118, %s119
      %p130 = scmp.eq.s32.totalorder %s21, 0
      %p131 = por %p129, %p130
      %p132 = scmp.ne.s32.totalorder %s118, %s119
      %p133 = scmp.eq.s32.totalorder %s22, 1
      %p134 = por %p132, %p133
      %p136 = scmp.ne.s32.totalorder %s119, %s135
      %p137 = scmp.eq.s32.totalorder %s22, 0
      %p138 = por %p136, %p137
      %s139 = ssub.s32 %s16, %s23
      %p140 = scmp.eq.s32.totalorder %s139, 0
      %s142 = sadd.s32 %s141, 1
      %s143 = scalar_select %p140, %s141, %s142
      %p146 = pneg %p140
      %p147 = scmp.eq.s32.totalorder %s16, 1
      %p148 = por %p146, %p147
      %p149 = scmp.ne.s32.totalorder %s141, %s144
      %p150 = scmp.eq.s32.totalorder %s16, 0
      %p151 = por %p149, %p150
      %p152 = scmp.ne.s32.totalorder %s141, %s144
      %p153 = scmp.eq.s32.totalorder %s21, 1
      %p154 = por %p152, %p153
      %p155 = scmp.ne.s32.totalorder %s144, %s145
      %p156 = scmp.eq.s32.totalorder %s21, 0
      %p157 = por %p155, %p156
      %p158 = scmp.ne.s32.totalorder %s144, %s145
      %p159 = scmp.eq.s32.totalorder %s22, 1
      %p160 = por %p158, %p159
      %p162 = scmp.ne.s32.totalorder %s145, %s161
      %p163 = scmp.eq.s32.totalorder %s22, 0
      %p164 = por %p162, %p163
      %p165 = scmp.le.s32.totalorder 1, %s16
      %p166 = scmp.lt.s32.totalorder %s16, 3
      %p167 = pnand %p165, %p166
      %p168 = pneg %p167
      // Predicated region
      $region9: #{mlp_forward.2} parent=5 // pred_check
        _
      $region10: #{mlp_forward.2} parent=5 // pred_check_branch
        %170 = sbr.rel (%p167) target = $region12
      $region11: #{mlp_forward.2} parent=5 // pred_region
        %s171 = ssub.s32 %s16, 1
        // Predicated region
        $region13: #{mlp_forward.2} parent=11 // pred_check
          %p172 = pneg %p63
        $region14: #{mlp_forward.2} parent=11 // pred_check_branch
          %174 = sbr.rel (%p172) target = $region16
        $region15: #{mlp_forward.2} parent=11 // pred_region
          %s176 = ssub.s32 4096, 4096
          %177 = vsyncadd [#allocation5], %s176
          %s178 = sshll.u32 [#allocation4], 4
          %s179 = int_to_ptr.vmem [resolvable:$true] %s178
          %184 = dma.hbm_to_vmem [thread:$0]  %s1, 4096, %s179, [#allocation5], 256, 256, 16
        $region16: #{mlp_forward.2} parent=11 // pred_fallthru
          _
        // Predicated region
        $region17: #{mlp_forward.2} parent=11 // pred_check
          %p185 = pneg %p84
        $region18: #{mlp_forward.2} parent=11 // pred_check_branch
          %187 = sbr.rel (%p185) target = $region20
        $region19: #{mlp_forward.2} parent=11 // pred_region
          _
        $region20: #{mlp_forward.2} parent=11 // pred_fallthru
          _
        // Predicated region
        $region21: #{mlp_forward.2} parent=11 // pred_check
          %p188 = pneg %p105
        $region22: #{mlp_forward.2} parent=11 // pred_check_branch
          %190 = sbr.rel (%p188) target = $region24
        $region23: #{mlp_forward.2} parent=11 // pred_region
          %s192 = ssub.s32 4096, 4096
          %193 = vsyncadd [#allocation5], %s192
          %s194 = sshll.u32 [#allocation6], 4
          %s195 = int_to_ptr.vmem [resolvable:$true] %s194
          %200 = dma.hbm_to_vmem [thread:$0]  %s3, 4096, %s195, [#allocation5], 128, 128, 8
        $region24: #{mlp_forward.2} parent=11 // pred_fallthru
          _
      $region12: #{mlp_forward.2} parent=5 // pred_fallthru
        _
      %p201 = scmp.lt.s32.totalorder %s16, 2
      // Predicated region
      $region25: #{mlp_forward.2} parent=5 // pred_check
        %p202 = pneg %p201
      $region26: #{mlp_forward.2} parent=5 // pred_check_branch
        %204 = sbr.rel (%p202) target = $region28
      $region27: #{mlp_forward.2} parent=5 // pred_region
        // Predicated region
        $region29: #{mlp_forward.2} parent=27 // pred_check
          %p205 = pneg %p36
        $region30: #{mlp_forward.2} parent=27 // pred_check_branch
          %207 = sbr.rel (%p205) target = $region32
        $region31: #{mlp_forward.2} parent=27 // pred_region
          %s208 = sand.u32 %s26, 1
          %s209 = scalar_lea.sflag [#allocation3], %s208
          %s210 = sand.u32 %s26, 1
          %s211 = smul.addr %s210, 256
          %s212 = scalar_lea.vmem [#allocation2], %s211
          %s213 = smul.u32 32, %s16
          %s215 = ssub.s32 4096, 4096
          %216 = vsyncadd %s209, %s215
          %s217 = smul.addr %s213, 128
          %s218 = scalar_lea.hbm %s0, %s217
          %s219 = sshll.u32 %s212, 4
          %s220 = int_to_ptr.vmem [resolvable:$true] %s219
          %225 = dma.hbm_to_vmem [thread:$0]  %s218, 4096, %s220, %s209, 128, 128, 8
        $region32: #{mlp_forward.2} parent=27 // pred_fallthru
          _
      $region28: #{mlp_forward.2} parent=5 // pred_fallthru
        _
      %p226 = scmp.le.s32.totalorder 1, %s16
      %p227 = scmp.lt.s32.totalorder %s16, 3
      %p228 = pnand %p226, %p227
      %p229 = pneg %p228
      // Predicated region
      $region33: #{mlp_forward.2} parent=5 // pred_check
        _
      $region34: #{mlp_forward.2} parent=5 // pred_check_branch
        %231 = sbr.rel (%p228) target = $region36
      $region35: #{mlp_forward.2} parent=5 // pred_region
        %s232 = ssub.s32 %s16, 1
        %s233 = sand.u32 %s29, 1
        %s234 = scalar_lea.sflag [#allocation3], %s233
        %s235 = sand.u32 %s29, 1
        %s236 = smul.addr %s235, 256
        %s237 = scalar_lea.vmem [#allocation2], %s236
        // Predicated region
        $region37: #{mlp_forward.2} parent=35 // pred_check
          %p238 = pneg %p42
        $region38: #{mlp_forward.2} parent=35 // pred_check_branch
          %240 = sbr.rel (%p238) target = $region40
        $region39: #{mlp_forward.2} parent=35 // pred_region
          %241 = dma.done %s234, 4096
        $region40: #{mlp_forward.2} parent=35 // pred_fallthru
          _
        // Predicated region
        $region41: #{mlp_forward.2} parent=35 // pred_check
          %p242 = pneg %p63
        $region42: #{mlp_forward.2} parent=35 // pred_check_branch
          %244 = sbr.rel (%p242) target = $region44
        $region43: #{mlp_forward.2} parent=35 // pred_region
          %245 = dma.done [#allocation5], 4096
        $region44: #{mlp_forward.2} parent=35 // pred_fallthru
          _
        // Predicated region
        $region45: #{mlp_forward.2} parent=35 // pred_check
          %p246 = pneg %p105
        $region46: #{mlp_forward.2} parent=35 // pred_check_branch
          %248 = sbr.rel (%p246) target = $region48
        $region47: #{mlp_forward.2} parent=35 // pred_region
          %249 = dma.done [#allocation5], 4096
        $region48: #{mlp_forward.2} parent=35 // pred_fallthru
          _
        %s250 = sand.u32 %s29, 1
        %s251 = scalar_lea.sflag [#allocation3], %s250
        %s252 = sand.u32 %s29, 1
        %s253 = smul.addr %s252, 256
        %s254 = scalar_lea.vmem [#allocation2], %s253
        %p255 = pneg %p42
        %p256 = pneg %p39
        %p257 = pneg %p63
        %p258 = pneg %p60
        %p259 = pneg %p84
        %p260 = pneg %p81
        %p261 = pneg %p105
        %p262 = pneg %p102
        %p263 = pneg %p131
        %p264 = pneg %p128
        %s265 = smul.u32 32, %s21
        %p266 = scmp.lt.s32.totalorder %s265, 63
        %s267 = scalar_select %p266, %s265, 63
        %s268 = smul.addr %s267, 8
        %s269 = scalar_lea.vmem %s4, %s268
        %p270 = pneg %p157
        %p271 = pneg %p154
        %p272 = scmp.lt.s32.totalorder %s21, 1
        %s273 = scalar_select %p272, %s21, 1
        %s274 = smul.addr %s273, 2
        %s275 = scalar_lea.vmem %s5, %s274
        %s276 = smul.u32 32, %s21
        %s277 = smul.u32 32, %s21
        %p278 = scmp.lt.s32.totalorder %s277, 63
        %s279 = scalar_select %p278, %s277, 63
        %s280 = smul.addr %s279, 8
        %s281 = scalar_lea.vmem %s4, %s280
        %s282 = smul.u32 32, %s21
        %p283 = scmp.lt.s32.totalorder %s21, 1
        %s284 = scalar_select %p283, %s21, 1
        %s285 = smul.addr %s284, 2
        %s286 = scalar_lea.vmem %s5, %s285
        %v287 = vld [vmem:[%s237] sm:$0xff]
        %v288 = vld [vmem:[%s237 + $0x8] sm:$0xff]
        %v289 = vld [vmem:[%s237 + $0x10] sm:$0xff]
        %v290 = vld [vmem:[%s237 + $0x18] sm:$0xff]
        %v291 = vld [vmem:[%s237 + $0x20] sm:$0xff]
        %v292 = vld [vmem:[%s237 + $0x28] sm:$0xff]
        %v293 = vld [vmem:[%s237 + $0x30] sm:$0xff]
        %v294 = vld [vmem:[%s237 + $0x38] sm:$0xff]
        %v295 = vld [vmem:[%s237 + $0x40] sm:$0xff]
        %v296 = vld [vmem:[%s237 + $0x48] sm:$0xff]
        %v297 = vld [vmem:[%s237 + $0x50] sm:$0xff]
        %v298 = vld [vmem:[%s237 + $0x58] sm:$0xff]
        %v299 = vld [vmem:[%s237 + $0x60] sm:$0xff]
        %v300 = vld [vmem:[%s237 + $0x68] sm:$0xff]
        %v301 = vld [vmem:[%s237 + $0x70] sm:$0xff]
        %v302 = vld [vmem:[%s237 + $0x78] sm:$0xff]
        %v303 = vld [vmem:[%s237 + $0x80] sm:$0xff]
        %v304 = vld [vmem:[%s237 + $0x88] sm:$0xff]
        %v305 = vld [vmem:[%s237 + $0x90] sm:$0xff]
        %v306 = vld [vmem:[%s237 + $0x98] sm:$0xff]
        %v307 = vld [vmem:[%s237 + $0xa0] sm:$0xff]
        %v308 = vld [vmem:[%s237 + $0xa8] sm:$0xff]
        %v309 = vld [vmem:[%s237 + $0xb0] sm:$0xff]
        %v310 = vld [vmem:[%s237 + $0xb8] sm:$0xff]
        %v311 = vld [vmem:[%s237 + $0xc0] sm:$0xff]
        %v312 = vld [vmem:[%s237 + $0xc8] sm:$0xff]
        %v313 = vld [vmem:[%s237 + $0xd0] sm:$0xff]
        %v314 = vld [vmem:[%s237 + $0xd8] sm:$0xff]
        %v315 = vld [vmem:[%s237 + $0xe0] sm:$0xff]
        %v316 = vld [vmem:[%s237 + $0xe8] sm:$0xff]
        %v317 = vld [vmem:[%s237 + $0xf0] sm:$0xff]
        %v318 = vld [vmem:[%s237 + $0xf8] sm:$0xff]
        %v319 = vld [vmem:[#allocation4] sm:$0xff]
        %v320 = vld [vmem:[#allocation4 + $0x8] sm:$0xff]
        %v321 = vld [vmem:[#allocation4 + $0x10] sm:$0xff]
        %v322 = vld [vmem:[#allocation4 + $0x18] sm:$0xff]
        %v323 = vld [vmem:[#allocation4 + $0x20] sm:$0xff]
        %v324 = vld [vmem:[#allocation4 + $0x28] sm:$0xff]
        %v325 = vld [vmem:[#allocation4 + $0x30] sm:$0xff]
        %v326 = vld [vmem:[#allocation4 + $0x38] sm:$0xff]
        %v327 = vld [vmem:[#allocation4 + $0x40] sm:$0xff]
        %v328 = vld [vmem:[#allocation4 + $0x48] sm:$0xff]
        %v329 = vld [vmem:[#allocation4 + $0x50] sm:$0xff]
        %v330 = vld [vmem:[#allocation4 + $0x58] sm:$0xff]
        %v331 = vld [vmem:[#allocation4 + $0x60] sm:$0xff]
        %v332 = vld [vmem:[#allocation4 + $0x68] sm:$0xff]
        %v333 = vld [vmem:[#allocation4 + $0x70] sm:$0xff]
        %v334 = vld [vmem:[#allocation4 + $0x78] sm:$0xff]
        %v335 = vld [vmem:[#allocation4 + $0x80] sm:$0xff]
        %v336 = vld [vmem:[#allocation4 + $0x88] sm:$0xff]
        %v337 = vld [vmem:[#allocation4 + $0x90] sm:$0xff]
        %v338 = vld [vmem:[#allocation4 + $0x98] sm:$0xff]
        %v339 = vld [vmem:[#allocation4 + $0xa0] sm:$0xff]
        %v340 = vld [vmem:[#allocation4 + $0xa8] sm:$0xff]
        %v341 = vld [vmem:[#allocation4 + $0xb0] sm:$0xff]
        %v342 = vld [vmem:[#allocation4 + $0xb8] sm:$0xff]
        %v343 = vld [vmem:[#allocation4 + $0xc0] sm:$0xff]
        %v344 = vld [vmem:[#allocation4 + $0xc8] sm:$0xff]
        %v345 = vld [vmem:[#allocation4 + $0xd0] sm:$0xff]
        %v346 = vld [vmem:[#allocation4 + $0xd8] sm:$0xff]
        %v347 = vld [vmem:[#allocation4 + $0xe0] sm:$0xff]
        %v348 = vld [vmem:[#allocation4 + $0xe8] sm:$0xff]
        %v349 = vld [vmem:[#allocation4 + $0xf0] sm:$0xff]
        %v350 = vld [vmem:[#allocation4 + $0xf8] sm:$0xff]
        %v351 = vld [vmem:[%s2] sm:$0x3]
        %v353 = vlaneseq
        %v354 = vshrl.u32 %v353, 7
        %v355 = vsub.s32 0, %v354
        %v356 = vrot.slane %v351, %v355
        %v357 = vlaneseq
        %v358 = vshrl.u32 %v357, 7
        %v359 = vsub.s32 1, %v358
        %v360 = vrot.slane %v351, %v359
        %363 = vmatprep.subr.mxu0 %v320
        %364 = vmatpush1.msra.mxu0 %v319
        %365 = vmatprep.subr.mxu0 %v322
        %366 = vmatpush1.msra.mxu0 %v321
        %367 = vmatprep.subr.mxu0 %v324
        %368 = vmatpush1.msra.mxu0 %v323
        %369 = vmatprep.subr.mxu0 %v326
        %370 = vmatpush1.msra.mxu0 %v325
        %371 = vmatprep.subr.mxu0 %v328
        %372 = vmatpush1.msra.mxu0 %v327
        %373 = vmatprep.subr.mxu0 %v330
        %374 = vmatpush1.msra.mxu0 %v329
        %375 = vmatprep.subr.mxu0 %v332
        %376 = vmatpush1.msra.mxu0 %v331
        %377 = vmatprep.subr.mxu0 %v334
        %378 = vmatpush1.msra.mxu0 %v333
        %379 = vmatprep.subr.mxu0 %v336
        %380 = vmatpush1.msra.mxu0 %v335
        %381 = vmatprep.subr.mxu0 %v338
        %382 = vmatpush1.msra.mxu0 %v337
        %383 = vmatprep.subr.mxu0 %v340
        %384 = vmatpush1.msra.mxu0 %v339
        %385 = vmatprep.subr.mxu0 %v342
        %386 = vmatpush1.msra.mxu0 %v341
        %387 = vmatprep.subr.mxu0 %v344
        %388 = vmatpush1.msra.mxu0 %v343
        %389 = vmatprep.subr.mxu0 %v346
        %390 = vmatpush1.msra.mxu0 %v345
        %391 = vmatprep.subr.mxu0 %v348
        %392 = vmatpush1.msra.mxu0 %v347
        %393 = vmatprep.subr.mxu0 %v350
        %394 = vmatpush1.msra.mxu0 %v349
        %395 = vmatprep.subr.mxu0 0.0
        %396 = vmatpush1.msra.mxu0 0.0
        %397 = vmatprep.subr.mxu0 0.0
        %398 = vmatpush1.msra.mxu0 0.0
        %399 = vmatprep.subr.mxu0 0.0
        %400 = vmatpush1.msra.mxu0 0.0
        %401 = vmatprep.subr.mxu0 0.0
        %402 = vmatpush1.msra.mxu0 0.0
        %403 = vmatprep.subr.mxu0 0.0
        %404 = vmatpush1.msra.mxu0 0.0
        %405 = vmatprep.subr.mxu0 0.0
        %406 = vmatpush1.msra.mxu0 0.0
        %407 = vmatprep.subr.mxu0 0.0
        %408 = vmatpush1.msra.mxu0 0.0
        %409 = vmatprep.subr.mxu0 0.0
        %410 = vmatpush1.msra.mxu0 0.0
        %411 = vmatprep.subr.mxu0 0.0
        %412 = vmatpush1.msra.mxu0 0.0
        %413 = vmatprep.subr.mxu0 0.0
        %414 = vmatpush1.msra.mxu0 0.0
        %415 = vmatprep.subr.mxu0 0.0
        %416 = vmatpush1.msra.mxu0 0.0
        %417 = vmatprep.subr.mxu0 0.0
        %418 = vmatpush1.msra.mxu0 0.0
        %419 = vmatprep.subr.mxu0 0.0
        %420 = vmatpush1.msra.mxu0 0.0
        %421 = vmatprep.subr.mxu0 0.0
        %422 = vmatpush1.msra.mxu0 0.0
        %423 = vmatprep.subr.mxu0 0.0
        %424 = vmatpush1.msra.mxu0 0.0
        %425 = vmatprep.subr.mxu0 0.0
        %426 = vmatpush1.msra.mxu0 0.0
        %427 = vmatprep.mubr.f32.mxu0 0.0
        %428 = vmatmul.mubr.f32.gmra.mrb[0].mxu0 %v287
        %v429 = vpop.f32.mrb[0].mxu0
        %v430 = vadd.f32 %v356, %v429
        %v431 = vpop.f32.mrb[0].mxu0
        %v432 = vadd.f32 %v360, %v431
        %433 = vmatprep.mubr.f32.mxu0 0.0
        %434 = vmatmul.mubr.f32.gmra.mrb[0].mxu0 %v288
        %v435 = vpop.f32.mrb[0].mxu0
        %v436 = vadd.f32 %v356, %v435
        %v437 = vpop.f32.mrb[0].mxu0
        %v438 = vadd.f32 %v360, %v437
        %439 = vmatprep.mubr.f32.mxu0 0.0
        %440 = vmatmul.mubr.f32.gmra.mrb[0].mxu0 %v289
        %v441 = vpop.f32.mrb[0].mxu0
        %v442 = vadd.f32 %v356, %v441
        %v443 = vpop.f32.mrb[0].mxu0
        %v444 = vadd.f32 %v360, %v443
        %445 = vmatprep.mubr.f32.mxu0 0.0
        %446 = vmatmul.mubr.f32.gmra.mrb[0].mxu0 %v290
        %v447 = vpop.f32.mrb[0].mxu0
        %v448 = vadd.f32 %v356, %v447
        %v449 = vpop.f32.mrb[0].mxu0
        %v450 = vadd.f32 %v360, %v449
        %451 = vmatprep.mubr.f32.mxu0 0.0
        %452 = vmatmul.mubr.f32.gmra.mrb[0].mxu0 %v291
        %v453 = vpop.f32.mrb[0].mxu0
        %v454 = vadd.f32 %v356, %v453
        %v455 = vpop.f32.mrb[0].mxu0
        %v456 = vadd.f32 %v360, %v455
        %457 = vmatprep.mubr.f32.mxu0 0.0
        %458 = vmatmul.mubr.f32.gmra.mrb[0].mxu0 %v292
        %v459 = vpop.f32.mrb[0].mxu0
        %v460 = vadd.f32 %v356, %v459
        %v461 = vpop.f32.mrb[0].mxu0
        %v462 = vadd.f32 %v360, %v461
        %463 = vmatprep.mubr.f32.mxu0 0.0
        %464 = vmatmul.mubr.f32.gmra.mrb[0].mxu0 %v293
        %v465 = vpop.f32.mrb[0].mxu0
        %v466 = vadd.f32 %v356, %v465
        %v467 = vpop.f32.mrb[0].mxu0
        %v468 = vadd.f32 %v360, %v467
        %469 = vmatprep.mubr.f32.mxu0 0.0
        %470 = vmatmul.mubr.f32.gmra.mrb[0].mxu0 %v294
        %v471 = vpop.f32.mrb[0].mxu0
        %v472 = vadd.f32 %v356, %v471
        %v473 = vpop.f32.mrb[0].mxu0
        %v474 = vadd.f32 %v360, %v473
        %475 = vmatprep.mubr.f32.mxu0 0.0
        %476 = vmatmul.mubr.f32.gmra.mrb[0].mxu0 %v295
        %v477 = vpop.f32.mrb[0].mxu0
        %v478 = vadd.f32 %v356, %v477
        %v479 = vpop.f32.mrb[0].mxu0
        %v480 = vadd.f32 %v360, %v479
        %481 = vmatprep.mubr.f32.mxu0 0.0
        %482 = vmatmul.mubr.f32.gmra.mrb[0].mxu0 %v296
        %v483 = vpop.f32.mrb[0].mxu0
        %v484 = vadd.f32 %v356, %v483
        %v485 = vpop.f32.mrb[0].mxu0
        %v486 = vadd.f32 %v360, %v485
        %487 = vmatprep.mubr.f32.mxu0 0.0
        %488 = vmatmul.mubr.f32.gmra.mrb[0].mxu0 %v297
        %v489 = vpop.f32.mrb[0].mxu0
        %v490 = vadd.f32 %v356, %v489
        %v491 = vpop.f32.mrb[0].mxu0
        %v492 = vadd.f32 %v360, %v491
        %493 = vmatprep.mubr.f32.mxu0 0.0
        %494 = vmatmul.mubr.f32.gmra.mrb[0].mxu0 %v298
        %v495 = vpop.f32.mrb[0].mxu0
        %v496 = vadd.f32 %v356, %v495
        %v497 = vpop.f32.mrb[0].mxu0
        %v498 = vadd.f32 %v360, %v497
        %499 = vmatprep.mubr.f32.mxu0 0.0
        %500 = vmatmul.mubr.f32.gmra.mrb[0].mxu0 %v299
        %v501 = vpop.f32.mrb[0].mxu0
        %v502 = vadd.f32 %v356, %v501
        %v503 = vpop.f32.mrb[0].mxu0
        %v504 = vadd.f32 %v360, %v503
        %505 = vmatprep.mubr.f32.mxu0 0.0
        %506 = vmatmul.mubr.f32.gmra.mrb[0].mxu0 %v300
        %v507 = vpop.f32.mrb[0].mxu0
        %v508 = vadd.f32 %v356, %v507
        %v509 = vpop.f32.mrb[0].mxu0
        %v510 = vadd.f32 %v360, %v509
        %511 = vmatprep.mubr.f32.mxu0 0.0
        %512 = vmatmul.mubr.f32.gmra.mrb[0].mxu0 %v301
        %v513 = vpop.f32.mrb[0].mxu0
        %v514 = vadd.f32 %v356, %v513
        %v515 = vpop.f32.mrb[0].mxu0
        %v516 = vadd.f32 %v360, %v515
        %517 = vmatprep.mubr.f32.mxu0 0.0
        %518 = vmatmul.mubr.f32.gmra.mrb[0].mxu0 %v302
        %v519 = vpop.f32.mrb[0].mxu0
        %v520 = vadd.f32 %v356, %v519
        %v521 = vpop.f32.mrb[0].mxu0
        %v522 = vadd.f32 %v360, %v521
        %523 = vmatprep.mubr.f32.mxu0 0.0
        %524 = vmatmul.mubr.f32.gmra.mrb[0].mxu0 %v303
        %v525 = vpop.f32.mrb[0].mxu0
        %v526 = vadd.f32 %v356, %v525
        %v527 = vpop.f32.mrb[0].mxu0
        %v528 = vadd.f32 %v360, %v527
        %529 = vmatprep.mubr.f32.mxu0 0.0
        %530 = vmatmul.mubr.f32.gmra.mrb[0].mxu0 %v304
        %v531 = vpop.f32.mrb[0].mxu0
        %v532 = vadd.f32 %v356, %v531
        %v533 = vpop.f32.mrb[0].mxu0
        %v534 = vadd.f32 %v360, %v533
        %535 = vmatprep.mubr.f32.mxu0 0.0
        %536 = vmatmul.mubr.f32.gmra.mrb[0].mxu0 %v305
        %v537 = vpop.f32.mrb[0].mxu0
        %v538 = vadd.f32 %v356, %v537
        %v539 = vpop.f32.mrb[0].mxu0
        %v540 = vadd.f32 %v360, %v539
        %541 = vmatprep.mubr.f32.mxu0 0.0
        %542 = vmatmul.mubr.f32.gmra.mrb[0].mxu0 %v306
        %v543 = vpop.f32.mrb[0].mxu0
        %v544 = vadd.f32 %v356, %v543
        %v545 = vpop.f32.mrb[0].mxu0
        %v546 = vadd.f32 %v360, %v545
        %547 = vmatprep.mubr.f32.mxu0 0.0
        %548 = vmatmul.mubr.f32.gmra.mrb[0].mxu0 %v307
        %v549 = vpop.f32.mrb[0].mxu0
        %v550 = vadd.f32 %v356, %v549
        %v551 = vpop.f32.mrb[0].mxu0
        %v552 = vadd.f32 %v360, %v551
        %553 = vmatprep.mubr.f32.mxu0 0.0
        %554 = vmatmul.mubr.f32.gmra.mrb[0].mxu0 %v308
        %v555 = vpop.f32.mrb[0].mxu0
        %v556 = vadd.f32 %v356, %v555
        %v557 = vpop.f32.mrb[0].mxu0
        %v558 = vadd.f32 %v360, %v557
        %559 = vmatprep.mubr.f32.mxu0 0.0
        %560 = vmatmul.mubr.f32.gmra.mrb[0].mxu0 %v309
        %v561 = vpop.f32.mrb[0].mxu0
        %v562 = vadd.f32 %v356, %v561
        %v563 = vpop.f32.mrb[0].mxu0
        %v564 = vadd.f32 %v360, %v563
        %565 = vmatprep.mubr.f32.mxu0 0.0
        %566 = vmatmul.mubr.f32.gmra.mrb[0].mxu0 %v310
        %v567 = vpop.f32.mrb[0].mxu0
        %v568 = vadd.f32 %v356, %v567
        %v569 = vpop.f32.mrb[0].mxu0
        %v570 = vadd.f32 %v360, %v569
        %571 = vmatprep.mubr.f32.mxu0 0.0
        %572 = vmatmul.mubr.f32.gmra.mrb[0].mxu0 %v311
        %v573 = vpop.f32.mrb[0].mxu0
        %v574 = vadd.f32 %v356, %v573
        %v575 = vpop.f32.mrb[0].mxu0
        %v576 = vadd.f32 %v360, %v575
        %577 = vmatprep.mubr.f32.mxu0 0.0
        %578 = vmatmul.mubr.f32.gmra.mrb[0].mxu0 %v312
        %v579 = vpop.f32.mrb[0].mxu0
        %v580 = vadd.f32 %v356, %v579
        %v581 = vpop.f32.mrb[0].mxu0
        %v582 = vadd.f32 %v360, %v581
        %583 = vmatprep.mubr.f32.mxu0 0.0
        %584 = vmatmul.mubr.f32.gmra.mrb[0].mxu0 %v313
        %v585 = vpop.f32.mrb[0].mxu0
        %v586 = vadd.f32 %v356, %v585
        %v587 = vpop.f32.mrb[0].mxu0
        %v588 = vadd.f32 %v360, %v587
        %589 = vmatprep.mubr.f32.mxu0 0.0
        %590 = vmatmul.mubr.f32.gmra.mrb[0].mxu0 %v314
        %v591 = vpop.f32.mrb[0].mxu0
        %v592 = vadd.f32 %v356, %v591
        %v593 = vpop.f32.mrb[0].mxu0
        %v594 = vadd.f32 %v360, %v593
        %595 = vmatprep.mubr.f32.mxu0 0.0
        %596 = vmatmul.mubr.f32.gmra.mrb[0].mxu0 %v315
        %v597 = vpop.f32.mrb[0].mxu0
        %v598 = vadd.f32 %v356, %v597
        %v599 = vpop.f32.mrb[0].mxu0
        %v600 = vadd.f32 %v360, %v599
        %601 = vmatprep.mubr.f32.mxu0 0.0
        %602 = vmatmul.mubr.f32.gmra.mrb[0].mxu0 %v316
        %v603 = vpop.f32.mrb[0].mxu0
        %v604 = vadd.f32 %v356, %v603
        %v605 = vpop.f32.mrb[0].mxu0
        %v606 = vadd.f32 %v360, %v605
        %607 = vmatprep.mubr.f32.mxu0 0.0
        %608 = vmatmul.mubr.f32.gmra.mrb[0].mxu0 %v317
        %v609 = vpop.f32.mrb[0].mxu0
        %v610 = vadd.f32 %v356, %v609
        %v611 = vpop.f32.mrb[0].mxu0
        %v612 = vadd.f32 %v360, %v611
        %613 = vmatprep.mubr.f32.mxu0 0.0
        %614 = vmatmul.mubr.f32.gmra.mrb[0].mxu0 %v318
        %v615 = vpop.f32.mrb[0].mxu0
        %v616 = vadd.f32 %v356, %v615
        %v617 = vpop.f32.mrb[0].mxu0
        %v618 = vadd.f32 %v360, %v617
        %619 = vdwg.mxu0
        %v620 = vmul.f32 %v430, 0.5
        %v621 = vmul.f32 %v432, 0.5
        %v622 = vmul.f32 %v436, 0.5
        %v623 = vmul.f32 %v438, 0.5
        %v624 = vmul.f32 %v442, 0.5
        %v625 = vmul.f32 %v444, 0.5
        %v626 = vmul.f32 %v448, 0.5
        %v627 = vmul.f32 %v450, 0.5
        %v628 = vmul.f32 %v454, 0.5
        %v629 = vmul.f32 %v456, 0.5
        %v630 = vmul.f32 %v460, 0.5
        %v631 = vmul.f32 %v462, 0.5
        %v632 = vmul.f32 %v466, 0.5
        %v633 = vmul.f32 %v468, 0.5
        %v634 = vmul.f32 %v472, 0.5
        %v635 = vmul.f32 %v474, 0.5
        %v636 = vmul.f32 %v478, 0.5
        %v637 = vmul.f32 %v480, 0.5
        %v638 = vmul.f32 %v484, 0.5
        %v639 = vmul.f32 %v486, 0.5
        %v640 = vmul.f32 %v490, 0.5
        %v641 = vmul.f32 %v492, 0.5
        %v642 = vmul.f32 %v496, 0.5
        %v643 = vmul.f32 %v498, 0.5
        %v644 = vmul.f32 %v502, 0.5
        %v645 = vmul.f32 %v504, 0.5
        %v646 = vmul.f32 %v508, 0.5
        %v647 = vmul.f32 %v510, 0.5
        %v648 = vmul.f32 %v514, 0.5
        %v649 = vmul.f32 %v516, 0.5
        %v650 = vmul.f32 %v520, 0.5
        %v651 = vmul.f32 %v522, 0.5
        %v652 = vmul.f32 %v526, 0.5
        %v653 = vmul.f32 %v528, 0.5
        %v654 = vmul.f32 %v532, 0.5
        %v655 = vmul.f32 %v534, 0.5
        %v656 = vmul.f32 %v538, 0.5
        %v657 = vmul.f32 %v540, 0.5
        %v658 = vmul.f32 %v544, 0.5
        %v659 = vmul.f32 %v546, 0.5
        %v660 = vmul.f32 %v550, 0.5
        %v661 = vmul.f32 %v552, 0.5
        %v662 = vmul.f32 %v556, 0.5
        %v663 = vmul.f32 %v558, 0.5
        %v664 = vmul.f32 %v562, 0.5
        %v665 = vmul.f32 %v564, 0.5
        %v666 = vmul.f32 %v568, 0.5
        %v667 = vmul.f32 %v570, 0.5
        %v668 = vmul.f32 %v574, 0.5
        %v669 = vmul.f32 %v576, 0.5
        %v670 = vmul.f32 %v580, 0.5
        %v671 = vmul.f32 %v582, 0.5
        %v672 = vmul.f32 %v586, 0.5
        %v673 = vmul.f32 %v588, 0.5
        %v674 = vmul.f32 %v592, 0.5
        %v675 = vmul.f32 %v594, 0.5
        %v676 = vmul.f32 %v598, 0.5
        %v677 = vmul.f32 %v600, 0.5
        %v678 = vmul.f32 %v604, 0.5
        %v679 = vmul.f32 %v606, 0.5
        %v680 = vmul.f32 %v610, 0.5
        %v681 = vmul.f32 %v612, 0.5
        %v682 = vmul.f32 %v616, 0.5
        %v683 = vmul.f32 %v618, 0.5
        %v684 = vmul.f32 %v430, 0.70710677
        %v685 = vmul.f32 %v432, 0.70710677
        %v686 = vmul.f32 %v436, 0.70710677
        %v687 = vmul.f32 %v438, 0.70710677
        %v688 = vmul.f32 %v442, 0.70710677
        %v689 = vmul.f32 %v444, 0.70710677
        %v690 = vmul.f32 %v448, 0.70710677
        %v691 = vmul.f32 %v450, 0.70710677
        %v692 = vmul.f32 %v454, 0.70710677
        %v693 = vmul.f32 %v456, 0.70710677
        %v694 = vmul.f32 %v460, 0.70710677
        %v695 = vmul.f32 %v462, 0.70710677
        %v696 = vmul.f32 %v466, 0.70710677
        %v697 = vmul.f32 %v468, 0.70710677
        %v698 = vmul.f32 %v472, 0.70710677
        %v699 = vmul.f32 %v474, 0.70710677
        %v700 = vmul.f32 %v478, 0.70710677
        %v701 = vmul.f32 %v480, 0.70710677
        %v702 = vmul.f32 %v484, 0.70710677
        %v703 = vmul.f32 %v486, 0.70710677
        %v704 = vmul.f32 %v490, 0.70710677
        %v705 = vmul.f32 %v492, 0.70710677
        %v706 = vmul.f32 %v496, 0.70710677
        %v707 = vmul.f32 %v498, 0.70710677
        %v708 = vmul.f32 %v502, 0.70710677
        %v709 = vmul.f32 %v504, 0.70710677
        %v710 = vmul.f32 %v508, 0.70710677
        %v711 = vmul.f32 %v510, 0.70710677
        %v712 = vmul.f32 %v514, 0.70710677
        %v713 = vmul.f32 %v516, 0.70710677
        %v714 = vmul.f32 %v520, 0.70710677
        %v715 = vmul.f32 %v522, 0.70710677
        %v716 = vmul.f32 %v526, 0.70710677
        %v717 = vmul.f32 %v528, 0.70710677
        %v718 = vmul.f32 %v532, 0.70710677
        %v719 = vmul.f32 %v534, 0.70710677
        %v720 = vmul.f32 %v538, 0.70710677
        %v721 = vmul.f32 %v540, 0.70710677
        %v722 = vmul.f32 %v544, 0.70710677
        %v723 = vmul.f32 %v546, 0.70710677
        %v724 = vmul.f32 %v550, 0.70710677
        %v725 = vmul.f32 %v552, 0.70710677
        %v726 = vmul.f32 %v556, 0.70710677
        %v727 = vmul.f32 %v558, 0.70710677
        %v728 = vmul.f32 %v562, 0.70710677
        %v729 = vmul.f32 %v564, 0.70710677
        %v730 = vmul.f32 %v568, 0.70710677
        %v731 = vmul.f32 %v570, 0.70710677
        %v732 = vmul.f32 %v574, 0.70710677
        %v733 = vmul.f32 %v576, 0.70710677
        %v734 = vmul.f32 %v580, 0.70710677
        %v735 = vmul.f32 %v582, 0.70710677
        %v736 = vmul.f32 %v586, 0.70710677
        %v737 = vmul.f32 %v588, 0.70710677
        %v738 = vmul.f32 %v592, 0.70710677
        %v739 = vmul.f32 %v594, 0.70710677
        %v740 = vmul.f32 %v598, 0.70710677
        %v741 = vmul.f32 %v600, 0.70710677
        %v742 = vmul.f32 %v604, 0.70710677
        %v743 = vmul.f32 %v606, 0.70710677
        %v744 = vmul.f32 %v610, 0.70710677
        %v745 = vmul.f32 %v612, 0.70710677
        %v746 = vmul.f32 %v616, 0.70710677
        %v747 = vmul.f32 %v618, 0.70710677
        %v748 = vand.u32 2147483647, %v684
        %v749 = vand.u32 2147483647, %v685
        %v750 = vand.u32 2147483647, %v686
        %v751 = vand.u32 2147483647, %v687
        %v752 = vand.u32 2147483647, %v688
        %v753 = vand.u32 2147483647, %v689
        %v754 = vand.u32 2147483647, %v690
        %v755 = vand.u32 2147483647, %v691
        %v756 = vand.u32 2147483647, %v692
        %v757 = vand.u32 2147483647, %v693
        %v758 = vand.u32 2147483647, %v694
        %v759 = vand.u32 2147483647, %v695
        %v760 = vand.u32 2147483647, %v696
        %v761 = vand.u32 2147483647, %v697
        %v762 = vand.u32 2147483647, %v698
        %v763 = vand.u32 2147483647, %v699
        %v764 = vand.u32 2147483647, %v700
        %v765 = vand.u32 2147483647, %v701
        %v766 = vand.u32 2147483647, %v702
        %v767 = vand.u32 2147483647, %v703
        %v768 = vand.u32 2147483647, %v704
        %v769 = vand.u32 2147483647, %v705
        %v770 = vand.u32 2147483647, %v706
        %v771 = vand.u32 2147483647, %v707
        %v772 = vand.u32 2147483647, %v708
        %v773 = vand.u32 2147483647, %v709
        %v774 = vand.u32 2147483647, %v710
        %v775 = vand.u32 2147483647, %v711
        %v776 = vand.u32 2147483647, %v712
        %v777 = vand.u32 2147483647, %v713
        %v778 = vand.u32 2147483647, %v714
        %v779 = vand.u32 2147483647, %v715
        %v780 = vand.u32 2147483647, %v716
        %v781 = vand.u32 2147483647, %v717
        %v782 = vand.u32 2147483647, %v718
        %v783 = vand.u32 2147483647, %v719
        %v784 = vand.u32 2147483647, %v720
        %v785 = vand.u32 2147483647, %v721
        %v786 = vand.u32 2147483647, %v722
        %v787 = vand.u32 2147483647, %v723
        %v788 = vand.u32 2147483647, %v724
        %v789 = vand.u32 2147483647, %v725
        %v790 = vand.u32 2147483647, %v726
        %v791 = vand.u32 2147483647, %v727
        %v792 = vand.u32 2147483647, %v728
        %v793 = vand.u32 2147483647, %v729
        %v794 = vand.u32 2147483647, %v730
        %v795 = vand.u32 2147483647, %v731
        %v796 = vand.u32 2147483647, %v732
        %v797 = vand.u32 2147483647, %v733
        %v798 = vand.u32 2147483647, %v734
        %v799 = vand.u32 2147483647, %v735
        %v800 = vand.u32 2147483647, %v736
        %v801 = vand.u32 2147483647, %v737
        %v802 = vand.u32 2147483647, %v738
        %v803 = vand.u32 2147483647, %v739
        %v804 = vand.u32 2147483647, %v740
        %v805 = vand.u32 2147483647, %v741
        %v806 = vand.u32 2147483647, %v742
        %v807 = vand.u32 2147483647, %v743
        %v808 = vand.u32 2147483647, %v744
        %v809 = vand.u32 2147483647, %v745
        %v810 = vand.u32 2147483647, %v746
        %v811 = vand.u32 2147483647, %v747
        %v812 = vmul.f32 %v748, 0.3275911
        %v813 = vmul.f32 %v749, 0.3275911
        %v814 = vmul.f32 %v750, 0.3275911
        %v815 = vmul.f32 %v751, 0.3275911
        %v816 = vmul.f32 %v752, 0.3275911
        %v817 = vmul.f32 %v753, 0.3275911
        %v818 = vmul.f32 %v754, 0.3275911
        %v819 = vmul.f32 %v755, 0.3275911
        %v820 = vmul.f32 %v756, 0.3275911
        %v821 = vmul.f32 %v757, 0.3275911
        %v822 = vmul.f32 %v758, 0.3275911
        %v823 = vmul.f32 %v759, 0.3275911
        %v824 = vmul.f32 %v760, 0.3275911
        %v825 = vmul.f32 %v761, 0.3275911
        %v826 = vmul.f32 %v762, 0.3275911
        %v827 = vmul.f32 %v763, 0.3275911
        %v828 = vmul.f32 %v764, 0.3275911
        %v829 = vmul.f32 %v765, 0.3275911
        %v830 = vmul.f32 %v766, 0.3275911
        %v831 = vmul.f32 %v767, 0.3275911
        %v832 = vmul.f32 %v768, 0.3275911
        %v833 = vmul.f32 %v769, 0.3275911
        %v834 = vmul.f32 %v770, 0.3275911
        %v835 = vmul.f32 %v771, 0.3275911
        %v836 = vmul.f32 %v772, 0.3275911
        %v837 = vmul.f32 %v773, 0.3275911
        %v838 = vmul.f32 %v774, 0.3275911
        %v839 = vmul.f32 %v775, 0.3275911
        %v840 = vmul.f32 %v776, 0.3275911
        %v841 = vmul.f32 %v777, 0.3275911
        %v842 = vmul.f32 %v778, 0.3275911
        %v843 = vmul.f32 %v779, 0.3275911
        %v844 = vmul.f32 %v780, 0.3275911
        %v845 = vmul.f32 %v781, 0.3275911
        %v846 = vmul.f32 %v782, 0.3275911
        %v847 = vmul.f32 %v783, 0.3275911
        %v848 = vmul.f32 %v784, 0.3275911
        %v849 = vmul.f32 %v785, 0.3275911
        %v850 = vmul.f32 %v786, 0.3275911
        %v851 = vmul.f32 %v787, 0.3275911
        %v852 = vmul.f32 %v788, 0.3275911
        %v853 = vmul.f32 %v789, 0.3275911
        %v854 = vmul.f32 %v790, 0.3275911
        %v855 = vmul.f32 %v791, 0.3275911
        %v856 = vmul.f32 %v792, 0.3275911
        %v857 = vmul.f32 %v793, 0.3275911
        %v858 = vmul.f32 %v794, 0.3275911
        %v859 = vmul.f32 %v795, 0.3275911
        %v860 = vmul.f32 %v796, 0.3275911
        %v861 = vmul.f32 %v797, 0.3275911
        %v862 = vmul.f32 %v798, 0.3275911
        %v863 = vmul.f32 %v799, 0.3275911
        %v864 = vmul.f32 %v800, 0.3275911
        %v865 = vmul.f32 %v801, 0.3275911
        %v866 = vmul.f32 %v802, 0.3275911
        %v867 = vmul.f32 %v803, 0.3275911
        %v868 = vmul.f32 %v804, 0.3275911
        %v869 = vmul.f32 %v805, 0.3275911
        %v870 = vmul.f32 %v806, 0.3275911
        %v871 = vmul.f32 %v807, 0.3275911
        %v872 = vmul.f32 %v808, 0.3275911
        %v873 = vmul.f32 %v809, 0.3275911
        %v874 = vmul.f32 %v810, 0.3275911
        %v875 = vmul.f32 %v811, 0.3275911
        %v876 = vadd.f32 %v812, 1.0
        %v877 = vadd.f32 %v813, 1.0
        %v878 = vadd.f32 %v814, 1.0
        %v879 = vadd.f32 %v815, 1.0
        %v880 = vadd.f32 %v816, 1.0
        %v881 = vadd.f32 %v817, 1.0
        %v882 = vadd.f32 %v818, 1.0
        %v883 = vadd.f32 %v819, 1.0
        %v884 = vadd.f32 %v820, 1.0
        %v885 = vadd.f32 %v821, 1.0
        %v886 = vadd.f32 %v822, 1.0
        %v887 = vadd.f32 %v823, 1.0
        %v888 = vadd.f32 %v824, 1.0
        %v889 = vadd.f32 %v825, 1.0
        %v890 = vadd.f32 %v826, 1.0
        %v891 = vadd.f32 %v827, 1.0
        %v892 = vadd.f32 %v828, 1.0
        %v893 = vadd.f32 %v829, 1.0
        %v894 = vadd.f32 %v830, 1.0
        %v895 = vadd.f32 %v831, 1.0
        %v896 = vadd.f32 %v832, 1.0
        %v897 = vadd.f32 %v833, 1.0
        %v898 = vadd.f32 %v834, 1.0
        %v899 = vadd.f32 %v835, 1.0
        %v900 = vadd.f32 %v836, 1.0
        %v901 = vadd.f32 %v837, 1.0
        %v902 = vadd.f32 %v838, 1.0
        %v903 = vadd.f32 %v839, 1.0
        %v904 = vadd.f32 %v840, 1.0
        %v905 = vadd.f32 %v841, 1.0
        %v906 = vadd.f32 %v842, 1.0
        %v907 = vadd.f32 %v843, 1.0
        %v908 = vadd.f32 %v844, 1.0
        %v909 = vadd.f32 %v845, 1.0
        %v910 = vadd.f32 %v846, 1.0
        %v911 = vadd.f32 %v847, 1.0
        %v912 = vadd.f32 %v848, 1.0
        %v913 = vadd.f32 %v849, 1.0
        %v914 = vadd.f32 %v850, 1.0
        %v915 = vadd.f32 %v851, 1.0
        %v916 = vadd.f32 %v852, 1.0
        %v917 = vadd.f32 %v853, 1.0
        %v918 = vadd.f32 %v854, 1.0
        %v919 = vadd.f32 %v855, 1.0
        %v920 = vadd.f32 %v856, 1.0
        %v921 = vadd.f32 %v857, 1.0
        %v922 = vadd.f32 %v858, 1.0
        %v923 = vadd.f32 %v859, 1.0
        %v924 = vadd.f32 %v860, 1.0
        %v925 = vadd.f32 %v861, 1.0
        %v926 = vadd.f32 %v862, 1.0
        %v927 = vadd.f32 %v863, 1.0
        %v928 = vadd.f32 %v864, 1.0
        %v929 = vadd.f32 %v865, 1.0
        %v930 = vadd.f32 %v866, 1.0
        %v931 = vadd.f32 %v867, 1.0
        %v932 = vadd.f32 %v868, 1.0
        %v933 = vadd.f32 %v869, 1.0
        %v934 = vadd.f32 %v870, 1.0
        %v935 = vadd.f32 %v871, 1.0
        %v936 = vadd.f32 %v872, 1.0
        %v937 = vadd.f32 %v873, 1.0
        %v938 = vadd.f32 %v874, 1.0
        %v939 = vadd.f32 %v875, 1.0
        %v940 = vrcp.pop %v876
        %v941 = vmul.f32 1.0, %v940
        %v942 = vrcp.pop %v877
        %v943 = vmul.f32 1.0, %v942
        %v944 = vrcp.pop %v878
        %v945 = vmul.f32 1.0, %v944
        %v946 = vrcp.pop %v879
        %v947 = vmul.f32 1.0, %v946
        %v948 = vrcp.pop %v880
        %v949 = vmul.f32 1.0, %v948
        %v950 = vrcp.pop %v881
        %v951 = vmul.f32 1.0, %v950
        %v952 = vrcp.pop %v882
        %v953 = vmul.f32 1.0, %v952
        %v954 = vrcp.pop %v883
        %v955 = vmul.f32 1.0, %v954
        %v956 = vrcp.pop %v884
        %v957 = vmul.f32 1.0, %v956
        %v958 = vrcp.pop %v885
        %v959 = vmul.f32 1.0, %v958
        %v960 = vrcp.pop %v886
        %v961 = vmul.f32 1.0, %v960
        %v962 = vrcp.pop %v887
        %v963 = vmul.f32 1.0, %v962
        %v964 = vrcp.pop %v888
        %v965 = vmul.f32 1.0, %v964
        %v966 = vrcp.pop %v889
        %v967 = vmul.f32 1.0, %v966
        %v968 = vrcp.pop %v890
        %v969 = vmul.f32 1.0, %v968
        %v970 = vrcp.pop %v891
        %v971 = vmul.f32 1.0, %v970
        %v972 = vrcp.pop %v892
        %v973 = vmul.f32 1.0, %v972
        %v974 = vrcp.pop %v893
        %v975 = vmul.f32 1.0, %v974
        %v976 = vrcp.pop %v894
        %v977 = vmul.f32 1.0, %v976
        %v978 = vrcp.pop %v895
        %v979 = vmul.f32 1.0, %v978
        %v980 = vrcp.pop %v896
        %v981 = vmul.f32 1.0, %v980
        %v982 = vrcp.pop %v897
        %v983 = vmul.f32 1.0, %v982
        %v984 = vrcp.pop %v898
        %v985 = vmul.f32 1.0, %v984
        %v986 = vrcp.pop %v899
        %v987 = vmul.f32 1.0, %v986
        %v988 = vrcp.pop %v900
        %v989 = vmul.f32 1.0, %v988
        %v990 = vrcp.pop %v901
        %v991 = vmul.f32 1.0, %v990
        %v992 = vrcp.pop %v902
        %v993 = vmul.f32 1.0, %v992
        %v994 = vrcp.pop %v903
        %v995 = vmul.f32 1.0, %v994
        %v996 = vrcp.pop %v904
        %v997 = vmul.f32 1.0, %v996
        %v998 = vrcp.pop %v905
        %v999 = vmul.f32 1.0, %v998
        %v1000 = vrcp.pop %v906
        %v1001 = vmul.f32 1.0, %v1000
        %v1002 = vrcp.pop %v907
        %v1003 = vmul.f32 1.0, %v1002
        %v1004 = vrcp.pop %v908
        %v1005 = vmul.f32 1.0, %v1004
        %v1006 = vrcp.pop %v909
        %v1007 = vmul.f32 1.0, %v1006
        %v1008 = vrcp.pop %v910
        %v1009 = vmul.f32 1.0, %v1008
        %v1010 = vrcp.pop %v911
        %v1011 = vmul.f32 1.0, %v1010
        %v1012 = vrcp.pop %v912
        %v1013 = vmul.f32 1.0, %v1012
        %v1014 = vrcp.pop %v913
        %v1015 = vmul.f32 1.0, %v1014
        %v1016 = vrcp.pop %v914
        %v1017 = vmul.f32 1.0, %v1016
        %v1018 = vrcp.pop %v915
        %v1019 = vmul.f32 1.0, %v1018
        %v1020 = vrcp.pop %v916
        %v1021 = vmul.f32 1.0, %v1020
        %v1022 = vrcp.pop %v917
        %v1023 = vmul.f32 1.0, %v1022
        %v1024 = vrcp.pop %v918
        %v1025 = vmul.f32 1.0, %v1024
        %v1026 = vrcp.pop %v919
        %v1027 = vmul.f32 1.0, %v1026
        %v1028 = vrcp.pop %v920
        %v1029 = vmul.f32 1.0, %v1028
        %v1030 = vrcp.pop %v921
        %v1031 = vmul.f32 1.0, %v1030
        %v1032 = vrcp.pop %v922
        %v1033 = vmul.f32 1.0, %v1032
        %v1034 = vrcp.pop %v923
        %v1035 = vmul.f32 1.0, %v1034
        %v1036 = vrcp.pop %v924
        %v1037 = vmul.f32 1.0, %v1036
        %v1038 = vrcp.pop %v925
        %v1039 = vmul.f32 1.0, %v1038
        %v1040 = vrcp.pop %v926
        %v1041 = vmul.f32 1.0, %v1040
        %v1042 = vrcp.pop %v927
        %v1043 = vmul.f32 1.0, %v1042
        %v1044 = vrcp.pop %v928
        %v1045 = vmul.f32 1.0, %v1044
        %v1046 = vrcp.pop %v929
        %v1047 = vmul.f32 1.0, %v1046
        %v1048 = vrcp.pop %v930
        %v1049 = vmul.f32 1.0, %v1048
        %v1050 = vrcp.pop %v931
        %v1051 = vmul.f32 1.0, %v1050
        %v1052 = vrcp.pop %v932
        %v1053 = vmul.f32 1.0, %v1052
        %v1054 = vrcp.pop %v933
        %v1055 = vmul.f32 1.0, %v1054
        %v1056 = vrcp.pop %v934
        %v1057 = vmul.f32 1.0, %v1056
        %v1058 = vrcp.pop %v935
        %v1059 = vmul.f32 1.0, %v1058
        %v1060 = vrcp.pop %v936
        %v1061 = vmul.f32 1.0, %v1060
        %v1062 = vrcp.pop %v937
        %v1063 = vmul.f32 1.0, %v1062
        %v1064 = vrcp.pop %v938
        %v1065 = vmul.f32 1.0, %v1064
        %v1066 = vrcp.pop %v939
        %v1067 = vmul.f32 1.0, %v1066
        %v1068 = vmul.f32 %v941, 1.0614054
        %v1069 = vmul.f32 %v943, 1.0614054
        %v1070 = vmul.f32 %v945, 1.0614054
        %v1071 = vmul.f32 %v947, 1.0614054
        %v1072 = vmul.f32 %v949, 1.0614054
        %v1073 = vmul.f32 %v951, 1.0614054
        %v1074 = vmul.f32 %v953, 1.0614054
        %v1075 = vmul.f32 %v955, 1.0614054
        %v1076 = vmul.f32 %v957, 1.0614054
        %v1077 = vmul.f32 %v959, 1.0614054
        %v1078 = vmul.f32 %v961, 1.0614054
        %v1079 = vmul.f32 %v963, 1.0614054
        %v1080 = vmul.f32 %v965, 1.0614054
        %v1081 = vmul.f32 %v967, 1.0614054
        %v1082 = vmul.f32 %v969, 1.0614054
        %v1083 = vmul.f32 %v971, 1.0614054
        %v1084 = vmul.f32 %v973, 1.0614054
        %v1085 = vmul.f32 %v975, 1.0614054
        %v1086 = vmul.f32 %v977, 1.0614054
        %v1087 = vmul.f32 %v979, 1.0614054
        %v1088 = vmul.f32 %v981, 1.0614054
        %v1089 = vmul.f32 %v983, 1.0614054
        %v1090 = vmul.f32 %v985, 1.0614054
        %v1091 = vmul.f32 %v987, 1.0614054
        %v1092 = vmul.f32 %v989, 1.0614054
        %v1093 = vmul.f32 %v991, 1.0614054
        %v1094 = vmul.f32 %v993, 1.0614054
        %v1095 = vmul.f32 %v995, 1.0614054
        %v1096 = vmul.f32 %v997, 1.0614054
        %v1097 = vmul.f32 %v999, 1.0614054
        %v1098 = vmul.f32 %v1001, 1.0614054
        %v1099 = vmul.f32 %v1003, 1.0614054
        %v1100 = vmul.f32 %v1005, 1.0614054
        %v1101 = vmul.f32 %v1007, 1.0614054
        %v1102 = vmul.f32 %v1009, 1.0614054
        %v1103 = vmul.f32 %v1011, 1.0614054
        %v1104 = vmul.f32 %v1013, 1.0614054
        %v1105 = vmul.f32 %v1015, 1.0614054
        %v1106 = vmul.f32 %v1017, 1.0614054
        %v1107 = vmul.f32 %v1019, 1.0614054
        %v1108 = vmul.f32 %v1021, 1.0614054
        %v1109 = vmul.f32 %v1023, 1.0614054
        %v1110 = vmul.f32 %v1025, 1.0614054
        %v1111 = vmul.f32 %v1027, 1.0614054
        %v1112 = vmul.f32 %v1029, 1.0614054
        %v1113 = vmul.f32 %v1031, 1.0614054
        %v1114 = vmul.f32 %v1033, 1.0614054
        %v1115 = vmul.f32 %v1035, 1.0614054
        %v1116 = vmul.f32 %v1037, 1.0614054
        %v1117 = vmul.f32 %v1039, 1.0614054
        %v1118 = vmul.f32 %v1041, 1.0614054
        %v1119 = vmul.f32 %v1043, 1.0614054
        %v1120 = vmul.f32 %v1045, 1.0614054
        %v1121 = vmul.f32 %v1047, 1.0614054
        %v1122 = vmul.f32 %v1049, 1.0614054
        %v1123 = vmul.f32 %v1051, 1.0614054
        %v1124 = vmul.f32 %v1053, 1.0614054
        %v1125 = vmul.f32 %v1055, 1.0614054
        %v1126 = vmul.f32 %v1057, 1.0614054
        %v1127 = vmul.f32 %v1059, 1.0614054
        %v1128 = vmul.f32 %v1061, 1.0614054
        %v1129 = vmul.f32 %v1063, 1.0614054
        %v1130 = vmul.f32 %v1065, 1.0614054
        %v1131 = vmul.f32 %v1067, 1.0614054
        %v1132 = vadd.f32 %v1068, -1.4531521
        %v1133 = vadd.f32 %v1069, -1.4531521
        %v1134 = vadd.f32 %v1070, -1.4531521
        %v1135 = vadd.f32 %v1071, -1.4531521
        %v1136 = vadd.f32 %v1072, -1.4531521
        %v1137 = vadd.f32 %v1073, -1.4531521
        %v1138 = vadd.f32 %v1074, -1.4531521
        %v1139 = vadd.f32 %v1075, -1.4531521
        %v1140 = vadd.f32 %v1076, -1.4531521
        %v1141 = vadd.f32 %v1077, -1.4531521
        %v1142 = vadd.f32 %v1078, -1.4531521
        %v1143 = vadd.f32 %v1079, -1.4531521
        %v1144 = vadd.f32 %v1080, -1.4531521
        %v1145 = vadd.f32 %v1081, -1.4531521
        %v1146 = vadd.f32 %v1082, -1.4531521
        %v1147 = vadd.f32 %v1083, -1.4531521
        %v1148 = vadd.f32 %v1084, -1.4531521
        %v1149 = vadd.f32 %v1085, -1.4531521
        %v1150 = vadd.f32 %v1086, -1.4531521
        %v1151 = vadd.f32 %v1087, -1.4531521
        %v1152 = vadd.f32 %v1088, -1.4531521
        %v1153 = vadd.f32 %v1089, -1.4531521
        %v1154 = vadd.f32 %v1090, -1.4531521
        %v1155 = vadd.f32 %v1091, -1.4531521
        %v1156 = vadd.f32 %v1092, -1.4531521
        %v1157 = vadd.f32 %v1093, -1.4531521
        %v1158 = vadd.f32 %v1094, -1.4531521
        %v1159 = vadd.f32 %v1095, -1.4531521
        %v1160 = vadd.f32 %v1096, -1.4531521
        %v1161 = vadd.f32 %v1097, -1.4531521
        %v1162 = vadd.f32 %v1098, -1.4531521
        %v1163 = vadd.f32 %v1099, -1.4531521
        %v1164 = vadd.f32 %v1100, -1.4531521
        %v1165 = vadd.f32 %v1101, -1.4531521
        %v1166 = vadd.f32 %v1102, -1.4531521
        %v1167 = vadd.f32 %v1103, -1.4531521
        %v1168 = vadd.f32 %v1104, -1.4531521
        %v1169 = vadd.f32 %v1105, -1.4531521
        %v1170 = vadd.f32 %v1106, -1.4531521
        %v1171 = vadd.f32 %v1107, -1.4531521
        %v1172 = vadd.f32 %v1108, -1.4531521
        %v1173 = vadd.f32 %v1109, -1.4531521
        %v1174 = vadd.f32 %v1110, -1.4531521
        %v1175 = vadd.f32 %v1111, -1.4531521
        %v1176 = vadd.f32 %v1112, -1.4531521
        %v1177 = vadd.f32 %v1113, -1.4531521
        %v1178 = vadd.f32 %v1114, -1.4531521
        %v1179 = vadd.f32 %v1115, -1.4531521
        %v1180 = vadd.f32 %v1116, -1.4531521
        %v1181 = vadd.f32 %v1117, -1.4531521
        %v1182 = vadd.f32 %v1118, -1.4531521
        %v1183 = vadd.f32 %v1119, -1.4531521
        %v1184 = vadd.f32 %v1120, -1.4531521
        %v1185 = vadd.f32 %v1121, -1.4531521
        %v1186 = vadd.f32 %v1122, -1.4531521
        %v1187 = vadd.f32 %v1123, -1.4531521
        %v1188 = vadd.f32 %v1124, -1.4531521
        %v1189 = vadd.f32 %v1125, -1.4531521
        %v1190 = vadd.f32 %v1126, -1.4531521
        %v1191 = vadd.f32 %v1127, -1.4531521
        %v1192 = vadd.f32 %v1128, -1.4531521
        %v1193 = vadd.f32 %v1129, -1.4531521
        %v1194 = vadd.f32 %v1130, -1.4531521
        %v1195 = vadd.f32 %v1131, -1.4531521
        %v1196 = vmul.f32 %v941, %v1132
        %v1197 = vmul.f32 %v943, %v1133
        %v1198 = vmul.f32 %v945, %v1134
        %v1199 = vmul.f32 %v947, %v1135
        %v1200 = vmul.f32 %v949, %v1136
        %v1201 = vmul.f32 %v951, %v1137
        %v1202 = vmul.f32 %v953, %v1138
        %v1203 = vmul.f32 %v955, %v1139
        %v1204 = vmul.f32 %v957, %v1140
        %v1205 = vmul.f32 %v959, %v1141
        %v1206 = vmul.f32 %v961, %v1142
        %v1207 = vmul.f32 %v963, %v1143
        %v1208 = vmul.f32 %v965, %v1144
        %v1209 = vmul.f32 %v967, %v1145
        %v1210 = vmul.f32 %v969, %v1146
        %v1211 = vmul.f32 %v971, %v1147
        %v1212 = vmul.f32 %v973, %v1148
        %v1213 = vmul.f32 %v975, %v1149
        %v1214 = vmul.f32 %v977, %v1150
        %v1215 = vmul.f32 %v979, %v1151
        %v1216 = vmul.f32 %v981, %v1152
        %v1217 = vmul.f32 %v983, %v1153
        %v1218 = vmul.f32 %v985, %v1154
        %v1219 = vmul.f32 %v987, %v1155
        %v1220 = vmul.f32 %v989, %v1156
        %v1221 = vmul.f32 %v991, %v1157
        %v1222 = vmul.f32 %v993, %v1158
        %v1223 = vmul.f32 %v995, %v1159
        %v1224 = vmul.f32 %v997, %v1160
        %v1225 = vmul.f32 %v999, %v1161
        %v1226 = vmul.f32 %v1001, %v1162
        %v1227 = vmul.f32 %v1003, %v1163
        %v1228 = vmul.f32 %v1005, %v1164
        %v1229 = vmul.f32 %v1007, %v1165
        %v1230 = vmul.f32 %v1009, %v1166
        %v1231 = vmul.f32 %v1011, %v1167
        %v1232 = vmul.f32 %v1013, %v1168
        %v1233 = vmul.f32 %v1015, %v1169
        %v1234 = vmul.f32 %v1017, %v1170
        %v1235 = vmul.f32 %v1019, %v1171
        %v1236 = vmul.f32 %v1021, %v1172
        %v1237 = vmul.f32 %v1023, %v1173
        %v1238 = vmul.f32 %v1025, %v1174
        %v1239 = vmul.f32 %v1027, %v1175
        %v1240 = vmul.f32 %v1029, %v1176
        %v1241 = vmul.f32 %v1031, %v1177
        %v1242 = vmul.f32 %v1033, %v1178
        %v1243 = vmul.f32 %v1035, %v1179
        %v1244 = vmul.f32 %v1037, %v1180
        %v1245 = vmul.f32 %v1039, %v1181
        %v1246 = vmul.f32 %v1041, %v1182
        %v1247 = vmul.f32 %v1043, %v1183
        %v1248 = vmul.f32 %v1045, %v1184
        %v1249 = vmul.f32 %v1047, %v1185
        %v1250 = vmul.f32 %v1049, %v1186
        %v1251 = vmul.f32 %v1051, %v1187
        %v1252 = vmul.f32 %v1053, %v1188
        %v1253 = vmul.f32 %v1055, %v1189
        %v1254 = vmul.f32 %v1057, %v1190
        %v1255 = vmul.f32 %v1059, %v1191
        %v1256 = vmul.f32 %v1061, %v1192
        %v1257 = vmul.f32 %v1063, %v1193
        %v1258 = vmul.f32 %v1065, %v1194
        %v1259 = vmul.f32 %v1067, %v1195
        %v1260 = vadd.f32 %v1196, 1.4214138
        %v1261 = vadd.f32 %v1197, 1.4214138
        %v1262 = vadd.f32 %v1198, 1.4214138
        %v1263 = vadd.f32 %v1199, 1.4214138
        %v1264 = vadd.f32 %v1200, 1.4214138
        %v1265 = vadd.f32 %v1201, 1.4214138
        %v1266 = vadd.f32 %v1202, 1.4214138
        %v1267 = vadd.f32 %v1203, 1.4214138
        %v1268 = vadd.f32 %v1204, 1.4214138
        %v1269 = vadd.f32 %v1205, 1.4214138
        %v1270 = vadd.f32 %v1206, 1.4214138
        %v1271 = vadd.f32 %v1207, 1.4214138
        %v1272 = vadd.f32 %v1208, 1.4214138
        %v1273 = vadd.f32 %v1209, 1.4214138
        %v1274 = vadd.f32 %v1210, 1.4214138
        %v1275 = vadd.f32 %v1211, 1.4214138
        %v1276 = vadd.f32 %v1212, 1.4214138
        %v1277 = vadd.f32 %v1213, 1.4214138
        %v1278 = vadd.f32 %v1214, 1.4214138
        %v1279 = vadd.f32 %v1215, 1.4214138
        %v1280 = vadd.f32 %v1216, 1.4214138
        %v1281 = vadd.f32 %v1217, 1.4214138
        %v1282 = vadd.f32 %v1218, 1.4214138
        %v1283 = vadd.f32 %v1219, 1.4214138
        %v1284 = vadd.f32 %v1220, 1.4214138
        %v1285 = vadd.f32 %v1221, 1.4214138
        %v1286 = vadd.f32 %v1222, 1.4214138
        %v1287 = vadd.f32 %v1223, 1.4214138
        %v1288 = vadd.f32 %v1224, 1.4214138
        %v1289 = vadd.f32 %v1225, 1.4214138
        %v1290 = vadd.f32 %v1226, 1.4214138
        %v1291 = vadd.f32 %v1227, 1.4214138
        %v1292 = vadd.f32 %v1228, 1.4214138
        %v1293 = vadd.f32 %v1229, 1.4214138
        %v1294 = vadd.f32 %v1230, 1.4214138
        %v1295 = vadd.f32 %v1231, 1.4214138
        %v1296 = vadd.f32 %v1232, 1.4214138
        %v1297 = vadd.f32 %v1233, 1.4214138
        %v1298 = vadd.f32 %v1234, 1.4214138
        %v1299 = vadd.f32 %v1235, 1.4214138
        %v1300 = vadd.f32 %v1236, 1.4214138
        %v1301 = vadd.f32 %v1237, 1.4214138
        %v1302 = vadd.f32 %v1238, 1.4214138
        %v1303 = vadd.f32 %v1239, 1.4214138
        %v1304 = vadd.f32 %v1240, 1.4214138
        %v1305 = vadd.f32 %v1241, 1.4214138
        %v1306 = vadd.f32 %v1242, 1.4214138
        %v1307 = vadd.f32 %v1243, 1.4214138
        %v1308 = vadd.f32 %v1244, 1.4214138
        %v1309 = vadd.f32 %v1245, 1.4214138
        %v1310 = vadd.f32 %v1246, 1.4214138
        %v1311 = vadd.f32 %v1247, 1.4214138
        %v1312 = vadd.f32 %v1248, 1.4214138
        %v1313 = vadd.f32 %v1249, 1.4214138
        %v1314 = vadd.f32 %v1250, 1.4214138
        %v1315 = vadd.f32 %v1251, 1.4214138
        %v1316 = vadd.f32 %v1252, 1.4214138
        %v1317 = vadd.f32 %v1253, 1.4214138
        %v1318 = vadd.f32 %v1254, 1.4214138
        %v1319 = vadd.f32 %v1255, 1.4214138
        %v1320 = vadd.f32 %v1256, 1.4214138
        %v1321 = vadd.f32 %v1257, 1.4214138
        %v1322 = vadd.f32 %v1258, 1.4214138
        %v1323 = vadd.f32 %v1259, 1.4214138
        %v1324 = vmul.f32 %v941, %v1260
        %v1325 = vmul.f32 %v943, %v1261
        %v1326 = vmul.f32 %v945, %v1262
        %v1327 = vmul.f32 %v947, %v1263
        %v1328 = vmul.f32 %v949, %v1264
        %v1329 = vmul.f32 %v951, %v1265
        %v1330 = vmul.f32 %v953, %v1266
        %v1331 = vmul.f32 %v955, %v1267
        %v1332 = vmul.f32 %v957, %v1268
        %v1333 = vmul.f32 %v959, %v1269
        %v1334 = vmul.f32 %v961, %v1270
        %v1335 = vmul.f32 %v963, %v1271
        %v1336 = vmul.f32 %v965, %v1272
        %v1337 = vmul.f32 %v967, %v1273
        %v1338 = vmul.f32 %v969, %v1274
        %v1339 = vmul.f32 %v971, %v1275
        %v1340 = vmul.f32 %v973, %v1276
        %v1341 = vmul.f32 %v975, %v1277
        %v1342 = vmul.f32 %v977, %v1278
        %v1343 = vmul.f32 %v979, %v1279
        %v1344 = vmul.f32 %v981, %v1280
        %v1345 = vmul.f32 %v983, %v1281
        %v1346 = vmul.f32 %v985, %v1282
        %v1347 = vmul.f32 %v987, %v1283
        %v1348 = vmul.f32 %v989, %v1284
        %v1349 = vmul.f32 %v991, %v1285
        %v1350 = vmul.f32 %v993, %v1286
        %v1351 = vmul.f32 %v995, %v1287
        %v1352 = vmul.f32 %v997, %v1288
        %v1353 = vmul.f32 %v999, %v1289
        %v1354 = vmul.f32 %v1001, %v1290
        %v1355 = vmul.f32 %v1003, %v1291
        %v1356 = vmul.f32 %v1005, %v1292
        %v1357 = vmul.f32 %v1007, %v1293
        %v1358 = vmul.f32 %v1009, %v1294
        %v1359 = vmul.f32 %v1011, %v1295
        %v1360 = vmul.f32 %v1013, %v1296
        %v1361 = vmul.f32 %v1015, %v1297
        %v1362 = vmul.f32 %v1017, %v1298
        %v1363 = vmul.f32 %v1019, %v1299
        %v1364 = vmul.f32 %v1021, %v1300
        %v1365 = vmul.f32 %v1023, %v1301
        %v1366 = vmul.f32 %v1025, %v1302
        %v1367 = vmul.f32 %v1027, %v1303
        %v1368 = vmul.f32 %v1029, %v1304
        %v1369 = vmul.f32 %v1031, %v1305
        %v1370 = vmul.f32 %v1033, %v1306
        %v1371 = vmul.f32 %v1035, %v1307
        %v1372 = vmul.f32 %v1037, %v1308
        %v1373 = vmul.f32 %v1039, %v1309
        %v1374 = vmul.f32 %v1041, %v1310
        %v1375 = vmul.f32 %v1043, %v1311
        %v1376 = vmul.f32 %v1045, %v1312
        %v1377 = vmul.f32 %v1047, %v1313
        %v1378 = vmul.f32 %v1049, %v1314
        %v1379 = vmul.f32 %v1051, %v1315
        %v1380 = vmul.f32 %v1053, %v1316
        %v1381 = vmul.f32 %v1055, %v1317
        %v1382 = vmul.f32 %v1057, %v1318
        %v1383 = vmul.f32 %v1059, %v1319
        %v1384 = vmul.f32 %v1061, %v1320
        %v1385 = vmul.f32 %v1063, %v1321
        %v1386 = vmul.f32 %v1065, %v1322
        %v1387 = vmul.f32 %v1067, %v1323
        %v1388 = vadd.f32 %v1324, -0.28449672
        %v1389 = vadd.f32 %v1325, -0.28449672
        %v1390 = vadd.f32 %v1326, -0.28449672
        %v1391 = vadd.f32 %v1327, -0.28449672
        %v1392 = vadd.f32 %v1328, -0.28449672
        %v1393 = vadd.f32 %v1329, -0.28449672
        %v1394 = vadd.f32 %v1330, -0.28449672
        %v1395 = vadd.f32 %v1331, -0.28449672
        %v1396 = vadd.f32 %v1332, -0.28449672
        %v1397 = vadd.f32 %v1333, -0.28449672
        %v1398 = vadd.f32 %v1334, -0.28449672
        %v1399 = vadd.f32 %v1335, -0.28449672
        %v1400 = vadd.f32 %v1336, -0.28449672
        %v1401 = vadd.f32 %v1337, -0.28449672
        %v1402 = vadd.f32 %v1338, -0.28449672
        %v1403 = vadd.f32 %v1339, -0.28449672
        %v1404 = vadd.f32 %v1340, -0.28449672
        %v1405 = vadd.f32 %v1341, -0.28449672
        %v1406 = vadd.f32 %v1342, -0.28449672
        %v1407 = vadd.f32 %v1343, -0.28449672
        %v1408 = vadd.f32 %v1344, -0.28449672
        %v1409 = vadd.f32 %v1345, -0.28449672
        %v1410 = vadd.f32 %v1346, -0.28449672
        %v1411 = vadd.f32 %v1347, -0.28449672
        %v1412 = vadd.f32 %v1348, -0.28449672
        %v1413 = vadd.f32 %v1349, -0.28449672
        %v1414 = vadd.f32 %v1350, -0.28449672
        %v1415 = vadd.f32 %v1351, -0.28449672
        %v1416 = vadd.f32 %v1352, -0.28449672
        %v1417 = vadd.f32 %v1353, -0.28449672
        %v1418 = vadd.f32 %v1354, -0.28449672
        %v1419 = vadd.f32 %v1355, -0.28449672
        %v1420 = vadd.f32 %v1356, -0.28449672
        %v1421 = vadd.f32 %v1357, -0.28449672
        %v1422 = vadd.f32 %v1358, -0.28449672
        %v1423 = vadd.f32 %v1359, -0.28449672
        %v1424 = vadd.f32 %v1360, -0.28449672
        %v1425 = vadd.f32 %v1361, -0.28449672
        %v1426 = vadd.f32 %v1362, -0.28449672
        %v1427 = vadd.f32 %v1363, -0.28449672
        %v1428 = vadd.f32 %v1364, -0.28449672
        %v1429 = vadd.f32 %v1365, -0.28449672
        %v1430 = vadd.f32 %v1366, -0.28449672
        %v1431 = vadd.f32 %v1367, -0.28449672
        %v1432 = vadd.f32 %v1368, -0.28449672
        %v1433 = vadd.f32 %v1369, -0.28449672
        %v1434 = vadd.f32 %v1370, -0.28449672
        %v1435 = vadd.f32 %v1371, -0.28449672
        %v1436 = vadd.f32 %v1372, -0.28449672
        %v1437 = vadd.f32 %v1373, -0.28449672
        %v1438 = vadd.f32 %v1374, -0.28449672
        %v1439 = vadd.f32 %v1375, -0.28449672
        %v1440 = vadd.f32 %v1376, -0.28449672
        %v1441 = vadd.f32 %v1377, -0.28449672
        %v1442 = vadd.f32 %v1378, -0.28449672
        %v1443 = vadd.f32 %v1379, -0.28449672
        %v1444 = vadd.f32 %v1380, -0.28449672
        %v1445 = vadd.f32 %v1381, -0.28449672
        %v1446 = vadd.f32 %v1382, -0.28449672
        %v1447 = vadd.f32 %v1383, -0.28449672
        %v1448 = vadd.f32 %v1384, -0.28449672
        %v1449 = vadd.f32 %v1385, -0.28449672
        %v1450 = vadd.f32 %v1386, -0.28449672
        %v1451 = vadd.f32 %v1387, -0.28449672
        %v1452 = vmul.f32 %v941, %v1388
        %v1453 = vmul.f32 %v943, %v1389
        %v1454 = vmul.f32 %v945, %v1390
        %v1455 = vmul.f32 %v947, %v1391
        %v1456 = vmul.f32 %v949, %v1392
        %v1457 = vmul.f32 %v951, %v1393
        %v1458 = vmul.f32 %v953, %v1394
        %v1459 = vmul.f32 %v955, %v1395
        %v1460 = vmul.f32 %v957, %v1396
        %v1461 = vmul.f32 %v959, %v1397
        %v1462 = vmul.f32 %v961, %v1398
        %v1463 = vmul.f32 %v963, %v1399
        %v1464 = vmul.f32 %v965, %v1400
        %v1465 = vmul.f32 %v967, %v1401
        %v1466 = vmul.f32 %v969, %v1402
        %v1467 = vmul.f32 %v971, %v1403
        %v1468 = vmul.f32 %v973, %v1404
        %v1469 = vmul.f32 %v975, %v1405
        %v1470 = vmul.f32 %v977, %v1406
        %v1471 = vmul.f32 %v979, %v1407
        %v1472 = vmul.f32 %v981, %v1408
        %v1473 = vmul.f32 %v983, %v1409
        %v1474 = vmul.f32 %v985, %v1410
        %v1475 = vmul.f32 %v987, %v1411
        %v1476 = vmul.f32 %v989, %v1412
        %v1477 = vmul.f32 %v991, %v1413
        %v1478 = vmul.f32 %v993, %v1414
        %v1479 = vmul.f32 %v995, %v1415
        %v1480 = vmul.f32 %v997, %v1416
        %v1481 = vmul.f32 %v999, %v1417
        %v1482 = vmul.f32 %v1001, %v1418
        %v1483 = vmul.f32 %v1003, %v1419
        %v1484 = vmul.f32 %v1005, %v1420
        %v1485 = vmul.f32 %v1007, %v1421
        %v1486 = vmul.f32 %v1009, %v1422
        %v1487 = vmul.f32 %v1011, %v1423
        %v1488 = vmul.f32 %v1013, %v1424
        %v1489 = vmul.f32 %v1015, %v1425
        %v1490 = vmul.f32 %v1017, %v1426
        %v1491 = vmul.f32 %v1019, %v1427
        %v1492 = vmul.f32 %v1021, %v1428
        %v1493 = vmul.f32 %v1023, %v1429
        %v1494 = vmul.f32 %v1025, %v1430
        %v1495 = vmul.f32 %v1027, %v1431
        %v1496 = vmul.f32 %v1029, %v1432
        %v1497 = vmul.f32 %v1031, %v1433
        %v1498 = vmul.f32 %v1033, %v1434
        %v1499 = vmul.f32 %v1035, %v1435
        %v1500 = vmul.f32 %v1037, %v1436
        %v1501 = vmul.f32 %v1039, %v1437
        %v1502 = vmul.f32 %v1041, %v1438
        %v1503 = vmul.f32 %v1043, %v1439
        %v1504 = vmul.f32 %v1045, %v1440
        %v1505 = vmul.f32 %v1047, %v1441
        %v1506 = vmul.f32 %v1049, %v1442
        %v1507 = vmul.f32 %v1051, %v1443
        %v1508 = vmul.f32 %v1053, %v1444
        %v1509 = vmul.f32 %v1055, %v1445
        %v1510 = vmul.f32 %v1057, %v1446
        %v1511 = vmul.f32 %v1059, %v1447
        %v1512 = vmul.f32 %v1061, %v1448
        %v1513 = vmul.f32 %v1063, %v1449
        %v1514 = vmul.f32 %v1065, %v1450
        %v1515 = vmul.f32 %v1067, %v1451
        %v1516 = vadd.f32 %v1452, 0.2548296
        %v1517 = vadd.f32 %v1453, 0.2548296
        %v1518 = vadd.f32 %v1454, 0.2548296
        %v1519 = vadd.f32 %v1455, 0.2548296
        %v1520 = vadd.f32 %v1456, 0.2548296
        %v1521 = vadd.f32 %v1457, 0.2548296
        %v1522 = vadd.f32 %v1458, 0.2548296
        %v1523 = vadd.f32 %v1459, 0.2548296
        %v1524 = vadd.f32 %v1460, 0.2548296
        %v1525 = vadd.f32 %v1461, 0.2548296
        %v1526 = vadd.f32 %v1462, 0.2548296
        %v1527 = vadd.f32 %v1463, 0.2548296
        %v1528 = vadd.f32 %v1464, 0.2548296
        %v1529 = vadd.f32 %v1465, 0.2548296
        %v1530 = vadd.f32 %v1466, 0.2548296
        %v1531 = vadd.f32 %v1467, 0.2548296
        %v1532 = vadd.f32 %v1468, 0.2548296
        %v1533 = vadd.f32 %v1469, 0.2548296
        %v1534 = vadd.f32 %v1470, 0.2548296
        %v1535 = vadd.f32 %v1471, 0.2548296
        %v1536 = vadd.f32 %v1472, 0.2548296
        %v1537 = vadd.f32 %v1473, 0.2548296
        %v1538 = vadd.f32 %v1474, 0.2548296
        %v1539 = vadd.f32 %v1475, 0.2548296
        %v1540 = vadd.f32 %v1476, 0.2548296
        %v1541 = vadd.f32 %v1477, 0.2548296
        %v1542 = vadd.f32 %v1478, 0.2548296
        %v1543 = vadd.f32 %v1479, 0.2548296
        %v1544 = vadd.f32 %v1480, 0.2548296
        %v1545 = vadd.f32 %v1481, 0.2548296
        %v1546 = vadd.f32 %v1482, 0.2548296
        %v1547 = vadd.f32 %v1483, 0.2548296
        %v1548 = vadd.f32 %v1484, 0.2548296
        %v1549 = vadd.f32 %v1485, 0.2548296
        %v1550 = vadd.f32 %v1486, 0.2548296
        %v1551 = vadd.f32 %v1487, 0.2548296
        %v1552 = vadd.f32 %v1488, 0.2548296
        %v1553 = vadd.f32 %v1489, 0.2548296
        %v1554 = vadd.f32 %v1490, 0.2548296
        %v1555 = vadd.f32 %v1491, 0.2548296
        %v1556 = vadd.f32 %v1492, 0.2548296
        %v1557 = vadd.f32 %v1493, 0.2548296
        %v1558 = vadd.f32 %v1494, 0.2548296
        %v1559 = vadd.f32 %v1495, 0.2548296
        %v1560 = vadd.f32 %v1496, 0.2548296
        %v1561 = vadd.f32 %v1497, 0.2548296
        %v1562 = vadd.f32 %v1498, 0.2548296
        %v1563 = vadd.f32 %v1499, 0.2548296
        %v1564 = vadd.f32 %v1500, 0.2548296
        %v1565 = vadd.f32 %v1501, 0.2548296
        %v1566 = vadd.f32 %v1502, 0.2548296
        %v1567 = vadd.f32 %v1503, 0.2548296
        %v1568 = vadd.f32 %v1504, 0.2548296
        %v1569 = vadd.f32 %v1505, 0.2548296
        %v1570 = vadd.f32 %v1506, 0.2548296
        %v1571 = vadd.f32 %v1507, 0.2548296
        %v1572 = vadd.f32 %v1508, 0.2548296
        %v1573 = vadd.f32 %v1509, 0.2548296
        %v1574 = vadd.f32 %v1510, 0.2548296
        %v1575 = vadd.f32 %v1511, 0.2548296
        %v1576 = vadd.f32 %v1512, 0.2548296
        %v1577 = vadd.f32 %v1513, 0.2548296
        %v1578 = vadd.f32 %v1514, 0.2548296
        %v1579 = vadd.f32 %v1515, 0.2548296
        %v1580 = vmul.f32 %v941, %v1516
        %v1581 = vmul.f32 %v943, %v1517
        %v1582 = vmul.f32 %v945, %v1518
        %v1583 = vmul.f32 %v947, %v1519
        %v1584 = vmul.f32 %v949, %v1520
        %v1585 = vmul.f32 %v951, %v1521
        %v1586 = vmul.f32 %v953, %v1522
        %v1587 = vmul.f32 %v955, %v1523
        %v1588 = vmul.f32 %v957, %v1524
        %v1589 = vmul.f32 %v959, %v1525
        %v1590 = vmul.f32 %v961, %v1526
        %v1591 = vmul.f32 %v963, %v1527
        %v1592 = vmul.f32 %v965, %v1528
        %v1593 = vmul.f32 %v967, %v1529
        %v1594 = vmul.f32 %v969, %v1530
        %v1595 = vmul.f32 %v971, %v1531
        %v1596 = vmul.f32 %v973, %v1532
        %v1597 = vmul.f32 %v975, %v1533
        %v1598 = vmul.f32 %v977, %v1534
        %v1599 = vmul.f32 %v979, %v1535
        %v1600 = vmul.f32 %v981, %v1536
        %v1601 = vmul.f32 %v983, %v1537
        %v1602 = vmul.f32 %v985, %v1538
        %v1603 = vmul.f32 %v987, %v1539
        %v1604 = vmul.f32 %v989, %v1540
        %v1605 = vmul.f32 %v991, %v1541
        %v1606 = vmul.f32 %v993, %v1542
        %v1607 = vmul.f32 %v995, %v1543
        %v1608 = vmul.f32 %v997, %v1544
        %v1609 = vmul.f32 %v999, %v1545
        %v1610 = vmul.f32 %v1001, %v1546
        %v1611 = vmul.f32 %v1003, %v1547
        %v1612 = vmul.f32 %v1005, %v1548
        %v1613 = vmul.f32 %v1007, %v1549
        %v1614 = vmul.f32 %v1009, %v1550
        %v1615 = vmul.f32 %v1011, %v1551
        %v1616 = vmul.f32 %v1013, %v1552
        %v1617 = vmul.f32 %v1015, %v1553
        %v1618 = vmul.f32 %v1017, %v1554
        %v1619 = vmul.f32 %v1019, %v1555
        %v1620 = vmul.f32 %v1021, %v1556
        %v1621 = vmul.f32 %v1023, %v1557
        %v1622 = vmul.f32 %v1025, %v1558
        %v1623 = vmul.f32 %v1027, %v1559
        %v1624 = vmul.f32 %v1029, %v1560
        %v1625 = vmul.f32 %v1031, %v1561
        %v1626 = vmul.f32 %v1033, %v1562
        %v1627 = vmul.f32 %v1035, %v1563
        %v1628 = vmul.f32 %v1037, %v1564
        %v1629 = vmul.f32 %v1039, %v1565
        %v1630 = vmul.f32 %v1041, %v1566
        %v1631 = vmul.f32 %v1043, %v1567
        %v1632 = vmul.f32 %v1045, %v1568
        %v1633 = vmul.f32 %v1047, %v1569
        %v1634 = vmul.f32 %v1049, %v1570
        %v1635 = vmul.f32 %v1051, %v1571
        %v1636 = vmul.f32 %v1053, %v1572
        %v1637 = vmul.f32 %v1055, %v1573
        %v1638 = vmul.f32 %v1057, %v1574
        %v1639 = vmul.f32 %v1059, %v1575
        %v1640 = vmul.f32 %v1061, %v1576
        %v1641 = vmul.f32 %v1063, %v1577
        %v1642 = vmul.f32 %v1065, %v1578
        %v1643 = vmul.f32 %v1067, %v1579
        %v1644 = vsub.f32 0.0, %v748
        %v1645 = vsub.f32 0.0, %v749
        %v1646 = vsub.f32 0.0, %v750
        %v1647 = vsub.f32 0.0, %v751
        %v1648 = vsub.f32 0.0, %v752
        %v1649 = vsub.f32 0.0, %v753
        %v1650 = vsub.f32 0.0, %v754
        %v1651 = vsub.f32 0.0, %v755
        %v1652 = vsub.f32 0.0, %v756
        %v1653 = vsub.f32 0.0, %v757
        %v1654 = vsub.f32 0.0, %v758
        %v1655 = vsub.f32 0.0, %v759
        %v1656 = vsub.f32 0.0, %v760
        %v1657 = vsub.f32 0.0, %v761
        %v1658 = vsub.f32 0.0, %v762
        %v1659 = vsub.f32 0.0, %v763
        %v1660 = vsub.f32 0.0, %v764
        %v1661 = vsub.f32 0.0, %v765
        %v1662 = vsub.f32 0.0, %v766
        %v1663 = vsub.f32 0.0, %v767
        %v1664 = vsub.f32 0.0, %v768
        %v1665 = vsub.f32 0.0, %v769
        %v1666 = vsub.f32 0.0, %v770
        %v1667 = vsub.f32 0.0, %v771
        %v1668 = vsub.f32 0.0, %v772
        %v1669 = vsub.f32 0.0, %v773
        %v1670 = vsub.f32 0.0, %v774
        %v1671 = vsub.f32 0.0, %v775
        %v1672 = vsub.f32 0.0, %v776
        %v1673 = vsub.f32 0.0, %v777
        %v1674 = vsub.f32 0.0, %v778
        %v1675 = vsub.f32 0.0, %v779
        %v1676 = vsub.f32 0.0, %v780
        %v1677 = vsub.f32 0.0, %v781
        %v1678 = vsub.f32 0.0, %v782
        %v1679 = vsub.f32 0.0, %v783
        %v1680 = vsub.f32 0.0, %v784
        %v1681 = vsub.f32 0.0, %v785
        %v1682 = vsub.f32 0.0, %v786
        %v1683 = vsub.f32 0.0, %v787
        %v1684 = vsub.f32 0.0, %v788
        %v1685 = vsub.f32 0.0, %v789
        %v1686 = vsub.f32 0.0, %v790
        %v1687 = vsub.f32 0.0, %v791
        %v1688 = vsub.f32 0.0, %v792
        %v1689 = vsub.f32 0.0, %v793
        %v1690 = vsub.f32 0.0, %v794
        %v1691 = vsub.f32 0.0, %v795
        %v1692 = vsub.f32 0.0, %v796
        %v1693 = vsub.f32 0.0, %v797
        %v1694 = vsub.f32 0.0, %v798
        %v1695 = vsub.f32 0.0, %v799
        %v1696 = vsub.f32 0.0, %v800
        %v1697 = vsub.f32 0.0, %v801
        %v1698 = vsub.f32 0.0, %v802
        %v1699 = vsub.f32 0.0, %v803
        %v1700 = vsub.f32 0.0, %v804
        %v1701 = vsub.f32 0.0, %v805
        %v1702 = vsub.f32 0.0, %v806
        %v1703 = vsub.f32 0.0, %v807
        %v1704 = vsub.f32 0.0, %v808
        %v1705 = vsub.f32 0.0, %v809
        %v1706 = vsub.f32 0.0, %v810
        %v1707 = vsub.f32 0.0, %v811
        %v1708 = vmul.f32 %v1644, %v748
        %v1709 = vmul.f32 %v1645, %v749
        %v1710 = vmul.f32 %v1646, %v750
        %v1711 = vmul.f32 %v1647, %v751
        %v1712 = vmul.f32 %v1648, %v752
        %v1713 = vmul.f32 %v1649, %v753
        %v1714 = vmul.f32 %v1650, %v754
        %v1715 = vmul.f32 %v1651, %v755
        %v1716 = vmul.f32 %v1652, %v756
        %v1717 = vmul.f32 %v1653, %v757
        %v1718 = vmul.f32 %v1654, %v758
        %v1719 = vmul.f32 %v1655, %v759
        %v1720 = vmul.f32 %v1656, %v760
        %v1721 = vmul.f32 %v1657, %v761
        %v1722 = vmul.f32 %v1658, %v762
        %v1723 = vmul.f32 %v1659, %v763
        %v1724 = vmul.f32 %v1660, %v764
        %v1725 = vmul.f32 %v1661, %v765
        %v1726 = vmul.f32 %v1662, %v766
        %v1727 = vmul.f32 %v1663, %v767
        %v1728 = vmul.f32 %v1664, %v768
        %v1729 = vmul.f32 %v1665, %v769
        %v1730 = vmul.f32 %v1666, %v770
        %v1731 = vmul.f32 %v1667, %v771
        %v1732 = vmul.f32 %v1668, %v772
        %v1733 = vmul.f32 %v1669, %v773
        %v1734 = vmul.f32 %v1670, %v774
        %v1735 = vmul.f32 %v1671, %v775
        %v1736 = vmul.f32 %v1672, %v776
        %v1737 = vmul.f32 %v1673, %v777
        %v1738 = vmul.f32 %v1674, %v778
        %v1739 = vmul.f32 %v1675, %v779
        %v1740 = vmul.f32 %v1676, %v780
        %v1741 = vmul.f32 %v1677, %v781
        %v1742 = vmul.f32 %v1678, %v782
        %v1743 = vmul.f32 %v1679, %v783
        %v1744 = vmul.f32 %v1680, %v784
        %v1745 = vmul.f32 %v1681, %v785
        %v1746 = vmul.f32 %v1682, %v786
        %v1747 = vmul.f32 %v1683, %v787
        %v1748 = vmul.f32 %v1684, %v788
        %v1749 = vmul.f32 %v1685, %v789
        %v1750 = vmul.f32 %v1686, %v790
        %v1751 = vmul.f32 %v1687, %v791
        %v1752 = vmul.f32 %v1688, %v792
        %v1753 = vmul.f32 %v1689, %v793
        %v1754 = vmul.f32 %v1690, %v794
        %v1755 = vmul.f32 %v1691, %v795
        %v1756 = vmul.f32 %v1692, %v796
        %v1757 = vmul.f32 %v1693, %v797
        %v1758 = vmul.f32 %v1694, %v798
        %v1759 = vmul.f32 %v1695, %v799
        %v1760 = vmul.f32 %v1696, %v800
        %v1761 = vmul.f32 %v1697, %v801
        %v1762 = vmul.f32 %v1698, %v802
        %v1763 = vmul.f32 %v1699, %v803
        %v1764 = vmul.f32 %v1700, %v804
        %v1765 = vmul.f32 %v1701, %v805
        %v1766 = vmul.f32 %v1702, %v806
        %v1767 = vmul.f32 %v1703, %v807
        %v1768 = vmul.f32 %v1704, %v808
        %v1769 = vmul.f32 %v1705, %v809
        %v1770 = vmul.f32 %v1706, %v810
        %v1771 = vmul.f32 %v1707, %v811
        %v1772 = vmul.f32 %v1708, 1.442695
        %v1773 = vpow.pop %v1772
        %v1774 = vmul.f32 %v1709, 1.442695
        %v1775 = vpow.pop %v1774
        %v1776 = vmul.f32 %v1710, 1.442695
        %v1777 = vpow.pop %v1776
        %v1778 = vmul.f32 %v1711, 1.442695
        %v1779 = vpow.pop %v1778
        %v1780 = vmul.f32 %v1712, 1.442695
        %v1781 = vpow.pop %v1780
        %v1782 = vmul.f32 %v1713, 1.442695
        %v1783 = vpow.pop %v1782
        %v1784 = vmul.f32 %v1714, 1.442695
        %v1785 = vpow.pop %v1784
        %v1786 = vmul.f32 %v1715, 1.442695
        %v1787 = vpow.pop %v1786
        %v1788 = vmul.f32 %v1716, 1.442695
        %v1789 = vpow.pop %v1788
        %v1790 = vmul.f32 %v1717, 1.442695
        %v1791 = vpow.pop %v1790
        %v1792 = vmul.f32 %v1718, 1.442695
        %v1793 = vpow.pop %v1792
        %v1794 = vmul.f32 %v1719, 1.442695
        %v1795 = vpow.pop %v1794
        %v1796 = vmul.f32 %v1720, 1.442695
        %v1797 = vpow.pop %v1796
        %v1798 = vmul.f32 %v1721, 1.442695
        %v1799 = vpow.pop %v1798
        %v1800 = vmul.f32 %v1722, 1.442695
        %v1801 = vpow.pop %v1800
        %v1802 = vmul.f32 %v1723, 1.442695
        %v1803 = vpow.pop %v1802
        %v1804 = vmul.f32 %v1724, 1.442695
        %v1805 = vpow.pop %v1804
        %v1806 = vmul.f32 %v1725, 1.442695
        %v1807 = vpow.pop %v1806
        %v1808 = vmul.f32 %v1726, 1.442695
        %v1809 = vpow.pop %v1808
        %v1810 = vmul.f32 %v1727, 1.442695
        %v1811 = vpow.pop %v1810
        %v1812 = vmul.f32 %v1728, 1.442695
        %v1813 = vpow.pop %v1812
        %v1814 = vmul.f32 %v1729, 1.442695
        %v1815 = vpow.pop %v1814
        %v1816 = vmul.f32 %v1730, 1.442695
        %v1817 = vpow.pop %v1816
        %v1818 = vmul.f32 %v1731, 1.442695
        %v1819 = vpow.pop %v1818
        %v1820 = vmul.f32 %v1732, 1.442695
        %v1821 = vpow.pop %v1820
        %v1822 = vmul.f32 %v1733, 1.442695
        %v1823 = vpow.pop %v1822
        %v1824 = vmul.f32 %v1734, 1.442695
        %v1825 = vpow.pop %v1824
        %v1826 = vmul.f32 %v1735, 1.442695
        %v1827 = vpow.pop %v1826
        %v1828 = vmul.f32 %v1736, 1.442695
        %v1829 = vpow.pop %v1828
        %v1830 = vmul.f32 %v1737, 1.442695
        %v1831 = vpow.pop %v1830
        %v1832 = vmul.f32 %v1738, 1.442695
        %v1833 = vpow.pop %v1832
        %v1834 = vmul.f32 %v1739, 1.442695
        %v1835 = vpow.pop %v1834
        %v1836 = vmul.f32 %v1740, 1.442695
        %v1837 = vpow.pop %v1836
        %v1838 = vmul.f32 %v1741, 1.442695
        %v1839 = vpow.pop %v1838
        %v1840 = vmul.f32 %v1742, 1.442695
        %v1841 = vpow.pop %v1840
        %v1842 = vmul.f32 %v1743, 1.442695
        %v1843 = vpow.pop %v1842
        %v1844 = vmul.f32 %v1744, 1.442695
        %v1845 = vpow.pop %v1844
        %v1846 = vmul.f32 %v1745, 1.442695
        %v1847 = vpow.pop %v1846
        %v1848 = vmul.f32 %v1746, 1.442695
        %v1849 = vpow.pop %v1848
        %v1850 = vmul.f32 %v1747, 1.442695
        %v1851 = vpow.pop %v1850
        %v1852 = vmul.f32 %v1748, 1.442695
        %v1853 = vpow.pop %v1852
        %v1854 = vmul.f32 %v1749, 1.442695
        %v1855 = vpow.pop %v1854
        %v1856 = vmul.f32 %v1750, 1.442695
        %v1857 = vpow.pop %v1856
        %v1858 = vmul.f32 %v1751, 1.442695
        %v1859 = vpow.pop %v1858
        %v1860 = vmul.f32 %v1752, 1.442695
        %v1861 = vpow.pop %v1860
        %v1862 = vmul.f32 %v1753, 1.442695
        %v1863 = vpow.pop %v1862
        %v1864 = vmul.f32 %v1754, 1.442695
        %v1865 = vpow.pop %v1864
        %v1866 = vmul.f32 %v1755, 1.442695
        %v1867 = vpow.pop %v1866
        %v1868 = vmul.f32 %v1756, 1.442695
        %v1869 = vpow.pop %v1868
        %v1870 = vmul.f32 %v1757, 1.442695
        %v1871 = vpow.pop %v1870
        %v1872 = vmul.f32 %v1758, 1.442695
        %v1873 = vpow.pop %v1872
        %v1874 = vmul.f32 %v1759, 1.442695
        %v1875 = vpow.pop %v1874
        %v1876 = vmul.f32 %v1760, 1.442695
        %v1877 = vpow.pop %v1876
        %v1878 = vmul.f32 %v1761, 1.442695
        %v1879 = vpow.pop %v1878
        %v1880 = vmul.f32 %v1762, 1.442695
        %v1881 = vpow.pop %v1880
        %v1882 = vmul.f32 %v1763, 1.442695
        %v1883 = vpow.pop %v1882
        %v1884 = vmul.f32 %v1764, 1.442695
        %v1885 = vpow.pop %v1884
        %v1886 = vmul.f32 %v1765, 1.442695
        %v1887 = vpow.pop %v1886
        %v1888 = vmul.f32 %v1766, 1.442695
        %v1889 = vpow.pop %v1888
        %v1890 = vmul.f32 %v1767, 1.442695
        %v1891 = vpow.pop %v1890
        %v1892 = vmul.f32 %v1768, 1.442695
        %v1893 = vpow.pop %v1892
        %v1894 = vmul.f32 %v1769, 1.442695
        %v1895 = vpow.pop %v1894
        %v1896 = vmul.f32 %v1770, 1.442695
        %v1897 = vpow.pop %v1896
        %v1898 = vmul.f32 %v1771, 1.442695
        %v1899 = vpow.pop %v1898
        %v1900 = vmul.f32 %v1580, %v1773
        %v1901 = vmul.f32 %v1581, %v1775
        %v1902 = vmul.f32 %v1582, %v1777
        %v1903 = vmul.f32 %v1583, %v1779
        %v1904 = vmul.f32 %v1584, %v1781
        %v1905 = vmul.f32 %v1585, %v1783
        %v1906 = vmul.f32 %v1586, %v1785
        %v1907 = vmul.f32 %v1587, %v1787
        %v1908 = vmul.f32 %v1588, %v1789
        %v1909 = vmul.f32 %v1589, %v1791
        %v1910 = vmul.f32 %v1590, %v1793
        %v1911 = vmul.f32 %v1591, %v1795
        %v1912 = vmul.f32 %v1592, %v1797
        %v1913 = vmul.f32 %v1593, %v1799
        %v1914 = vmul.f32 %v1594, %v1801
        %v1915 = vmul.f32 %v1595, %v1803
        %v1916 = vmul.f32 %v1596, %v1805
        %v1917 = vmul.f32 %v1597, %v1807
        %v1918 = vmul.f32 %v1598, %v1809
        %v1919 = vmul.f32 %v1599, %v1811
        %v1920 = vmul.f32 %v1600, %v1813
        %v1921 = vmul.f32 %v1601, %v1815
        %v1922 = vmul.f32 %v1602, %v1817
        %v1923 = vmul.f32 %v1603, %v1819
        %v1924 = vmul.f32 %v1604, %v1821
        %v1925 = vmul.f32 %v1605, %v1823
        %v1926 = vmul.f32 %v1606, %v1825
        %v1927 = vmul.f32 %v1607, %v1827
        %v1928 = vmul.f32 %v1608, %v1829
        %v1929 = vmul.f32 %v1609, %v1831
        %v1930 = vmul.f32 %v1610, %v1833
        %v1931 = vmul.f32 %v1611, %v1835
        %v1932 = vmul.f32 %v1612, %v1837
        %v1933 = vmul.f32 %v1613, %v1839
        %v1934 = vmul.f32 %v1614, %v1841
        %v1935 = vmul.f32 %v1615, %v1843
        %v1936 = vmul.f32 %v1616, %v1845
        %v1937 = vmul.f32 %v1617, %v1847
        %v1938 = vmul.f32 %v1618, %v1849
        %v1939 = vmul.f32 %v1619, %v1851
        %v1940 = vmul.f32 %v1620, %v1853
        %v1941 = vmul.f32 %v1621, %v1855
        %v1942 = vmul.f32 %v1622, %v1857
        %v1943 = vmul.f32 %v1623, %v1859
        %v1944 = vmul.f32 %v1624, %v1861
        %v1945 = vmul.f32 %v1625, %v1863
        %v1946 = vmul.f32 %v1626, %v1865
        %v1947 = vmul.f32 %v1627, %v1867
        %v1948 = vmul.f32 %v1628, %v1869
        %v1949 = vmul.f32 %v1629, %v1871
        %v1950 = vmul.f32 %v1630, %v1873
        %v1951 = vmul.f32 %v1631, %v1875
        %v1952 = vmul.f32 %v1632, %v1877
        %v1953 = vmul.f32 %v1633, %v1879
        %v1954 = vmul.f32 %v1634, %v1881
        %v1955 = vmul.f32 %v1635, %v1883
        %v1956 = vmul.f32 %v1636, %v1885
        %v1957 = vmul.f32 %v1637, %v1887
        %v1958 = vmul.f32 %v1638, %v1889
        %v1959 = vmul.f32 %v1639, %v1891
        %v1960 = vmul.f32 %v1640, %v1893
        %v1961 = vmul.f32 %v1641, %v1895
        %v1962 = vmul.f32 %v1642, %v1897
        %v1963 = vmul.f32 %v1643, %v1899
        %v1964 = vsub.f32 1.0, %v1900
        %v1965 = vsub.f32 1.0, %v1901
        %v1966 = vsub.f32 1.0, %v1902
        %v1967 = vsub.f32 1.0, %v1903
        %v1968 = vsub.f32 1.0, %v1904
        %v1969 = vsub.f32 1.0, %v1905
        %v1970 = vsub.f32 1.0, %v1906
        %v1971 = vsub.f32 1.0, %v1907
        %v1972 = vsub.f32 1.0, %v1908
        %v1973 = vsub.f32 1.0, %v1909
        %v1974 = vsub.f32 1.0, %v1910
        %v1975 = vsub.f32 1.0, %v1911
        %v1976 = vsub.f32 1.0, %v1912
        %v1977 = vsub.f32 1.0, %v1913
        %v1978 = vsub.f32 1.0, %v1914
        %v1979 = vsub.f32 1.0, %v1915
        %v1980 = vsub.f32 1.0, %v1916
        %v1981 = vsub.f32 1.0, %v1917
        %v1982 = vsub.f32 1.0, %v1918
        %v1983 = vsub.f32 1.0, %v1919
        %v1984 = vsub.f32 1.0, %v1920
        %v1985 = vsub.f32 1.0, %v1921
        %v1986 = vsub.f32 1.0, %v1922
        %v1987 = vsub.f32 1.0, %v1923
        %v1988 = vsub.f32 1.0, %v1924
        %v1989 = vsub.f32 1.0, %v1925
        %v1990 = vsub.f32 1.0, %v1926
        %v1991 = vsub.f32 1.0, %v1927
        %v1992 = vsub.f32 1.0, %v1928
        %v1993 = vsub.f32 1.0, %v1929
        %v1994 = vsub.f32 1.0, %v1930
        %v1995 = vsub.f32 1.0, %v1931
        %v1996 = vsub.f32 1.0, %v1932
        %v1997 = vsub.f32 1.0, %v1933
        %v1998 = vsub.f32 1.0, %v1934
        %v1999 = vsub.f32 1.0, %v1935
        %v2000 = vsub.f32 1.0, %v1936
        %v2001 = vsub.f32 1.0, %v1937
        %v2002 = vsub.f32 1.0, %v1938
        %v2003 = vsub.f32 1.0, %v1939
        %v2004 = vsub.f32 1.0, %v1940
        %v2005 = vsub.f32 1.0, %v1941
        %v2006 = vsub.f32 1.0, %v1942
        %v2007 = vsub.f32 1.0, %v1943
        %v2008 = vsub.f32 1.0, %v1944
        %v2009 = vsub.f32 1.0, %v1945
        %v2010 = vsub.f32 1.0, %v1946
        %v2011 = vsub.f32 1.0, %v1947
        %v2012 = vsub.f32 1.0, %v1948
        %v2013 = vsub.f32 1.0, %v1949
        %v2014 = vsub.f32 1.0, %v1950
        %v2015 = vsub.f32 1.0, %v1951
        %v2016 = vsub.f32 1.0, %v1952
        %v2017 = vsub.f32 1.0, %v1953
        %v2018 = vsub.f32 1.0, %v1954
        %v2019 = vsub.f32 1.0, %v1955
        %v2020 = vsub.f32 1.0, %v1956
        %v2021 = vsub.f32 1.0, %v1957
        %v2022 = vsub.f32 1.0, %v1958
        %v2023 = vsub.f32 1.0, %v1959
        %v2024 = vsub.f32 1.0, %v1960
        %v2025 = vsub.f32 1.0, %v1961
        %v2026 = vsub.f32 1.0, %v1962
        %v2027 = vsub.f32 1.0, %v1963
        %vm2028 = vcmp.lt.f32.partialorder %v684, 0.0
        %vm2029 = vcmp.lt.f32.partialorder %v685, 0.0
        %vm2030 = vcmp.lt.f32.partialorder %v686, 0.0
        %vm2031 = vcmp.lt.f32.partialorder %v687, 0.0
        %vm2032 = vcmp.lt.f32.partialorder %v688, 0.0
        %vm2033 = vcmp.lt.f32.partialorder %v689, 0.0
        %vm2034 = vcmp.lt.f32.partialorder %v690, 0.0
        %vm2035 = vcmp.lt.f32.partialorder %v691, 0.0
        %vm2036 = vcmp.lt.f32.partialorder %v692, 0.0
        %vm2037 = vcmp.lt.f32.partialorder %v693, 0.0
        %vm2038 = vcmp.lt.f32.partialorder %v694, 0.0
        %vm2039 = vcmp.lt.f32.partialorder %v695, 0.0
        %vm2040 = vcmp.lt.f32.partialorder %v696, 0.0
        %vm2041 = vcmp.lt.f32.partialorder %v697, 0.0
        %vm2042 = vcmp.lt.f32.partialorder %v698, 0.0
        %vm2043 = vcmp.lt.f32.partialorder %v699, 0.0
        %vm2044 = vcmp.lt.f32.partialorder %v700, 0.0
        %vm2045 = vcmp.lt.f32.partialorder %v701, 0.0
        %vm2046 = vcmp.lt.f32.partialorder %v702, 0.0
        %vm2047 = vcmp.lt.f32.partialorder %v703, 0.0
        %vm2048 = vcmp.lt.f32.partialorder %v704, 0.0
        %vm2049 = vcmp.lt.f32.partialorder %v705, 0.0
        %vm2050 = vcmp.lt.f32.partialorder %v706, 0.0
        %vm2051 = vcmp.lt.f32.partialorder %v707, 0.0
        %vm2052 = vcmp.lt.f32.partialorder %v708, 0.0
        %vm2053 = vcmp.lt.f32.partialorder %v709, 0.0
        %vm2054 = vcmp.lt.f32.partialorder %v710, 0.0
        %vm2055 = vcmp.lt.f32.partialorder %v711, 0.0
        %vm2056 = vcmp.lt.f32.partialorder %v712, 0.0
        %vm2057 = vcmp.lt.f32.partialorder %v713, 0.0
        %vm2058 = vcmp.lt.f32.partialorder %v714, 0.0
        %vm2059 = vcmp.lt.f32.partialorder %v715, 0.0
        %vm2060 = vcmp.lt.f32.partialorder %v716, 0.0
        %vm2061 = vcmp.lt.f32.partialorder %v717, 0.0
        %vm2062 = vcmp.lt.f32.partialorder %v718, 0.0
        %vm2063 = vcmp.lt.f32.partialorder %v719, 0.0
        %vm2064 = vcmp.lt.f32.partialorder %v720, 0.0
        %vm2065 = vcmp.lt.f32.partialorder %v721, 0.0
        %vm2066 = vcmp.lt.f32.partialorder %v722, 0.0
        %vm2067 = vcmp.lt.f32.partialorder %v723, 0.0
        %vm2068 = vcmp.lt.f32.partialorder %v724, 0.0
        %vm2069 = vcmp.lt.f32.partialorder %v725, 0.0
        %vm2070 = vcmp.lt.f32.partialorder %v726, 0.0
        %vm2071 = vcmp.lt.f32.partialorder %v727, 0.0
        %vm2072 = vcmp.lt.f32.partialorder %v728, 0.0
        %vm2073 = vcmp.lt.f32.partialorder %v729, 0.0
        %vm2074 = vcmp.lt.f32.partialorder %v730, 0.0
        %vm2075 = vcmp.lt.f32.partialorder %v731, 0.0
        %vm2076 = vcmp.lt.f32.partialorder %v732, 0.0
        %vm2077 = vcmp.lt.f32.partialorder %v733, 0.0
        %vm2078 = vcmp.lt.f32.partialorder %v734, 0.0
        %vm2079 = vcmp.lt.f32.partialorder %v735, 0.0
        %vm2080 = vcmp.lt.f32.partialorder %v736, 0.0
        %vm2081 = vcmp.lt.f32.partialorder %v737, 0.0
        %vm2082 = vcmp.lt.f32.partialorder %v738, 0.0
        %vm2083 = vcmp.lt.f32.partialorder %v739, 0.0
        %vm2084 = vcmp.lt.f32.partialorder %v740, 0.0
        %vm2085 = vcmp.lt.f32.partialorder %v741, 0.0
        %vm2086 = vcmp.lt.f32.partialorder %v742, 0.0
        %vm2087 = vcmp.lt.f32.partialorder %v743, 0.0
        %vm2088 = vcmp.lt.f32.partialorder %v744, 0.0
        %vm2089 = vcmp.lt.f32.partialorder %v745, 0.0
        %vm2090 = vcmp.lt.f32.partialorder %v746, 0.0
        %vm2091 = vcmp.lt.f32.partialorder %v747, 0.0
        %v2092 = vsub.f32 0.0, %v1964
        %v2093 = vsub.f32 0.0, %v1965
        %v2094 = vsub.f32 0.0, %v1966
        %v2095 = vsub.f32 0.0, %v1967
        %v2096 = vsub.f32 0.0, %v1968
        %v2097 = vsub.f32 0.0, %v1969
        %v2098 = vsub.f32 0.0, %v1970
        %v2099 = vsub.f32 0.0, %v1971
        %v2100 = vsub.f32 0.0, %v1972
        %v2101 = vsub.f32 0.0, %v1973
        %v2102 = vsub.f32 0.0, %v1974
        %v2103 = vsub.f32 0.0, %v1975
        %v2104 = vsub.f32 0.0, %v1976
        %v2105 = vsub.f32 0.0, %v1977
        %v2106 = vsub.f32 0.0, %v1978
        %v2107 = vsub.f32 0.0, %v1979
        %v2108 = vsub.f32 0.0, %v1980
        %v2109 = vsub.f32 0.0, %v1981
        %v2110 = vsub.f32 0.0, %v1982
        %v2111 = vsub.f32 0.0, %v1983
        %v2112 = vsub.f32 0.0, %v1984
        %v2113 = vsub.f32 0.0, %v1985
        %v2114 = vsub.f32 0.0, %v1986
        %v2115 = vsub.f32 0.0, %v1987
        %v2116 = vsub.f32 0.0, %v1988
        %v2117 = vsub.f32 0.0, %v1989
        %v2118 = vsub.f32 0.0, %v1990
        %v2119 = vsub.f32 0.0, %v1991
        %v2120 = vsub.f32 0.0, %v1992
        %v2121 = vsub.f32 0.0, %v1993
        %v2122 = vsub.f32 0.0, %v1994
        %v2123 = vsub.f32 0.0, %v1995
        %v2124 = vsub.f32 0.0, %v1996
        %v2125 = vsub.f32 0.0, %v1997
        %v2126 = vsub.f32 0.0, %v1998
        %v2127 = vsub.f32 0.0, %v1999
        %v2128 = vsub.f32 0.0, %v2000
        %v2129 = vsub.f32 0.0, %v2001
        %v2130 = vsub.f32 0.0, %v2002
        %v2131 = vsub.f32 0.0, %v2003
        %v2132 = vsub.f32 0.0, %v2004
        %v2133 = vsub.f32 0.0, %v2005
        %v2134 = vsub.f32 0.0, %v2006
        %v2135 = vsub.f32 0.0, %v2007
        %v2136 = vsub.f32 0.0, %v2008
        %v2137 = vsub.f32 0.0, %v2009
        %v2138 = vsub.f32 0.0, %v2010
        %v2139 = vsub.f32 0.0, %v2011
        %v2140 = vsub.f32 0.0, %v2012
        %v2141 = vsub.f32 0.0, %v2013
        %v2142 = vsub.f32 0.0, %v2014
        %v2143 = vsub.f32 0.0, %v2015
        %v2144 = vsub.f32 0.0, %v2016
        %v2145 = vsub.f32 0.0, %v2017
        %v2146 = vsub.f32 0.0, %v2018
        %v2147 = vsub.f32 0.0, %v2019
        %v2148 = vsub.f32 0.0, %v2020
        %v2149 = vsub.f32 0.0, %v2021
        %v2150 = vsub.f32 0.0, %v2022
        %v2151 = vsub.f32 0.0, %v2023
        %v2152 = vsub.f32 0.0, %v2024
        %v2153 = vsub.f32 0.0, %v2025
        %v2154 = vsub.f32 0.0, %v2026
        %v2155 = vsub.f32 0.0, %v2027
        %v2156 = vsel %vm2028, %v2092, %v1964
        %v2157 = vsel %vm2029, %v2093, %v1965
        %v2158 = vsel %vm2030, %v2094, %v1966
        %v2159 = vsel %vm2031, %v2095, %v1967
        %v2160 = vsel %vm2032, %v2096, %v1968
        %v2161 = vsel %vm2033, %v2097, %v1969
        %v2162 = vsel %vm2034, %v2098, %v1970
        %v2163 = vsel %vm2035, %v2099, %v1971
        %v2164 = vsel %vm2036, %v2100, %v1972
        %v2165 = vsel %vm2037, %v2101, %v1973
        %v2166 = vsel %vm2038, %v2102, %v1974
        %v2167 = vsel %vm2039, %v2103, %v1975
        %v2168 = vsel %vm2040, %v2104, %v1976
        %v2169 = vsel %vm2041, %v2105, %v1977
        %v2170 = vsel %vm2042, %v2106, %v1978
        %v2171 = vsel %vm2043, %v2107, %v1979
        %v2172 = vsel %vm2044, %v2108, %v1980
        %v2173 = vsel %vm2045, %v2109, %v1981
        %v2174 = vsel %vm2046, %v2110, %v1982
        %v2175 = vsel %vm2047, %v2111, %v1983
        %v2176 = vsel %vm2048, %v2112, %v1984
        %v2177 = vsel %vm2049, %v2113, %v1985
        %v2178 = vsel %vm2050, %v2114, %v1986
        %v2179 = vsel %vm2051, %v2115, %v1987
        %v2180 = vsel %vm2052, %v2116, %v1988
        %v2181 = vsel %vm2053, %v2117, %v1989
        %v2182 = vsel %vm2054, %v2118, %v1990
        %v2183 = vsel %vm2055, %v2119, %v1991
        %v2184 = vsel %vm2056, %v2120, %v1992
        %v2185 = vsel %vm2057, %v2121, %v1993
        %v2186 = vsel %vm2058, %v2122, %v1994
        %v2187 = vsel %vm2059, %v2123, %v1995
        %v2188 = vsel %vm2060, %v2124, %v1996
        %v2189 = vsel %vm2061, %v2125, %v1997
        %v2190 = vsel %vm2062, %v2126, %v1998
        %v2191 = vsel %vm2063, %v2127, %v1999
        %v2192 = vsel %vm2064, %v2128, %v2000
        %v2193 = vsel %vm2065, %v2129, %v2001
        %v2194 = vsel %vm2066, %v2130, %v2002
        %v2195 = vsel %vm2067, %v2131, %v2003
        %v2196 = vsel %vm2068, %v2132, %v2004
        %v2197 = vsel %vm2069, %v2133, %v2005
        %v2198 = vsel %vm2070, %v2134, %v2006
        %v2199 = vsel %vm2071, %v2135, %v2007
        %v2200 = vsel %vm2072, %v2136, %v2008
        %v2201 = vsel %vm2073, %v2137, %v2009
        %v2202 = vsel %vm2074, %v2138, %v2010
        %v2203 = vsel %vm2075, %v2139, %v2011
        %v2204 = vsel %vm2076, %v2140, %v2012
        %v2205 = vsel %vm2077, %v2141, %v2013
        %v2206 = vsel %vm2078, %v2142, %v2014
        %v2207 = vsel %vm2079, %v2143, %v2015
        %v2208 = vsel %vm2080, %v2144, %v2016
        %v2209 = vsel %vm2081, %v2145, %v2017
        %v2210 = vsel %vm2082, %v2146, %v2018
        %v2211 = vsel %vm2083, %v2147, %v2019
        %v2212 = vsel %vm2084, %v2148, %v2020
        %v2213 = vsel %vm2085, %v2149, %v2021
        %v2214 = vsel %vm2086, %v2150, %v2022
        %v2215 = vsel %vm2087, %v2151, %v2023
        %v2216 = vsel %vm2088, %v2152, %v2024
        %v2217 = vsel %vm2089, %v2153, %v2025
        %v2218 = vsel %vm2090, %v2154, %v2026
        %v2219 = vsel %vm2091, %v2155, %v2027
        %v2220 = vadd.f32 %v2156, 1.0
        %v2221 = vadd.f32 %v2157, 1.0
        %v2222 = vadd.f32 %v2158, 1.0
        %v2223 = vadd.f32 %v2159, 1.0
        %v2224 = vadd.f32 %v2160, 1.0
        %v2225 = vadd.f32 %v2161, 1.0
        %v2226 = vadd.f32 %v2162, 1.0
        %v2227 = vadd.f32 %v2163, 1.0
        %v2228 = vadd.f32 %v2164, 1.0
        %v2229 = vadd.f32 %v2165, 1.0
        %v2230 = vadd.f32 %v2166, 1.0
        %v2231 = vadd.f32 %v2167, 1.0
        %v2232 = vadd.f32 %v2168, 1.0
        %v2233 = vadd.f32 %v2169, 1.0
        %v2234 = vadd.f32 %v2170, 1.0
        %v2235 = vadd.f32 %v2171, 1.0
        %v2236 = vadd.f32 %v2172, 1.0
        %v2237 = vadd.f32 %v2173, 1.0
        %v2238 = vadd.f32 %v2174, 1.0
        %v2239 = vadd.f32 %v2175, 1.0
        %v2240 = vadd.f32 %v2176, 1.0
        %v2241 = vadd.f32 %v2177, 1.0
        %v2242 = vadd.f32 %v2178, 1.0
        %v2243 = vadd.f32 %v2179, 1.0
        %v2244 = vadd.f32 %v2180, 1.0
        %v2245 = vadd.f32 %v2181, 1.0
        %v2246 = vadd.f32 %v2182, 1.0
        %v2247 = vadd.f32 %v2183, 1.0
        %v2248 = vadd.f32 %v2184, 1.0
        %v2249 = vadd.f32 %v2185, 1.0
        %v2250 = vadd.f32 %v2186, 1.0
        %v2251 = vadd.f32 %v2187, 1.0
        %v2252 = vadd.f32 %v2188, 1.0
        %v2253 = vadd.f32 %v2189, 1.0
        %v2254 = vadd.f32 %v2190, 1.0
        %v2255 = vadd.f32 %v2191, 1.0
        %v2256 = vadd.f32 %v2192, 1.0
        %v2257 = vadd.f32 %v2193, 1.0
        %v2258 = vadd.f32 %v2194, 1.0
        %v2259 = vadd.f32 %v2195, 1.0
        %v2260 = vadd.f32 %v2196, 1.0
        %v2261 = vadd.f32 %v2197, 1.0
        %v2262 = vadd.f32 %v2198, 1.0
        %v2263 = vadd.f32 %v2199, 1.0
        %v2264 = vadd.f32 %v2200, 1.0
        %v2265 = vadd.f32 %v2201, 1.0
        %v2266 = vadd.f32 %v2202, 1.0
        %v2267 = vadd.f32 %v2203, 1.0
        %v2268 = vadd.f32 %v2204, 1.0
        %v2269 = vadd.f32 %v2205, 1.0
        %v2270 = vadd.f32 %v2206, 1.0
        %v2271 = vadd.f32 %v2207, 1.0
        %v2272 = vadd.f32 %v2208, 1.0
        %v2273 = vadd.f32 %v2209, 1.0
        %v2274 = vadd.f32 %v2210, 1.0
        %v2275 = vadd.f32 %v2211, 1.0
        %v2276 = vadd.f32 %v2212, 1.0
        %v2277 = vadd.f32 %v2213, 1.0
        %v2278 = vadd.f32 %v2214, 1.0
        %v2279 = vadd.f32 %v2215, 1.0
        %v2280 = vadd.f32 %v2216, 1.0
        %v2281 = vadd.f32 %v2217, 1.0
        %v2282 = vadd.f32 %v2218, 1.0
        %v2283 = vadd.f32 %v2219, 1.0
        %v2284 = vmul.f32 %v620, %v2220
        %v2285 = vmul.f32 %v621, %v2221
        %v2286 = vmul.f32 %v622, %v2222
        %v2287 = vmul.f32 %v623, %v2223
        %v2288 = vmul.f32 %v624, %v2224
        %v2289 = vmul.f32 %v625, %v2225
        %v2290 = vmul.f32 %v626, %v2226
        %v2291 = vmul.f32 %v627, %v2227
        %v2292 = vmul.f32 %v628, %v2228
        %v2293 = vmul.f32 %v629, %v2229
        %v2294 = vmul.f32 %v630, %v2230
        %v2295 = vmul.f32 %v631, %v2231
        %v2296 = vmul.f32 %v632, %v2232
        %v2297 = vmul.f32 %v633, %v2233
        %v2298 = vmul.f32 %v634, %v2234
        %v2299 = vmul.f32 %v635, %v2235
        %v2300 = vmul.f32 %v636, %v2236
        %v2301 = vmul.f32 %v637, %v2237
        %v2302 = vmul.f32 %v638, %v2238
        %v2303 = vmul.f32 %v639, %v2239
        %v2304 = vmul.f32 %v640, %v2240
        %v2305 = vmul.f32 %v641, %v2241
        %v2306 = vmul.f32 %v642, %v2242
        %v2307 = vmul.f32 %v643, %v2243
        %v2308 = vmul.f32 %v644, %v2244
        %v2309 = vmul.f32 %v645, %v2245
        %v2310 = vmul.f32 %v646, %v2246
        %v2311 = vmul.f32 %v647, %v2247
        %v2312 = vmul.f32 %v648, %v2248
        %v2313 = vmul.f32 %v649, %v2249
        %v2314 = vmul.f32 %v650, %v2250
        %v2315 = vmul.f32 %v651, %v2251
        %v2316 = vmul.f32 %v652, %v2252
        %v2317 = vmul.f32 %v653, %v2253
        %v2318 = vmul.f32 %v654, %v2254
        %v2319 = vmul.f32 %v655, %v2255
        %v2320 = vmul.f32 %v656, %v2256
        %v2321 = vmul.f32 %v657, %v2257
        %v2322 = vmul.f32 %v658, %v2258
        %v2323 = vmul.f32 %v659, %v2259
        %v2324 = vmul.f32 %v660, %v2260
        %v2325 = vmul.f32 %v661, %v2261
        %v2326 = vmul.f32 %v662, %v2262
        %v2327 = vmul.f32 %v663, %v2263
        %v2328 = vmul.f32 %v664, %v2264
        %v2329 = vmul.f32 %v665, %v2265
        %v2330 = vmul.f32 %v666, %v2266
        %v2331 = vmul.f32 %v667, %v2267
        %v2332 = vmul.f32 %v668, %v2268
        %v2333 = vmul.f32 %v669, %v2269
        %v2334 = vmul.f32 %v670, %v2270
        %v2335 = vmul.f32 %v671, %v2271
        %v2336 = vmul.f32 %v672, %v2272
        %v2337 = vmul.f32 %v673, %v2273
        %v2338 = vmul.f32 %v674, %v2274
        %v2339 = vmul.f32 %v675, %v2275
        %v2340 = vmul.f32 %v676, %v2276
        %v2341 = vmul.f32 %v677, %v2277
        %v2342 = vmul.f32 %v678, %v2278
        %v2343 = vmul.f32 %v679, %v2279
        %v2344 = vmul.f32 %v680, %v2280
        %v2345 = vmul.f32 %v681, %v2281
        %v2346 = vmul.f32 %v682, %v2282
        %v2347 = vmul.f32 %v683, %v2283
        %v2348 = vld [vmem:[#allocation6] sm:$0xff]
        %v2349 = vld [vmem:[#allocation6 + $0x8] sm:$0xff]
        %v2350 = vld [vmem:[#allocation6 + $0x10] sm:$0xff]
        %v2351 = vld [vmem:[#allocation6 + $0x18] sm:$0xff]
        %v2352 = vld [vmem:[#allocation6 + $0x20] sm:$0xff]
        %v2353 = vld [vmem:[#allocation6 + $0x28] sm:$0xff]
        %v2354 = vld [vmem:[#allocation6 + $0x30] sm:$0xff]
        %v2355 = vld [vmem:[#allocation6 + $0x38] sm:$0xff]
        %v2356 = vld [vmem:[#allocation6 + $0x40] sm:$0xff]
        %v2357 = vld [vmem:[#allocation6 + $0x48] sm:$0xff]
        %v2358 = vld [vmem:[#allocation6 + $0x50] sm:$0xff]
        %v2359 = vld [vmem:[#allocation6 + $0x58] sm:$0xff]
        %v2360 = vld [vmem:[#allocation6 + $0x60] sm:$0xff]
        %v2361 = vld [vmem:[#allocation6 + $0x68] sm:$0xff]
        %v2362 = vld [vmem:[#allocation6 + $0x70] sm:$0xff]
        %v2363 = vld [vmem:[#allocation6 + $0x78] sm:$0xff]
        %v2364 = vld [vmem:[#allocation6 + $0x80] sm:$0xff]
        %v2365 = vld [vmem:[#allocation6 + $0x88] sm:$0xff]
        %v2366 = vld [vmem:[#allocation6 + $0x90] sm:$0xff]
        %v2367 = vld [vmem:[#allocation6 + $0x98] sm:$0xff]
        %v2368 = vld [vmem:[#allocation6 + $0xa0] sm:$0xff]
        %v2369 = vld [vmem:[#allocation6 + $0xa8] sm:$0xff]
        %v2370 = vld [vmem:[#allocation6 + $0xb0] sm:$0xff]
        %v2371 = vld [vmem:[#allocation6 + $0xb8] sm:$0xff]
        %v2372 = vld [vmem:[#allocation6 + $0xc0] sm:$0xff]
        %v2373 = vld [vmem:[#allocation6 + $0xc8] sm:$0xff]
        %v2374 = vld [vmem:[#allocation6 + $0xd0] sm:$0xff]
        %v2375 = vld [vmem:[#allocation6 + $0xd8] sm:$0xff]
        %v2376 = vld [vmem:[#allocation6 + $0xe0] sm:$0xff]
        %v2377 = vld [vmem:[#allocation6 + $0xe8] sm:$0xff]
        %v2378 = vld [vmem:[#allocation6 + $0xf0] sm:$0xff]
        %v2379 = vld [vmem:[#allocation6 + $0xf8] sm:$0xff]
        %2380 = vmatprep.subr.mxu0 0.0
        %2381 = vmatpush1.msra.mxu0 %v2348
        %2382 = vmatprep.subr.mxu0 0.0
        %2383 = vmatpush1.msra.mxu0 %v2349
        %2384 = vmatprep.subr.mxu0 0.0
        %2385 = vmatpush1.msra.mxu0 %v2350
        %2386 = vmatprep.subr.mxu0 0.0
        %2387 = vmatpush1.msra.mxu0 %v2351
        %2388 = vmatprep.subr.mxu0 0.0
        %2389 = vmatpush1.msra.mxu0 %v2352
        %2390 = vmatprep.subr.mxu0 0.0
        %2391 = vmatpush1.msra.mxu0 %v2353
        %2392 = vmatprep.subr.mxu0 0.0
        %2393 = vmatpush1.msra.mxu0 %v2354
        %2394 = vmatprep.subr.mxu0 0.0
        %2395 = vmatpush1.msra.mxu0 %v2355
        %2396 = vmatprep.subr.mxu0 0.0
        %2397 = vmatpush1.msra.mxu0 %v2356
        %2398 = vmatprep.subr.mxu0 0.0
        %2399 = vmatpush1.msra.mxu0 %v2357
        %2400 = vmatprep.subr.mxu0 0.0
        %2401 = vmatpush1.msra.mxu0 %v2358
        %2402 = vmatprep.subr.mxu0 0.0
        %2403 = vmatpush1.msra.mxu0 %v2359
        %2404 = vmatprep.subr.mxu0 0.0
        %2405 = vmatpush1.msra.mxu0 %v2360
        %2406 = vmatprep.subr.mxu0 0.0
        %2407 = vmatpush1.msra.mxu0 %v2361
        %2408 = vmatprep.subr.mxu0 0.0
        %2409 = vmatpush1.msra.mxu0 %v2362
        %2410 = vmatprep.subr.mxu0 0.0
        %2411 = vmatpush1.msra.mxu0 %v2363
        %2412 = vmatprep.subr.mxu0 0.0
        %2413 = vmatpush1.msra.mxu0 %v2364
        %2414 = vmatprep.subr.mxu0 0.0
        %2415 = vmatpush1.msra.mxu0 %v2365
        %2416 = vmatprep.subr.mxu0 0.0
        %2417 = vmatpush1.msra.mxu0 %v2366
        %2418 = vmatprep.subr.mxu0 0.0
        %2419 = vmatpush1.msra.mxu0 %v2367
        %2420 = vmatprep.subr.mxu0 0.0
        %2421 = vmatpush1.msra.mxu0 %v2368
        %2422 = vmatprep.subr.mxu0 0.0
        %2423 = vmatpush1.msra.mxu0 %v2369
        %2424 = vmatprep.subr.mxu0 0.0
        %2425 = vmatpush1.msra.mxu0 %v2370
        %2426 = vmatprep.subr.mxu0 0.0
        %2427 = vmatpush1.msra.mxu0 %v2371
        %2428 = vmatprep.subr.mxu0 0.0
        %2429 = vmatpush1.msra.mxu0 %v2372
        %2430 = vmatprep.subr.mxu0 0.0
        %2431 = vmatpush1.msra.mxu0 %v2373
        %2432 = vmatprep.subr.mxu0 0.0
        %2433 = vmatpush1.msra.mxu0 %v2374
        %2434 = vmatprep.subr.mxu0 0.0
        %2435 = vmatpush1.msra.mxu0 %v2375
        %2436 = vmatprep.subr.mxu0 0.0
        %2437 = vmatpush1.msra.mxu0 %v2376
        %2438 = vmatprep.subr.mxu0 0.0
        %2439 = vmatpush1.msra.mxu0 %v2377
        %2440 = vmatprep.subr.mxu0 0.0
        %2441 = vmatpush1.msra.mxu0 %v2378
        %2442 = vmatprep.subr.mxu0 0.0
        %2443 = vmatpush1.msra.mxu0 %v2379
        %2444 = vmatprep.mubr.f32.mxu0 %v2285
        %2445 = vmatmul.mubr.f32.gmra.mrb[0].mxu0 %v2284
        %v2446 = vpop.f32.mrb[0].mxu0
        %v2447 = vadd.f32 0.0, %v2446
        %v2448 = vpop.f32.mrb[0].mxu0
        %2449 = vmatprep.mubr.f32.mxu0 %v2287
        %2450 = vmatmul.mubr.f32.gmra.mrb[0].mxu0 %v2286
        %v2451 = vpop.f32.mrb[0].mxu0
        %v2452 = vadd.f32 0.0, %v2451
        %v2453 = vpop.f32.mrb[0].mxu0
        %2454 = vmatprep.mubr.f32.mxu0 %v2289
        %2455 = vmatmul.mubr.f32.gmra.mrb[0].mxu0 %v2288
        %v2456 = vpop.f32.mrb[0].mxu0
        %v2457 = vadd.f32 0.0, %v2456
        %v2458 = vpop.f32.mrb[0].mxu0
        %2459 = vmatprep.mubr.f32.mxu0 %v2291
        %2460 = vmatmul.mubr.f32.gmra.mrb[0].mxu0 %v2290
        %v2461 = vpop.f32.mrb[0].mxu0
        %v2462 = vadd.f32 0.0, %v2461
        %v2463 = vpop.f32.mrb[0].mxu0
        %2464 = vmatprep.mubr.f32.mxu0 %v2293
        %2465 = vmatmul.mubr.f32.gmra.mrb[0].mxu0 %v2292
        %v2466 = vpop.f32.mrb[0].mxu0
        %v2467 = vadd.f32 0.0, %v2466
        %v2468 = vpop.f32.mrb[0].mxu0
        %2469 = vmatprep.mubr.f32.mxu0 %v2295
        %2470 = vmatmul.mubr.f32.gmra.mrb[0].mxu0 %v2294
        %v2471 = vpop.f32.mrb[0].mxu0
        %v2472 = vadd.f32 0.0, %v2471
        %v2473 = vpop.f32.mrb[0].mxu0
        %2474 = vmatprep.mubr.f32.mxu0 %v2297
        %2475 = vmatmul.mubr.f32.gmra.mrb[0].mxu0 %v2296
        %v2476 = vpop.f32.mrb[0].mxu0
        %v2477 = vadd.f32 0.0, %v2476
        %v2478 = vpop.f32.mrb[0].mxu0
        %2479 = vmatprep.mubr.f32.mxu0 %v2299
        %2480 = vmatmul.mubr.f32.gmra.mrb[0].mxu0 %v2298
        %v2481 = vpop.f32.mrb[0].mxu0
        %v2482 = vadd.f32 0.0, %v2481
        %v2483 = vpop.f32.mrb[0].mxu0
        %2484 = vmatprep.mubr.f32.mxu0 %v2301
        %2485 = vmatmul.mubr.f32.gmra.mrb[0].mxu0 %v2300
        %v2486 = vpop.f32.mrb[0].mxu0
        %v2487 = vadd.f32 0.0, %v2486
        %v2488 = vpop.f32.mrb[0].mxu0
        %2489 = vmatprep.mubr.f32.mxu0 %v2303
        %2490 = vmatmul.mubr.f32.gmra.mrb[0].mxu0 %v2302
        %v2491 = vpop.f32.mrb[0].mxu0
        %v2492 = vadd.f32 0.0, %v2491
        %v2493 = vpop.f32.mrb[0].mxu0
        %2494 = vmatprep.mubr.f32.mxu0 %v2305
        %2495 = vmatmul.mubr.f32.gmra.mrb[0].mxu0 %v2304
        %v2496 = vpop.f32.mrb[0].mxu0
        %v2497 = vadd.f32 0.0, %v2496
        %v2498 = vpop.f32.mrb[0].mxu0
        %2499 = vmatprep.mubr.f32.mxu0 %v2307
        %2500 = vmatmul.mubr.f32.gmra.mrb[0].mxu0 %v2306
        %v2501 = vpop.f32.mrb[0].mxu0
        %v2502 = vadd.f32 0.0, %v2501
        %v2503 = vpop.f32.mrb[0].mxu0
        %2504 = vmatprep.mubr.f32.mxu0 %v2309
        %2505 = vmatmul.mubr.f32.gmra.mrb[0].mxu0 %v2308
        %v2506 = vpop.f32.mrb[0].mxu0
        %v2507 = vadd.f32 0.0, %v2506
        %v2508 = vpop.f32.mrb[0].mxu0
        %2509 = vmatprep.mubr.f32.mxu0 %v2311
        %2510 = vmatmul.mubr.f32.gmra.mrb[0].mxu0 %v2310
        %v2511 = vpop.f32.mrb[0].mxu0
        %v2512 = vadd.f32 0.0, %v2511
        %v2513 = vpop.f32.mrb[0].mxu0
        %2514 = vmatprep.mubr.f32.mxu0 %v2313
        %2515 = vmatmul.mubr.f32.gmra.mrb[0].mxu0 %v2312
        %v2516 = vpop.f32.mrb[0].mxu0
        %v2517 = vadd.f32 0.0, %v2516
        %v2518 = vpop.f32.mrb[0].mxu0
        %2519 = vmatprep.mubr.f32.mxu0 %v2315
        %2520 = vmatmul.mubr.f32.gmra.mrb[0].mxu0 %v2314
        %v2521 = vpop.f32.mrb[0].mxu0
        %v2522 = vadd.f32 0.0, %v2521
        %v2523 = vpop.f32.mrb[0].mxu0
        %2524 = vmatprep.mubr.f32.mxu0 %v2317
        %2525 = vmatmul.mubr.f32.gmra.mrb[0].mxu0 %v2316
        %v2526 = vpop.f32.mrb[0].mxu0
        %v2527 = vadd.f32 0.0, %v2526
        %v2528 = vpop.f32.mrb[0].mxu0
        %2529 = vmatprep.mubr.f32.mxu0 %v2319
        %2530 = vmatmul.mubr.f32.gmra.mrb[0].mxu0 %v2318
        %v2531 = vpop.f32.mrb[0].mxu0
        %v2532 = vadd.f32 0.0, %v2531
        %v2533 = vpop.f32.mrb[0].mxu0
        %2534 = vmatprep.mubr.f32.mxu0 %v2321
        %2535 = vmatmul.mubr.f32.gmra.mrb[0].mxu0 %v2320
        %v2536 = vpop.f32.mrb[0].mxu0
        %v2537 = vadd.f32 0.0, %v2536
        %v2538 = vpop.f32.mrb[0].mxu0
        %2539 = vmatprep.mubr.f32.mxu0 %v2323
        %2540 = vmatmul.mubr.f32.gmra.mrb[0].mxu0 %v2322
        %v2541 = vpop.f32.mrb[0].mxu0
        %v2542 = vadd.f32 0.0, %v2541
        %v2543 = vpop.f32.mrb[0].mxu0
        %2544 = vmatprep.mubr.f32.mxu0 %v2325
        %2545 = vmatmul.mubr.f32.gmra.mrb[0].mxu0 %v2324
        %v2546 = vpop.f32.mrb[0].mxu0
        %v2547 = vadd.f32 0.0, %v2546
        %v2548 = vpop.f32.mrb[0].mxu0
        %2549 = vmatprep.mubr.f32.mxu0 %v2327
        %2550 = vmatmul.mubr.f32.gmra.mrb[0].mxu0 %v2326
        %v2551 = vpop.f32.mrb[0].mxu0
        %v2552 = vadd.f32 0.0, %v2551
        %v2553 = vpop.f32.mrb[0].mxu0
        %2554 = vmatprep.mubr.f32.mxu0 %v2329
        %2555 = vmatmul.mubr.f32.gmra.mrb[0].mxu0 %v2328
        %v2556 = vpop.f32.mrb[0].mxu0
        %v2557 = vadd.f32 0.0, %v2556
        %v2558 = vpop.f32.mrb[0].mxu0
        %2559 = vmatprep.mubr.f32.mxu0 %v2331
        %2560 = vmatmul.mubr.f32.gmra.mrb[0].mxu0 %v2330
        %v2561 = vpop.f32.mrb[0].mxu0
        %v2562 = vadd.f32 0.0, %v2561
        %v2563 = vpop.f32.mrb[0].mxu0
        %2564 = vmatprep.mubr.f32.mxu0 %v2333
        %2565 = vmatmul.mubr.f32.gmra.mrb[0].mxu0 %v2332
        %v2566 = vpop.f32.mrb[0].mxu0
        %v2567 = vadd.f32 0.0, %v2566
        %v2568 = vpop.f32.mrb[0].mxu0
        %2569 = vmatprep.mubr.f32.mxu0 %v2335
        %2570 = vmatmul.mubr.f32.gmra.mrb[0].mxu0 %v2334
        %v2571 = vpop.f32.mrb[0].mxu0
        %v2572 = vadd.f32 0.0, %v2571
        %v2573 = vpop.f32.mrb[0].mxu0
        %2574 = vmatprep.mubr.f32.mxu0 %v2337
        %2575 = vmatmul.mubr.f32.gmra.mrb[0].mxu0 %v2336
        %v2576 = vpop.f32.mrb[0].mxu0
        %v2577 = vadd.f32 0.0, %v2576
        %v2578 = vpop.f32.mrb[0].mxu0
        %2579 = vmatprep.mubr.f32.mxu0 %v2339
        %2580 = vmatmul.mubr.f32.gmra.mrb[0].mxu0 %v2338
        %v2581 = vpop.f32.mrb[0].mxu0
        %v2582 = vadd.f32 0.0, %v2581
        %v2583 = vpop.f32.mrb[0].mxu0
        %2584 = vmatprep.mubr.f32.mxu0 %v2341
        %2585 = vmatmul.mubr.f32.gmra.mrb[0].mxu0 %v2340
        %v2586 = vpop.f32.mrb[0].mxu0
        %v2587 = vadd.f32 0.0, %v2586
        %v2588 = vpop.f32.mrb[0].mxu0
        %2589 = vmatprep.mubr.f32.mxu0 %v2343
        %2590 = vmatmul.mubr.f32.gmra.mrb[0].mxu0 %v2342
        %v2591 = vpop.f32.mrb[0].mxu0
        %v2592 = vadd.f32 0.0, %v2591
        %v2593 = vpop.f32.mrb[0].mxu0
        %2594 = vmatprep.mubr.f32.mxu0 %v2345
        %2595 = vmatmul.mubr.f32.gmra.mrb[0].mxu0 %v2344
        %v2596 = vpop.f32.mrb[0].mxu0
        %v2597 = vadd.f32 0.0, %v2596
        %v2598 = vpop.f32.mrb[0].mxu0
        %2599 = vmatprep.mubr.f32.mxu0 %v2347
        %2600 = vmatmul.mubr.f32.gmra.mrb[0].mxu0 %v2346
        %v2601 = vpop.f32.mrb[0].mxu0
        %v2602 = vadd.f32 0.0, %v2601
        %v2603 = vpop.f32.mrb[0].mxu0
        %2604 = vdwg.mxu0
        %2605 = vst [vmem:[%s281] sm:$0xff] %v2447
        %2606 = vst [vmem:[%s281 + $0x8] sm:$0xff] %v2452
        %2607 = vst [vmem:[%s281 + $0x10] sm:$0xff] %v2457
        %2608 = vst [vmem:[%s281 + $0x18] sm:$0xff] %v2462
        %2609 = vst [vmem:[%s281 + $0x20] sm:$0xff] %v2467
        %2610 = vst [vmem:[%s281 + $0x28] sm:$0xff] %v2472
        %2611 = vst [vmem:[%s281 + $0x30] sm:$0xff] %v2477
        %2612 = vst [vmem:[%s281 + $0x38] sm:$0xff] %v2482
        %2613 = vst [vmem:[%s281 + $0x40] sm:$0xff] %v2487
        %2614 = vst [vmem:[%s281 + $0x48] sm:$0xff] %v2492
        %2615 = vst [vmem:[%s281 + $0x50] sm:$0xff] %v2497
        %2616 = vst [vmem:[%s281 + $0x58] sm:$0xff] %v2502
        %2617 = vst [vmem:[%s281 + $0x60] sm:$0xff] %v2507
        %2618 = vst [vmem:[%s281 + $0x68] sm:$0xff] %v2512
        %2619 = vst [vmem:[%s281 + $0x70] sm:$0xff] %v2517
        %2620 = vst [vmem:[%s281 + $0x78] sm:$0xff] %v2522
        %2621 = vst [vmem:[%s281 + $0x80] sm:$0xff] %v2527
        %2622 = vst [vmem:[%s281 + $0x88] sm:$0xff] %v2532
        %2623 = vst [vmem:[%s281 + $0x90] sm:$0xff] %v2537
        %2624 = vst [vmem:[%s281 + $0x98] sm:$0xff] %v2542
        %2625 = vst [vmem:[%s281 + $0xa0] sm:$0xff] %v2547
        %2626 = vst [vmem:[%s281 + $0xa8] sm:$0xff] %v2552
        %2627 = vst [vmem:[%s281 + $0xb0] sm:$0xff] %v2557
        %2628 = vst [vmem:[%s281 + $0xb8] sm:$0xff] %v2562
        %2629 = vst [vmem:[%s281 + $0xc0] sm:$0xff] %v2567
        %2630 = vst [vmem:[%s281 + $0xc8] sm:$0xff] %v2572
        %2631 = vst [vmem:[%s281 + $0xd0] sm:$0xff] %v2577
        %2632 = vst [vmem:[%s281 + $0xd8] sm:$0xff] %v2582
        %2633 = vst [vmem:[%s281 + $0xe0] sm:$0xff] %v2587
        %2634 = vst [vmem:[%s281 + $0xe8] sm:$0xff] %v2592
        %2635 = vst [vmem:[%s281 + $0xf0] sm:$0xff] %v2597
        %2636 = vst [vmem:[%s281 + $0xf8] sm:$0xff] %v2602
        %v2637 = vadd.f32 %v2447, %v2452
        %v2638 = vadd.f32 %v2637, %v2457
        %v2639 = vadd.f32 %v2638, %v2462
        %v2640 = vadd.f32 %v2639, %v2467
        %v2641 = vadd.f32 %v2640, %v2472
        %v2642 = vadd.f32 %v2641, %v2477
        %v2643 = vadd.f32 %v2642, %v2482
        %v2644 = vadd.f32 %v2643, %v2487
        %v2645 = vadd.f32 %v2644, %v2492
        %v2646 = vadd.f32 %v2645, %v2497
        %v2647 = vadd.f32 %v2646, %v2502
        %v2648 = vadd.f32 %v2647, %v2507
        %v2649 = vadd.f32 %v2648, %v2512
        %v2650 = vadd.f32 %v2649, %v2517
        %v2651 = vadd.f32 %v2650, %v2522
        %v2652 = vadd.f32 %v2651, %v2527
        %v2653 = vadd.f32 %v2652, %v2532
        %v2654 = vadd.f32 %v2653, %v2537
        %v2655 = vadd.f32 %v2654, %v2542
        %v2656 = vadd.f32 %v2655, %v2547
        %v2657 = vadd.f32 %v2656, %v2552
        %v2658 = vadd.f32 %v2657, %v2557
        %v2659 = vadd.f32 %v2658, %v2562
        %v2660 = vadd.f32 %v2659, %v2567
        %v2661 = vadd.f32 %v2660, %v2572
        %v2662 = vadd.f32 %v2661, %v2577
        %v2663 = vadd.f32 %v2662, %v2582
        %v2664 = vadd.f32 %v2663, %v2587
        %v2665 = vadd.f32 %v2664, %v2592
        %v2666 = vadd.f32 %v2665, %v2597
        %v2667 = vadd.f32 %v2666, %v2602
        %v2668 = vrot.slane %v2667, 4
        %v2669 = vadd.f32 %v2667, %v2668
        %v2670 = vrot.slane %v2669, 2
        %v2671 = vadd.f32 %v2669, %v2670
        %v2672 = vrot.slane %v2671, 1
        %v2673 = vadd.f32 %v2671, %v2672
        %2674 = vst [vmem:[%s286] sm:$0x1] %v2673
        %v2675 = vmul.f32 %v2447, %v2447
        %v2676 = vmul.f32 %v2452, %v2452
        %v2677 = vmul.f32 %v2457, %v2457
        %v2678 = vmul.f32 %v2462, %v2462
        %v2679 = vmul.f32 %v2467, %v2467
        %v2680 = vmul.f32 %v2472, %v2472
        %v2681 = vmul.f32 %v2477, %v2477
        %v2682 = vmul.f32 %v2482, %v2482
        %v2683 = vmul.f32 %v2487, %v2487
        %v2684 = vmul.f32 %v2492, %v2492
        %v2685 = vmul.f32 %v2497, %v2497
        %v2686 = vmul.f32 %v2502, %v2502
        %v2687 = vmul.f32 %v2507, %v2507
        %v2688 = vmul.f32 %v2512, %v2512
        %v2689 = vmul.f32 %v2517, %v2517
        %v2690 = vmul.f32 %v2522, %v2522
        %v2691 = vmul.f32 %v2527, %v2527
        %v2692 = vmul.f32 %v2532, %v2532
        %v2693 = vmul.f32 %v2537, %v2537
        %v2694 = vmul.f32 %v2542, %v2542
        %v2695 = vmul.f32 %v2547, %v2547
        %v2696 = vmul.f32 %v2552, %v2552
        %v2697 = vmul.f32 %v2557, %v2557
        %v2698 = vmul.f32 %v2562, %v2562
        %v2699 = vmul.f32 %v2567, %v2567
        %v2700 = vmul.f32 %v2572, %v2572
        %v2701 = vmul.f32 %v2577, %v2577
        %v2702 = vmul.f32 %v2582, %v2582
        %v2703 = vmul.f32 %v2587, %v2587
        %v2704 = vmul.f32 %v2592, %v2592
        %v2705 = vmul.f32 %v2597, %v2597
        %v2706 = vmul.f32 %v2602, %v2602
        %v2707 = vadd.f32 %v2675, %v2676
        %v2708 = vadd.f32 %v2707, %v2677
        %v2709 = vadd.f32 %v2708, %v2678
        %v2710 = vadd.f32 %v2709, %v2679
        %v2711 = vadd.f32 %v2710, %v2680
        %v2712 = vadd.f32 %v2711, %v2681
        %v2713 = vadd.f32 %v2712, %v2682
        %v2714 = vadd.f32 %v2713, %v2683
        %v2715 = vadd.f32 %v2714, %v2684
        %v2716 = vadd.f32 %v2715, %v2685
        %v2717 = vadd.f32 %v2716, %v2686
        %v2718 = vadd.f32 %v2717, %v2687
        %v2719 = vadd.f32 %v2718, %v2688
        %v2720 = vadd.f32 %v2719, %v2689
        %v2721 = vadd.f32 %v2720, %v2690
        %v2722 = vadd.f32 %v2721, %v2691
        %v2723 = vadd.f32 %v2722, %v2692
        %v2724 = vadd.f32 %v2723, %v2693
        %v2725 = vadd.f32 %v2724, %v2694
        %v2726 = vadd.f32 %v2725, %v2695
        %v2727 = vadd.f32 %v2726, %v2696
        %v2728 = vadd.f32 %v2727, %v2697
        %v2729 = vadd.f32 %v2728, %v2698
        %v2730 = vadd.f32 %v2729, %v2699
        %v2731 = vadd.f32 %v2730, %v2700
        %v2732 = vadd.f32 %v2731, %v2701
        %v2733 = vadd.f32 %v2732, %v2702
        %v2734 = vadd.f32 %v2733, %v2703
        %v2735 = vadd.f32 %v2734, %v2704
        %v2736 = vadd.f32 %v2735, %v2705
        %v2737 = vadd.f32 %v2736, %v2706
        %v2738 = vrot.slane %v2737, 4
        %v2739 = vadd.f32 %v2737, %v2738
        %v2740 = vrot.slane %v2739, 2
        %v2741 = vadd.f32 %v2739, %v2740
        %v2742 = vrot.slane %v2741, 1
        %v2743 = vadd.f32 %v2741, %v2742
        %2744 = vst [vmem:[%s286 + $0x1] sm:$0x1] %v2743
        %s2745 = smul.u32 32, %s21
        %p2746 = scmp.lt.s32.totalorder %s2745, 63
        %s2747 = scalar_select %p2746, %s2745, 63
        %s2748 = smul.addr %s2747, 8
        %s2749 = scalar_lea.vmem %s4, %s2748
        %p2750 = scmp.lt.s32.totalorder %s21, 1
        %s2751 = scalar_select %p2750, %s21, 1
        %s2752 = smul.addr %s2751, 2
        %s2753 = scalar_lea.vmem %s5, %s2752
        // Predicated region
        $region49: #{mlp_forward.2} parent=35 // pred_check
          %p2754 = pneg %p128
        $region50: #{mlp_forward.2} parent=35 // pred_check_branch
          %2756 = sbr.rel (%p2754) target = $region52
        $region51: #{mlp_forward.2} parent=35 // pred_region
          %s2757 = smul.u32 32, %s21
        $region52: #{mlp_forward.2} parent=35 // pred_fallthru
          _
        // Predicated region
        $region53: #{mlp_forward.2} parent=35 // pred_check
          %p2758 = pneg %p154
        $region54: #{mlp_forward.2} parent=35 // pred_check_branch
          %2760 = sbr.rel (%p2758) target = $region56
        $region55: #{mlp_forward.2} parent=35 // pred_region
          _
        $region56: #{mlp_forward.2} parent=35 // pred_fallthru
          _
      $region36: #{mlp_forward.2} parent=5 // pred_fallthru
        _
      %p2761 = scmp.le.s32.totalorder 2, %s16
      // Predicated region
      $region57: #{mlp_forward.2} parent=5 // pred_check
        %p2762 = pneg %p2761
      $region58: #{mlp_forward.2} parent=5 // pred_check_branch
        %2764 = sbr.rel (%p2762) target = $region60
      $region59: #{mlp_forward.2} parent=5 // pred_region
        %s2765 = ssub.s32 %s16, 2
        // Predicated region
        $region61: #{mlp_forward.2} parent=59 // pred_check
          %p2766 = pneg %p134
        $region62: #{mlp_forward.2} parent=59 // pred_check_branch
          %2768 = sbr.rel (%p2766) target = $region64
        $region63: #{mlp_forward.2} parent=59 // pred_region
          %s2769 = smul.u32 32, %s22
          %p2770 = scmp.lt.s32.totalorder %s2769, 63
          %s2771 = scalar_select %p2770, %s2769, 63
          %s2772 = smul.addr %s2771, 8
          %s2773 = scalar_lea.vmem %s4, %s2772
        $region64: #{mlp_forward.2} parent=59 // pred_fallthru
          _
        // Predicated region
        $region65: #{mlp_forward.2} parent=59 // pred_check
          %p2774 = pneg %p160
        $region66: #{mlp_forward.2} parent=59 // pred_check_branch
          %2776 = sbr.rel (%p2774) target = $region68
        $region67: #{mlp_forward.2} parent=59 // pred_region
          %p2777 = scmp.lt.s32.totalorder %s22, 1
          %s2778 = scalar_select %p2777, %s22, 1
          %s2779 = smul.addr %s2778, 2
          %s2780 = scalar_lea.vmem %s5, %s2779
        $region68: #{mlp_forward.2} parent=59 // pred_fallthru
          _
      $region60: #{mlp_forward.2} parent=5 // pred_fallthru
        _
    $region6: #{mlp_forward.2} parent=1 // loop_footer
      %s20 = sadd.s32 1, %s16
    $region7: #{mlp_forward.2} parent=1 // loop_footer_branch
      %15 = sbr.rel target = $region3
    $region8: #{mlp_forward.2} parent=1 // loop_exit
      _
    %2781 = vsyncpa [#allocation3], 1
    %s2782 = scalar_lea.sflag [#allocation3], 1
    %2783 = vsyncpa %s2782, 1
    %2784 = vsyncpa [#allocation5], 1

</llo_original>
